<compile_context>
chip_gen: v5e
topology: v5e:2x2
jax: 0.10.0
libtpu: 0.0.40
codegen_flags: <defaults>
</compile_context>

<pallas_src>
import jax
import jax.numpy as jnp
from jax.experimental import pallas as pl
from jax.experimental.pallas import tpu as pltpu

BERT_EMB = 768          # fixed by the module
LEAKY_SLOPE = 0.01      # nn.LeakyReLU default negative_slope

_TM_CAP = 512           # largest batch tile worth using; amortizes ~0.35us/step
_MIN_DIVISOR_TM = 128   # don't chase tiny exact divisors; padded tile is better


def _leaky_relu(x):
    return jnp.where(x > 0, x, LEAKY_SLOPE * x)


def _device_kind():
    try:
        return jax.devices()[0].device_kind.lower()
    except Exception:
        return ""


def _supports_buffered():
    # Narrow feature probe (replaces the old blanket except around pallas_call):
    # only checks whether this jax version accepts pipeline_mode=pl.Buffered(1).
    try:
        pl.BlockSpec((8, 128), lambda i: (0, 0), pipeline_mode=pl.Buffered(1))
        return True
    except Exception:
        return False


_HAS_BUFFERED = _supports_buffered()
_IS_V7 = "v7" in _device_kind()


def _round_up(x, m):
    return ((x + m - 1) // m) * m


def mlp_kernel(x_ref, w1_ref, w2_ref, w3_ref, b_ref, o_ref):
    # Three fused Linear + LeakyReLU layers, all operands resident in VMEM.
    # bf16 operands feed the MXU at full rate; accumulation, bias add and
    # LeakyReLU stay in f32.
    x = x_ref[...].astype(jnp.bfloat16)   # no-op convert when caller feeds bf16
    b = b_ref[...]                        # (3, D) f32 — one block for all biases

    h = jnp.dot(x, w1_ref[...], preferred_element_type=jnp.float32) + b[0:1, :]
    h = _leaky_relu(h)

    h = jnp.dot(h.astype(jnp.bfloat16), w2_ref[...],
                preferred_element_type=jnp.float32) + b[1:2, :]
    h = _leaky_relu(h)

    h = jnp.dot(h.astype(jnp.bfloat16), w3_ref[...],
                preferred_element_type=jnp.float32) + b[2:3, :]
    h = _leaky_relu(h)

    o_ref[...] = h.astype(o_ref.dtype)


def prepare_params(params, weight_dtype=jnp.bfloat16):
    """One-time parameter prep (hoisted out of the per-call path):
    transpose PyTorch (out, in) weights to (in, out) and cast to bf16;
    the three biases are packed into one (3, D) f32 array (single DMA block)."""
    return {
        "w1": params["w1"].T.astype(weight_dtype),
        "w2": params["w2"].T.astype(weight_dtype),
        "w3": params["w3"].T.astype(weight_dtype),
        "b": jnp.stack([params["b1"], params["b2"], params["b3"]],
                       axis=0).astype(jnp.float32),          # (3, D)
    }


def _choose_tm(B):
    """Padding- and megacore-aware batch-tile selection."""
    cap = _TM_CAP
    if _IS_V7 and B > 128:
        # v7x: 2 TensorCores/chip. Force >= 2 evenly sized grid steps so the
        # "parallel" batch axis actually uses both cores.
        cap = min(cap, _round_up(pl.cdiv(B, 2), 8))
    cap = max(8, cap - cap % 8)
    if B <= cap:
        return B                      # single tile (block == full batch dim is legal)
    # Prefer a tile that divides B exactly (no dead rows in the last step),
    # multiple of 8 for sublane alignment.
    tm = cap
    while tm >= _MIN_DIVISOR_TM:
        if B % tm == 0:
            return tm
        tm -= 8
    return cap                        # fall back: padded last tile


def _vmem_limit_bytes(tm, in_dtype, out_dtype):
    """Compute the VMEM ask from actual buffer sizes instead of a flat 40 MiB."""
    D = BERT_EMB
    w_bufs = 1 if _HAS_BUFFERED else 2
    weights = 3 * D * D * 2 * w_bufs                                  # bf16 weights
    biases = 8 * D * 4 * w_bufs                                       # (3,D) padded to 8 sublanes
    io = 2 * tm * D * (jnp.dtype(in_dtype).itemsize
                       + jnp.dtype(out_dtype).itemsize)               # double-buffered x/out tiles
    interm = 3 * tm * D * 4                                           # live f32/bf16 intermediates
    limit = int((weights + biases + io + interm) * 1.5)               # compiler scratch headroom
    return max(16 * 1024 * 1024, min(limit, 48 * 1024 * 1024))


def transformation_learner(x, prepared, *, tm=None, out_dtype=None):
    """x: [B, BERT_EMB] (f32 or bf16). prepared: output of prepare_params()."""
    B, D = x.shape
    assert D == BERT_EMB
    if out_dtype is None:
        out_dtype = x.dtype
    if tm is None:
        tm = _choose_tm(B)
    tm = min(tm, B)
    grid = (pl.cdiv(B, tm),)

    # Grid-invariant weight/bias blocks: constant index_map means they are never
    # re-fetched; single-buffer them when this jax version supports it.
    inv_kwargs = {"pipeline_mode": pl.Buffered(1)} if _HAS_BUFFERED else {}
    w_spec = pl.BlockSpec((D, D), lambda i: (0, 0), **inv_kwargs)
    b_spec = pl.BlockSpec((3, D), lambda i: (0, 0), **inv_kwargs)

    return pl.pallas_call(
        mlp_kernel,
        out_shape=jax.ShapeDtypeStruct((B, D), out_dtype),
        grid_spec=pltpu.PrefetchScalarGridSpec(
            num_scalar_prefetch=0,
            grid=grid,
            in_specs=[
                pl.BlockSpec((tm, D), lambda i: (i, 0)),   # x tile
                w_spec, w_spec, w_spec,                    # w1, w2, w3
                b_spec,                                    # packed biases
            ],
            out_specs=pl.BlockSpec((tm, D), lambda i: (i, 0)),
        ),
        compiler_params=pltpu.CompilerParams(
            dimension_semantics=("parallel",),             # batch axis shards across TCs (v7x)
            vmem_limit_bytes=_vmem_limit_bytes(tm, x.dtype, out_dtype),
        ),
    )(x, prepared["w1"], prepared["w2"], prepared["w3"], prepared["b"])


def init_params(key, dtype=jnp.float32):
    """Deterministic init of the three Linear(768,768) layers (PyTorch (out,in) layout)."""
    ks = jax.random.split(key, 6)
    bound = 1.0 / (BERT_EMB ** 0.5)  # matches nn.Linear default uniform bound
    def u(k, shape):
        return jax.random.uniform(k, shape, dtype=dtype, minval=-bound, maxval=bound)
    return {
        "w1": u(ks[0], (BERT_EMB, BERT_EMB)), "b1": u(ks[1], (BERT_EMB,)),
        "w2": u(ks[2], (BERT_EMB, BERT_EMB)), "b2": u(ks[3], (BERT_EMB,)),
        "w3": u(ks[4], (BERT_EMB, BERT_EMB)), "b3": u(ks[5], (BERT_EMB,)),
    }


def _reference_bf16(x, params):
    """Mirrors the kernel's numerics: bf16 operands, f32 accumulation."""
    def layer(h, w, b):
        y = jnp.dot(h.astype(jnp.bfloat16), w.T.astype(jnp.bfloat16),
                    preferred_element_type=jnp.float32) + b
        return jnp.where(y > 0, y, LEAKY_SLOPE * y)
    h = layer(x, params["w1"], params["b1"])
    h = layer(h, params["w2"], params["b2"])
    h = layer(h, params["w3"], params["b3"])
    return h


def _reference_f32(x, params):
    """Pure f32 reference matching the PyTorch module."""
    h = x @ params["w1"].T + params["b1"]
    h = jnp.where(h > 0, h, LEAKY_SLOPE * h)
    h = h @ params["w2"].T + params["b2"]
    h = jnp.where(h > 0, h, LEAKY_SLOPE * h)
    h = h @ params["w3"].T + params["b3"]
    h = jnp.where(h > 0, h, LEAKY_SLOPE * h)
    return h


if __name__ == "__main__":
    key = jax.random.PRNGKey(0)
    k_x, k_p, k_x2 = jax.random.split(key, 3)

    params = init_params(k_p)
    prepared = prepare_params(params)   # one-time prep: transpose + bf16 cast + bias pack

    # Small batch: single grid step over the whole batch.
    batch = 8
    x = jax.random.normal(k_x, (batch, BERT_EMB), dtype=jnp.float32)
    out = jax.block_until_ready(transformation_learner(x, prepared))
    assert out.shape == (batch, BERT_EMB) and out.dtype == jnp.float32
    assert jnp.allclose(out, _reference_bf16(x, params), atol=2e-3, rtol=2e-3)
    # Loose check against the exact f32 PyTorch semantics (bf16 weights relax tolerance).
    assert jnp.allclose(out, _reference_f32(x, params), atol=5e-2, rtol=5e-2)

    # Larger batch: exercises padding-aware tiling (384 -> single 384 tile on
    # v5e/v6e, 2 x 192 even split across v7x TensorCores).
    batch2 = 384
    x2 = jax.random.normal(k_x2, (batch2, BERT_EMB), dtype=jnp.float32)
    out2 = jax.block_until_ready(transformation_learner(x2, prepared))
    assert out2.shape == (batch2, BERT_EMB)
    assert jnp.allclose(out2, _reference_bf16(x2, params), atol=2e-3, rtol=2e-3)

    # bf16-activation fast path: bf16 in / bf16 out halves activation HBM traffic.
    out3 = jax.block_until_ready(
        transformation_learner(x2.astype(jnp.bfloat16), prepared,
                               out_dtype=jnp.bfloat16))
    assert out3.shape == (batch2, BERT_EMB) and out3.dtype == jnp.bfloat16
    assert jnp.allclose(out3.astype(jnp.float32), _reference_bf16(x2, params),
                        atol=2e-2, rtol=2e-2)

    print("KERNEL_OK")
</pallas_src>

<mosaic_0001>
module attributes {stable_mosaic.version = 11 : i64} {
  func.func @mlp_kernel(%arg0: i32, %arg1: memref<8x768xf32, #tpu.memory_space<vmem>>, %arg2: memref<768x768xbf16, #tpu.memory_space<vmem>>, %arg3: memref<768x768xbf16, #tpu.memory_space<vmem>>, %arg4: memref<768x768xbf16, #tpu.memory_space<vmem>>, %arg5: memref<3x768xf32, #tpu.memory_space<vmem>>, %arg6: memref<8x768xf32, #tpu.memory_space<vmem>>) attributes {dimension_semantics = [#tpu.dimension_semantics<parallel>], iteration_bounds = array<i64: 1>, scalar_prefetch = 0 : i64, scratch_operands = 0 : i64, tpu.core_type = #tpu.core_type<tc>, window_params = [{transform_indices = @transform_0, window_bounds = array<i64: 8, 768>}, {pipeline_mode = #tpu.pipeline_mode<synchronous>, transform_indices = @transform_1, window_bounds = array<i64: 768, 768>}, {pipeline_mode = #tpu.pipeline_mode<synchronous>, transform_indices = @transform_2, window_bounds = array<i64: 768, 768>}, {pipeline_mode = #tpu.pipeline_mode<synchronous>, transform_indices = @transform_3, window_bounds = array<i64: 768, 768>}, {pipeline_mode = #tpu.pipeline_mode<synchronous>, transform_indices = @transform_4, window_bounds = array<i64: 3, 768>}, {transform_indices = @transform_5, window_bounds = array<i64: 8, 768>}]} {
    %c0 = arith.constant 0 : index
    %c0_0 = arith.constant 0 : index
    %0 = vector.load %arg1[%c0, %c0_0] : memref<8x768xf32, #tpu.memory_space<vmem>>, vector<8x768xf32>
    %1 = arith.truncf %0 : vector<8x768xf32> to vector<8x768xbf16>
    %c0_1 = arith.constant 0 : index
    %c0_2 = arith.constant 0 : index
    %2 = vector.load %arg5[%c0_1, %c0_2] : memref<3x768xf32, #tpu.memory_space<vmem>>, vector<3x768xf32>
    %c0_3 = arith.constant 0 : index
    %c0_4 = arith.constant 0 : index
    %3 = vector.load %arg2[%c0_3, %c0_4] : memref<768x768xbf16, #tpu.memory_space<vmem>>, vector<768x768xbf16>
    %cst = arith.constant dense<0.000000e+00> : vector<8x768xf32>
    %4 = tpu.matmul %1, %3, %cst {dimension_numbers = #tpu.dot_dimension_numbers<[1], [0], [0], [1], [0, 0, 1, 1], [], []>} : vector<8x768xbf16>, vector<768x768xbf16>, vector<8x768xf32> -> vector<8x768xf32>
    %5 = vector.extract_strided_slice %2 {offsets = [0, 0], sizes = [1, 768], strides = [1, 1]} : vector<3x768xf32> to vector<1x768xf32>
    %6 = vector.broadcast %5 : vector<1x768xf32> to vector<8x768xf32>
    %7 = arith.addf %4, %6 : vector<8x768xf32>
    %cst_5 = arith.constant 0.000000e+00 : f32
    %8 = vector.broadcast %cst_5 : f32 to vector<8x768xf32>
    %9 = arith.cmpf ogt, %7, %8 : vector<8x768xf32>
    %cst_6 = arith.constant 0.00999999977 : f32
    %10 = vector.broadcast %cst_6 : f32 to vector<8x768xf32>
    %11 = arith.mulf %10, %7 : vector<8x768xf32>
    %12 = arith.select %9, %7, %11 : vector<8x768xi1>, vector<8x768xf32>
    %13 = arith.truncf %12 : vector<8x768xf32> to vector<8x768xbf16>
    %c0_7 = arith.constant 0 : index
    %c0_8 = arith.constant 0 : index
    %14 = vector.load %arg3[%c0_7, %c0_8] : memref<768x768xbf16, #tpu.memory_space<vmem>>, vector<768x768xbf16>
    %cst_9 = arith.constant dense<0.000000e+00> : vector<8x768xf32>
    %15 = tpu.matmul %13, %14, %cst_9 {dimension_numbers = #tpu.dot_dimension_numbers<[1], [0], [0], [1], [0, 0, 1, 1], [], []>} : vector<8x768xbf16>, vector<768x768xbf16>, vector<8x768xf32> -> vector<8x768xf32>
    %16 = vector.extract_strided_slice %2 {offsets = [1, 0], sizes = [1, 768], strides = [1, 1]} : vector<3x768xf32> to vector<1x768xf32>
    %17 = vector.broadcast %16 : vector<1x768xf32> to vector<8x768xf32>
    %18 = arith.addf %15, %17 : vector<8x768xf32>
    %cst_10 = arith.constant 0.000000e+00 : f32
    %19 = vector.broadcast %cst_10 : f32 to vector<8x768xf32>
    %20 = arith.cmpf ogt, %18, %19 : vector<8x768xf32>
    %cst_11 = arith.constant 0.00999999977 : f32
    %21 = vector.broadcast %cst_11 : f32 to vector<8x768xf32>
    %22 = arith.mulf %21, %18 : vector<8x768xf32>
    %23 = arith.select %20, %18, %22 : vector<8x768xi1>, vector<8x768xf32>
    %24 = arith.truncf %23 : vector<8x768xf32> to vector<8x768xbf16>
    %c0_12 = arith.constant 0 : index
    %c0_13 = arith.constant 0 : index
    %25 = vector.load %arg4[%c0_12, %c0_13] : memref<768x768xbf16, #tpu.memory_space<vmem>>, vector<768x768xbf16>
    %cst_14 = arith.constant dense<0.000000e+00> : vector<8x768xf32>
    %26 = tpu.matmul %24, %25, %cst_14 {dimension_numbers = #tpu.dot_dimension_numbers<[1], [0], [0], [1], [0, 0, 1, 1], [], []>} : vector<8x768xbf16>, vector<768x768xbf16>, vector<8x768xf32> -> vector<8x768xf32>
    %27 = vector.extract_strided_slice %2 {offsets = [2, 0], sizes = [1, 768], strides = [1, 1]} : vector<3x768xf32> to vector<1x768xf32>
    %28 = vector.broadcast %27 : vector<1x768xf32> to vector<8x768xf32>
    %29 = arith.addf %26, %28 : vector<8x768xf32>
    %cst_15 = arith.constant 0.000000e+00 : f32
    %30 = vector.broadcast %cst_15 : f32 to vector<8x768xf32>
    %31 = arith.cmpf ogt, %29, %30 : vector<8x768xf32>
    %cst_16 = arith.constant 0.00999999977 : f32
    %32 = vector.broadcast %cst_16 : f32 to vector<8x768xf32>
    %33 = arith.mulf %32, %29 : vector<8x768xf32>
    %34 = arith.select %31, %29, %33 : vector<8x768xi1>, vector<8x768xf32>
    %c0_17 = arith.constant 0 : index
    %c0_18 = arith.constant 0 : index
    %35 = vector.load %arg6[%c0_17, %c0_18] : memref<8x768xf32, #tpu.memory_space<vmem>>, vector<8x768xf32>
    tpu.vector_store %arg6[%c0_17, %c0_18], %34 {strides = array<i32>} : memref<8x768xf32, #tpu.memory_space<vmem>>, vector<8x768xf32>,
    return
  }
  func.func @transform_0(%arg0: i32) -> (i32, i32) {
    %c0_i32 = arith.constant 0 : i32
    %c0_i32_0 = arith.constant 0 : i32
    return %arg0, %c0_i32 : i32, i32
  }
  func.func @transform_1(%arg0: i32) -> (i32, i32) {
    %c0_i32 = arith.constant 0 : i32
    %c0_i32_0 = arith.constant 0 : i32
    %c0_i32_1 = arith.constant 0 : i32
    return %c0_i32, %c0_i32_0 : i32, i32
  }
  func.func @transform_2(%arg0: i32) -> (i32, i32) {
    %c0_i32 = arith.constant 0 : i32
    %c0_i32_0 = arith.constant 0 : i32
    %c0_i32_1 = arith.constant 0 : i32
    return %c0_i32, %c0_i32_0 : i32, i32
  }
  func.func @transform_3(%arg0: i32) -> (i32, i32) {
    %c0_i32 = arith.constant 0 : i32
    %c0_i32_0 = arith.constant 0 : i32
    %c0_i32_1 = arith.constant 0 : i32
    return %c0_i32, %c0_i32_0 : i32, i32
  }
  func.func @transform_4(%arg0: i32) -> (i32, i32) {
    %c0_i32 = arith.constant 0 : i32
    %c0_i32_0 = arith.constant 0 : i32
    %c0_i32_1 = arith.constant 0 : i32
    return %c0_i32, %c0_i32_0 : i32, i32
  }
  func.func @transform_5(%arg0: i32) -> (i32, i32) {
    %c0_i32 = arith.constant 0 : i32
    %c0_i32_0 = arith.constant 0 : i32
    return %arg0, %c0_i32 : i32, i32
  }
}

</mosaic_0001>

<llo_original>
// kernel: tpu_custom_call.1
$region0: #{tpu_custom_call.1}
  #allocation0 [shape = 'u32[]', space=smem, size = 0x4, offset = 0x4, fixed_abs, tag = 'smem constant byte address 0x4 - core index']
  #allocation1 [shape = 'u32[72,128]{1,0:T(1,128)}', space=vmem, size = 0x9000, scoped, tag = 'internal scratch']
  %s0 = inlined_call_operand.hbm [shape: f32[8,768], index: 0, kind: input, shape index: {}]
  %s1 = inlined_call_operand.hbm [shape: bf16[768,768], index: 1, kind: input, shape index: {}]
  %s2 = inlined_call_operand.hbm [shape: bf16[768,768], index: 2, kind: input, shape index: {}]
  %s3 = inlined_call_operand.hbm [shape: bf16[768,768], index: 3, kind: input, shape index: {}]
  %s4 = inlined_call_operand.hbm [shape: f32[3,768], index: 4, kind: input, shape index: {}]
  %s5 = inlined_call_operand.hbm [shape: f32[8,768], index: 5, kind: output, shape index: {}]
  %s6 = sld [smem:[#allocation0]]
  $region50: #{tpu_custom_call.1} parent=0
    _
  %s8 = ssub.s32 1, %s6
  %s9 = scalar_select 0, %s8, %s6
  $region1: #{tpu_custom_call.1} parent=0
    #allocation2 [shape = 'u8[24576]{0}', space=vmem, size = 0x6000, scoped, tag = 'input window, operand 0, single buffered']
    #allocation3 [shape = 's32[1]{0}', space=sflag, size = 0x4, scoped, tag = 'scoped memory for tpu_custom_call.1']
    #allocation4 [shape = 's32[1]{0}', space=sflag, size = 0x4, scoped, tag = 'scoped memory for tpu_custom_call.1']
    #allocation5 [shape = 'u8[1179648]{0}', space=vmem, size = 0x120000, scoped, tag = 'input window, operand 1, single buffered']
    #allocation6 [shape = 's32[1]{0}', space=sflag, size = 0x4, scoped, tag = 'scoped memory for tpu_custom_call.1']
    #allocation7 [shape = 'u8[1179648]{0}', space=vmem, size = 0x120000, scoped, tag = 'input window, operand 2, single buffered']
    #allocation8 [shape = 'u8[1179648]{0}', space=vmem, size = 0x120000, scoped, tag = 'input window, operand 3, single buffered']
    #allocation9 [shape = 's32[1]{0}', space=sflag, size = 0x4, scoped, tag = 'scoped memory for tpu_custom_call.1']
    #allocation10 [shape = 'u8[12288]{0}', space=vmem, size = 0x3000, scoped, tag = 'input window, operand 4, single buffered']
    #allocation11 [shape = 'u8[24576]{0}', space=vmem, size = 0x6000, scoped, tag = 'output window, operand 0, single buffered']
    %10 = vsyncpa [#allocation3], 0
    %11 = vsyncpa [#allocation6], 0
    %12 = vsyncpa [#allocation9], 0
    %13 = vsyncpa [#allocation4], 0
    // Predicated region
    $region2: #{tpu_custom_call.1} parent=1 // pred_check
      _
    $region3: #{tpu_custom_call.1} parent=1 // pred_check_branch
      %15 = sbr.rel (0) target = $region5
    $region4: #{tpu_custom_call.1} parent=1 // pred_region
      %17 = vsyncadd [#allocation3], 0
      %s19 = sshll.u32 %s0, 4
      %s20 = int_to_ptr.hbm [resolvable:$true] %s19
      %s21 = sshll.u32 [#allocation2], 4
      %s22 = int_to_ptr.vmem [resolvable:$true] %s21
      %24 = dma.hbm_to_vmem [thread:$0]  %s20, 768, %s22, [#allocation3]
    $region5: #{tpu_custom_call.1} parent=1 // pred_fallthru
      _
    // Predicated region
    $region6: #{tpu_custom_call.1} parent=1 // pred_check
      _
    $region7: #{tpu_custom_call.1} parent=1 // pred_check_branch
      %26 = sbr.rel (0) target = $region9
    $region8: #{tpu_custom_call.1} parent=1 // pred_region
      %28 = vsyncadd [#allocation6], 0
      %s29 = sshll.u32 %s1, 4
      %s30 = int_to_ptr.hbm [resolvable:$true] %s29
      %s31 = sshll.u32 [#allocation5], 4
      %s32 = int_to_ptr.vmem [resolvable:$true] %s31
      %37 = dma.hbm_to_vmem [thread:$0]  %s30, 36864, %s32, [#allocation6], 384, 384, 24
    $region9: #{tpu_custom_call.1} parent=1 // pred_fallthru
      _
    // Predicated region
    $region10: #{tpu_custom_call.1} parent=1 // pred_check
      _
    $region11: #{tpu_custom_call.1} parent=1 // pred_check_branch
      %39 = sbr.rel (0) target = $region13
    $region12: #{tpu_custom_call.1} parent=1 // pred_region
      %41 = vsyncadd [#allocation6], 0
      %s42 = sshll.u32 %s2, 4
      %s43 = int_to_ptr.hbm [resolvable:$true] %s42
      %s44 = sshll.u32 [#allocation7], 4
      %s45 = int_to_ptr.vmem [resolvable:$true] %s44
      %50 = dma.hbm_to_vmem [thread:$0]  %s43, 36864, %s45, [#allocation6], 384, 384, 24
    $region13: #{tpu_custom_call.1} parent=1 // pred_fallthru
      _
    // Predicated region
    $region14: #{tpu_custom_call.1} parent=1 // pred_check
      _
    $region15: #{tpu_custom_call.1} parent=1 // pred_check_branch
      %52 = sbr.rel (0) target = $region17
    $region16: #{tpu_custom_call.1} parent=1 // pred_region
      %54 = vsyncadd [#allocation9], 0
      %s55 = sshll.u32 %s3, 4
      %s56 = int_to_ptr.hbm [resolvable:$true] %s55
      %s57 = sshll.u32 [#allocation8], 4
      %s58 = int_to_ptr.vmem [resolvable:$true] %s57
      %63 = dma.hbm_to_vmem [thread:$0]  %s56, 36864, %s58, [#allocation9], 384, 384, 24
    $region17: #{tpu_custom_call.1} parent=1 // pred_fallthru
      _
    // Predicated region
    $region18: #{tpu_custom_call.1} parent=1 // pred_check
      _
    $region19: #{tpu_custom_call.1} parent=1 // pred_check_branch
      %65 = sbr.rel (0) target = $region21
    $region20: #{tpu_custom_call.1} parent=1 // pred_region
      %67 = vsyncadd [#allocation9], 0
      %s69 = sshll.u32 %s4, 4
      %s70 = int_to_ptr.hbm [resolvable:$true] %s69
      %s71 = sshll.u32 [#allocation10], 4
      %s72 = int_to_ptr.vmem [resolvable:$true] %s71
      %74 = dma.hbm_to_vmem [thread:$0]  %s70, 384, %s72, [#allocation9]
    $region21: #{tpu_custom_call.1} parent=1 // pred_fallthru
      _
    // Predicated region
    $region22: #{tpu_custom_call.1} parent=1 // pred_check
      _
    $region23: #{tpu_custom_call.1} parent=1 // pred_check_branch
      %76 = sbr.rel (0) target = $region25
    $region24: #{tpu_custom_call.1} parent=1 // pred_region
      %78 = dma.done [#allocation3], 768
    $region25: #{tpu_custom_call.1} parent=1 // pred_fallthru
      _
    // Predicated region
    $region26: #{tpu_custom_call.1} parent=1 // pred_check
      _
    $region27: #{tpu_custom_call.1} parent=1 // pred_check_branch
      %80 = sbr.rel (0) target = $region29
    $region28: #{tpu_custom_call.1} parent=1 // pred_region
      %82 = dma.done [#allocation6], 36864
    $region29: #{tpu_custom_call.1} parent=1 // pred_fallthru
      _
    // Predicated region
    $region30: #{tpu_custom_call.1} parent=1 // pred_check
      _
    $region31: #{tpu_custom_call.1} parent=1 // pred_check_branch
      %84 = sbr.rel (0) target = $region33
    $region32: #{tpu_custom_call.1} parent=1 // pred_region
      %86 = dma.done [#allocation6], 36864
    $region33: #{tpu_custom_call.1} parent=1 // pred_fallthru
      _
    // Predicated region
    $region34: #{tpu_custom_call.1} parent=1 // pred_check
      _
    $region35: #{tpu_custom_call.1} parent=1 // pred_check_branch
      %88 = sbr.rel (0) target = $region37
    $region36: #{tpu_custom_call.1} parent=1 // pred_region
      %90 = dma.done [#allocation9], 36864
    $region37: #{tpu_custom_call.1} parent=1 // pred_fallthru
      _
    // Predicated region
    $region38: #{tpu_custom_call.1} parent=1 // pred_check
      _
    $region39: #{tpu_custom_call.1} parent=1 // pred_check_branch
      %92 = sbr.rel (0) target = $region41
    $region40: #{tpu_custom_call.1} parent=1 // pred_region
      %94 = dma.done [#allocation9], 384
    $region41: #{tpu_custom_call.1} parent=1 // pred_fallthru
      _
    %v95 = vld [vmem:[#allocation2] sm:$0xff]
    %v96 = vld [vmem:[#allocation2 + $0x8] sm:$0xff]
    %v97 = vld [vmem:[#allocation2 + $0x10] sm:$0xff]
    %v98 = vld [vmem:[#allocation2 + $0x18] sm:$0xff]
    %v99 = vld [vmem:[#allocation2 + $0x20] sm:$0xff]
    %v100 = vld [vmem:[#allocation2 + $0x28] sm:$0xff]
    %v101 = vpack.c.bf16 %v95, %v95
    %v102 = vpack.c.bf16 %v96, %v96
    %v103 = vpack.c.bf16 %v97, %v97
    %v104 = vpack.c.bf16 %v98, %v98
    %v105 = vpack.c.bf16 %v99, %v99
    %v106 = vpack.c.bf16 %v100, %v100
    %v107 = vld [vmem:[#allocation10] sm:$0x77]
    %v108 = vld [vmem:[#allocation10 + $0x8] sm:$0x77]
    %v109 = vld [vmem:[#allocation10 + $0x10] sm:$0x77]
    %v110 = vld [vmem:[#allocation5] sm:$0xff]
    %v111 = vld [vmem:[#allocation5 + $0x8] sm:$0xff]
    %v112 = vld [vmem:[#allocation5 + $0x10] sm:$0xff]
    %v113 = vld [vmem:[#allocation5 + $0x18] sm:$0xff]
    %v114 = vld [vmem:[#allocation5 + $0x20] sm:$0xff]
    %v115 = vld [vmem:[#allocation5 + $0x28] sm:$0xff]
    %v116 = vld [vmem:[#allocation5 + $0x30] sm:$0xff]
    %v117 = vld [vmem:[#allocation5 + $0x38] sm:$0xff]
    %v118 = vld [vmem:[#allocation5 + $0x40] sm:$0xff]
    %v119 = vld [vmem:[#allocation5 + $0x48] sm:$0xff]
    %v120 = vld [vmem:[#allocation5 + $0x50] sm:$0xff]
    %v121 = vld [vmem:[#allocation5 + $0x58] sm:$0xff]
    %v122 = vld [vmem:[#allocation5 + $0x60] sm:$0xff]
    %v123 = vld [vmem:[#allocation5 + $0x68] sm:$0xff]
    %v124 = vld [vmem:[#allocation5 + $0x70] sm:$0xff]
    %v125 = vld [vmem:[#allocation5 + $0x78] sm:$0xff]
    %v126 = vld [vmem:[#allocation5 + $0x80] sm:$0xff]
    %v127 = vld [vmem:[#allocation5 + $0x88] sm:$0xff]
    %v128 = vld [vmem:[#allocation5 + $0x90] sm:$0xff]
    %v129 = vld [vmem:[#allocation5 + $0x98] sm:$0xff]
    %v130 = vld [vmem:[#allocation5 + $0xa0] sm:$0xff]
    %v131 = vld [vmem:[#allocation5 + $0xa8] sm:$0xff]
    %v132 = vld [vmem:[#allocation5 + $0xb0] sm:$0xff]
    %v133 = vld [vmem:[#allocation5 + $0xb8] sm:$0xff]
    %v134 = vld [vmem:[#allocation5 + $0xc0] sm:$0xff]
    %v135 = vld [vmem:[#allocation5 + $0xc8] sm:$0xff]
    %v136 = vld [vmem:[#allocation5 + $0xd0] sm:$0xff]
    %v137 = vld [vmem:[#allocation5 + $0xd8] sm:$0xff]
    %v138 = vld [vmem:[#allocation5 + $0xe0] sm:$0xff]
    %v139 = vld [vmem:[#allocation5 + $0xe8] sm:$0xff]
    %v140 = vld [vmem:[#allocation5 + $0xf0] sm:$0xff]
    %v141 = vld [vmem:[#allocation5 + $0xf8] sm:$0xff]
    %v142 = vld [vmem:[#allocation5 + $0x100] sm:$0xff]
    %v143 = vld [vmem:[#allocation5 + $0x108] sm:$0xff]
    %v144 = vld [vmem:[#allocation5 + $0x110] sm:$0xff]
    %v145 = vld [vmem:[#allocation5 + $0x118] sm:$0xff]
    %v146 = vld [vmem:[#allocation5 + $0x120] sm:$0xff]
    %v147 = vld [vmem:[#allocation5 + $0x128] sm:$0xff]
    %v148 = vld [vmem:[#allocation5 + $0x130] sm:$0xff]
    %v149 = vld [vmem:[#allocation5 + $0x138] sm:$0xff]
    %v150 = vld [vmem:[#allocation5 + $0x140] sm:$0xff]
    %v151 = vld [vmem:[#allocation5 + $0x148] sm:$0xff]
    %v152 = vld [vmem:[#allocation5 + $0x150] sm:$0xff]
    %v153 = vld [vmem:[#allocation5 + $0x158] sm:$0xff]
    %v154 = vld [vmem:[#allocation5 + $0x160] sm:$0xff]
    %v155 = vld [vmem:[#allocation5 + $0x168] sm:$0xff]
    %v156 = vld [vmem:[#allocation5 + $0x170] sm:$0xff]
    %v157 = vld [vmem:[#allocation5 + $0x178] sm:$0xff]
    %v158 = vld [vmem:[#allocation5 + $0x180] sm:$0xff]
    %v159 = vld [vmem:[#allocation5 + $0x188] sm:$0xff]
    %v160 = vld [vmem:[#allocation5 + $0x190] sm:$0xff]
    %v161 = vld [vmem:[#allocation5 + $0x198] sm:$0xff]
    %v162 = vld [vmem:[#allocation5 + $0x1a0] sm:$0xff]
    %v163 = vld [vmem:[#allocation5 + $0x1a8] sm:$0xff]
    %v164 = vld [vmem:[#allocation5 + $0x1b0] sm:$0xff]
    %v165 = vld [vmem:[#allocation5 + $0x1b8] sm:$0xff]
    %v166 = vld [vmem:[#allocation5 + $0x1c0] sm:$0xff]
    %v167 = vld [vmem:[#allocation5 + $0x1c8] sm:$0xff]
    %v168 = vld [vmem:[#allocation5 + $0x1d0] sm:$0xff]
    %v169 = vld [vmem:[#allocation5 + $0x1d8] sm:$0xff]
    %v170 = vld [vmem:[#allocation5 + $0x1e0] sm:$0xff]
    %v171 = vld [vmem:[#allocation5 + $0x1e8] sm:$0xff]
    %v172 = vld [vmem:[#allocation5 + $0x1f0] sm:$0xff]
    %v173 = vld [vmem:[#allocation5 + $0x1f8] sm:$0xff]
    %v174 = vld [vmem:[#allocation5 + $0x200] sm:$0xff]
    %v175 = vld [vmem:[#allocation5 + $0x208] sm:$0xff]
    %v176 = vld [vmem:[#allocation5 + $0x210] sm:$0xff]
    %v177 = vld [vmem:[#allocation5 + $0x218] sm:$0xff]
    %v178 = vld [vmem:[#allocation5 + $0x220] sm:$0xff]
    %v179 = vld [vmem:[#allocation5 + $0x228] sm:$0xff]
    %v180 = vld [vmem:[#allocation5 + $0x230] sm:$0xff]
    %v181 = vld [vmem:[#allocation5 + $0x238] sm:$0xff]
    %v182 = vld [vmem:[#allocation5 + $0x240] sm:$0xff]
    %v183 = vld [vmem:[#allocation5 + $0x248] sm:$0xff]
    %v184 = vld [vmem:[#allocation5 + $0x250] sm:$0xff]
    %v185 = vld [vmem:[#allocation5 + $0x258] sm:$0xff]
    %v186 = vld [vmem:[#allocation5 + $0x260] sm:$0xff]
    %v187 = vld [vmem:[#allocation5 + $0x268] sm:$0xff]
    %v188 = vld [vmem:[#allocation5 + $0x270] sm:$0xff]
    %v189 = vld [vmem:[#allocation5 + $0x278] sm:$0xff]
    %v190 = vld [vmem:[#allocation5 + $0x280] sm:$0xff]
    %v191 = vld [vmem:[#allocation5 + $0x288] sm:$0xff]
    %v192 = vld [vmem:[#allocation5 + $0x290] sm:$0xff]
    %v193 = vld [vmem:[#allocation5 + $0x298] sm:$0xff]
    %v194 = vld [vmem:[#allocation5 + $0x2a0] sm:$0xff]
    %v195 = vld [vmem:[#allocation5 + $0x2a8] sm:$0xff]
    %v196 = vld [vmem:[#allocation5 + $0x2b0] sm:$0xff]
    %v197 = vld [vmem:[#allocation5 + $0x2b8] sm:$0xff]
    %v198 = vld [vmem:[#allocation5 + $0x2c0] sm:$0xff]
    %v199 = vld [vmem:[#allocation5 + $0x2c8] sm:$0xff]
    %v200 = vld [vmem:[#allocation5 + $0x2d0] sm:$0xff]
    %v201 = vld [vmem:[#allocation5 + $0x2d8] sm:$0xff]
    %v202 = vld [vmem:[#allocation5 + $0x2e0] sm:$0xff]
    %v203 = vld [vmem:[#allocation5 + $0x2e8] sm:$0xff]
    %v204 = vld [vmem:[#allocation5 + $0x2f0] sm:$0xff]
    %v205 = vld [vmem:[#allocation5 + $0x2f8] sm:$0xff]
    %v206 = vld [vmem:[#allocation5 + $0x300] sm:$0xff]
    %v207 = vld [vmem:[#allocation5 + $0x308] sm:$0xff]
    %v208 = vld [vmem:[#allocation5 + $0x310] sm:$0xff]
    %v209 = vld [vmem:[#allocation5 + $0x318] sm:$0xff]
    %v210 = vld [vmem:[#allocation5 + $0x320] sm:$0xff]
    %v211 = vld [vmem:[#allocation5 + $0x328] sm:$0xff]
    %v212 = vld [vmem:[#allocation5 + $0x330] sm:$0xff]
    %v213 = vld [vmem:[#allocation5 + $0x338] sm:$0xff]
    %v214 = vld [vmem:[#allocation5 + $0x340] sm:$0xff]
    %v215 = vld [vmem:[#allocation5 + $0x348] sm:$0xff]
    %v216 = vld [vmem:[#allocation5 + $0x350] sm:$0xff]
    %v217 = vld [vmem:[#allocation5 + $0x358] sm:$0xff]
    %v218 = vld [vmem:[#allocation5 + $0x360] sm:$0xff]
    %v219 = vld [vmem:[#allocation5 + $0x368] sm:$0xff]
    %v220 = vld [vmem:[#allocation5 + $0x370] sm:$0xff]
    %v221 = vld [vmem:[#allocation5 + $0x378] sm:$0xff]
    %v222 = vld [vmem:[#allocation5 + $0x380] sm:$0xff]
    %v223 = vld [vmem:[#allocation5 + $0x388] sm:$0xff]
    %v224 = vld [vmem:[#allocation5 + $0x390] sm:$0xff]
    %v225 = vld [vmem:[#allocation5 + $0x398] sm:$0xff]
    %v226 = vld [vmem:[#allocation5 + $0x3a0] sm:$0xff]
    %v227 = vld [vmem:[#allocation5 + $0x3a8] sm:$0xff]
    %v228 = vld [vmem:[#allocation5 + $0x3b0] sm:$0xff]
    %v229 = vld [vmem:[#allocation5 + $0x3b8] sm:$0xff]
    %v230 = vld [vmem:[#allocation5 + $0x3c0] sm:$0xff]
    %v231 = vld [vmem:[#allocation5 + $0x3c8] sm:$0xff]
    %v232 = vld [vmem:[#allocation5 + $0x3d0] sm:$0xff]
    %v233 = vld [vmem:[#allocation5 + $0x3d8] sm:$0xff]
    %v234 = vld [vmem:[#allocation5 + $0x3e0] sm:$0xff]
    %v235 = vld [vmem:[#allocation5 + $0x3e8] sm:$0xff]
    %v236 = vld [vmem:[#allocation5 + $0x3f0] sm:$0xff]
    %v237 = vld [vmem:[#allocation5 + $0x3f8] sm:$0xff]
    %v238 = vld [vmem:[#allocation5 + $0x400] sm:$0xff]
    %v239 = vld [vmem:[#allocation5 + $0x408] sm:$0xff]
    %v240 = vld [vmem:[#allocation5 + $0x410] sm:$0xff]
    %v241 = vld [vmem:[#allocation5 + $0x418] sm:$0xff]
    %v242 = vld [vmem:[#allocation5 + $0x420] sm:$0xff]
    %v243 = vld [vmem:[#allocation5 + $0x428] sm:$0xff]
    %v244 = vld [vmem:[#allocation5 + $0x430] sm:$0xff]
    %v245 = vld [vmem:[#allocation5 + $0x438] sm:$0xff]
    %v246 = vld [vmem:[#allocation5 + $0x440] sm:$0xff]
    %v247 = vld [vmem:[#allocation5 + $0x448] sm:$0xff]
    %v248 = vld [vmem:[#allocation5 + $0x450] sm:$0xff]
    %v249 = vld [vmem:[#allocation5 + $0x458] sm:$0xff]
    %v250 = vld [vmem:[#allocation5 + $0x460] sm:$0xff]
    %v251 = vld [vmem:[#allocation5 + $0x468] sm:$0xff]
    %v252 = vld [vmem:[#allocation5 + $0x470] sm:$0xff]
    %v253 = vld [vmem:[#allocation5 + $0x478] sm:$0xff]
    %v254 = vld [vmem:[#allocation5 + $0x480] sm:$0xff]
    %v255 = vld [vmem:[#allocation5 + $0x488] sm:$0xff]
    %v256 = vld [vmem:[#allocation5 + $0x490] sm:$0xff]
    %v257 = vld [vmem:[#allocation5 + $0x498] sm:$0xff]
    %v258 = vld [vmem:[#allocation5 + $0x4a0] sm:$0xff]
    %v259 = vld [vmem:[#allocation5 + $0x4a8] sm:$0xff]
    %v260 = vld [vmem:[#allocation5 + $0x4b0] sm:$0xff]
    %v261 = vld [vmem:[#allocation5 + $0x4b8] sm:$0xff]
    %v262 = vld [vmem:[#allocation5 + $0x4c0] sm:$0xff]
    %v263 = vld [vmem:[#allocation5 + $0x4c8] sm:$0xff]
    %v264 = vld [vmem:[#allocation5 + $0x4d0] sm:$0xff]
    %v265 = vld [vmem:[#allocation5 + $0x4d8] sm:$0xff]
    %v266 = vld [vmem:[#allocation5 + $0x4e0] sm:$0xff]
    %v267 = vld [vmem:[#allocation5 + $0x4e8] sm:$0xff]
    %v268 = vld [vmem:[#allocation5 + $0x4f0] sm:$0xff]
    %v269 = vld [vmem:[#allocation5 + $0x4f8] sm:$0xff]
    %v270 = vld [vmem:[#allocation5 + $0x500] sm:$0xff]
    %v271 = vld [vmem:[#allocation5 + $0x508] sm:$0xff]
    %v272 = vld [vmem:[#allocation5 + $0x510] sm:$0xff]
    %v273 = vld [vmem:[#allocation5 + $0x518] sm:$0xff]
    %v274 = vld [vmem:[#allocation5 + $0x520] sm:$0xff]
    %v275 = vld [vmem:[#allocation5 + $0x528] sm:$0xff]
    %v276 = vld [vmem:[#allocation5 + $0x530] sm:$0xff]
    %v277 = vld [vmem:[#allocation5 + $0x538] sm:$0xff]
    %v278 = vld [vmem:[#allocation5 + $0x540] sm:$0xff]
    %v279 = vld [vmem:[#allocation5 + $0x548] sm:$0xff]
    %v280 = vld [vmem:[#allocation5 + $0x550] sm:$0xff]
    %v281 = vld [vmem:[#allocation5 + $0x558] sm:$0xff]
    %v282 = vld [vmem:[#allocation5 + $0x560] sm:$0xff]
    %v283 = vld [vmem:[#allocation5 + $0x568] sm:$0xff]
    %v284 = vld [vmem:[#allocation5 + $0x570] sm:$0xff]
    %v285 = vld [vmem:[#allocation5 + $0x578] sm:$0xff]
    %v286 = vld [vmem:[#allocation5 + $0x580] sm:$0xff]
    %v287 = vld [vmem:[#allocation5 + $0x588] sm:$0xff]
    %v288 = vld [vmem:[#allocation5 + $0x590] sm:$0xff]
    %v289 = vld [vmem:[#allocation5 + $0x598] sm:$0xff]
    %v290 = vld [vmem:[#allocation5 + $0x5a0] sm:$0xff]
    %v291 = vld [vmem:[#allocation5 + $0x5a8] sm:$0xff]
    %v292 = vld [vmem:[#allocation5 + $0x5b0] sm:$0xff]
    %v293 = vld [vmem:[#allocation5 + $0x5b8] sm:$0xff]
    %v294 = vld [vmem:[#allocation5 + $0x5c0] sm:$0xff]
    %v295 = vld [vmem:[#allocation5 + $0x5c8] sm:$0xff]
    %v296 = vld [vmem:[#allocation5 + $0x5d0] sm:$0xff]
    %v297 = vld [vmem:[#allocation5 + $0x5d8] sm:$0xff]
    %v298 = vld [vmem:[#allocation5 + $0x5e0] sm:$0xff]
    %v299 = vld [vmem:[#allocation5 + $0x5e8] sm:$0xff]
    %v300 = vld [vmem:[#allocation5 + $0x5f0] sm:$0xff]
    %v301 = vld [vmem:[#allocation5 + $0x5f8] sm:$0xff]
    %v302 = vld [vmem:[#allocation5 + $0x600] sm:$0xff]
    %v303 = vld [vmem:[#allocation5 + $0x608] sm:$0xff]
    %v304 = vld [vmem:[#allocation5 + $0x610] sm:$0xff]
    %v305 = vld [vmem:[#allocation5 + $0x618] sm:$0xff]
    %v306 = vld [vmem:[#allocation5 + $0x620] sm:$0xff]
    %v307 = vld [vmem:[#allocation5 + $0x628] sm:$0xff]
    %v308 = vld [vmem:[#allocation5 + $0x630] sm:$0xff]
    %v309 = vld [vmem:[#allocation5 + $0x638] sm:$0xff]
    %v310 = vld [vmem:[#allocation5 + $0x640] sm:$0xff]
    %v311 = vld [vmem:[#allocation5 + $0x648] sm:$0xff]
    %v312 = vld [vmem:[#allocation5 + $0x650] sm:$0xff]
    %v313 = vld [vmem:[#allocation5 + $0x658] sm:$0xff]
    %v314 = vld [vmem:[#allocation5 + $0x660] sm:$0xff]
    %v315 = vld [vmem:[#allocation5 + $0x668] sm:$0xff]
    %v316 = vld [vmem:[#allocation5 + $0x670] sm:$0xff]
    %v317 = vld [vmem:[#allocation5 + $0x678] sm:$0xff]
    %v318 = vld [vmem:[#allocation5 + $0x680] sm:$0xff]
    %v319 = vld [vmem:[#allocation5 + $0x688] sm:$0xff]
    %v320 = vld [vmem:[#allocation5 + $0x690] sm:$0xff]
    %v321 = vld [vmem:[#allocation5 + $0x698] sm:$0xff]
    %v322 = vld [vmem:[#allocation5 + $0x6a0] sm:$0xff]
    %v323 = vld [vmem:[#allocation5 + $0x6a8] sm:$0xff]
    %v324 = vld [vmem:[#allocation5 + $0x6b0] sm:$0xff]
    %v325 = vld [vmem:[#allocation5 + $0x6b8] sm:$0xff]
    %v326 = vld [vmem:[#allocation5 + $0x6c0] sm:$0xff]
    %v327 = vld [vmem:[#allocation5 + $0x6c8] sm:$0xff]
    %v328 = vld [vmem:[#allocation5 + $0x6d0] sm:$0xff]
    %v329 = vld [vmem:[#allocation5 + $0x6d8] sm:$0xff]
    %v330 = vld [vmem:[#allocation5 + $0x6e0] sm:$0xff]
    %v331 = vld [vmem:[#allocation5 + $0x6e8] sm:$0xff]
    %v332 = vld [vmem:[#allocation5 + $0x6f0] sm:$0xff]
    %v333 = vld [vmem:[#allocation5 + $0x6f8] sm:$0xff]
    %v334 = vld [vmem:[#allocation5 + $0x700] sm:$0xff]
    %v335 = vld [vmem:[#allocation5 + $0x708] sm:$0xff]
    %v336 = vld [vmem:[#allocation5 + $0x710] sm:$0xff]
    %v337 = vld [vmem:[#allocation5 + $0x718] sm:$0xff]
    %v338 = vld [vmem:[#allocation5 + $0x720] sm:$0xff]
    %v339 = vld [vmem:[#allocation5 + $0x728] sm:$0xff]
    %v340 = vld [vmem:[#allocation5 + $0x730] sm:$0xff]
    %v341 = vld [vmem:[#allocation5 + $0x738] sm:$0xff]
    %v342 = vld [vmem:[#allocation5 + $0x740] sm:$0xff]
    %v343 = vld [vmem:[#allocation5 + $0x748] sm:$0xff]
    %v344 = vld [vmem:[#allocation5 + $0x750] sm:$0xff]
    %v345 = vld [vmem:[#allocation5 + $0x758] sm:$0xff]
    %v346 = vld [vmem:[#allocation5 + $0x760] sm:$0xff]
    %v347 = vld [vmem:[#allocation5 + $0x768] sm:$0xff]
    %v348 = vld [vmem:[#allocation5 + $0x770] sm:$0xff]
    %v349 = vld [vmem:[#allocation5 + $0x778] sm:$0xff]
    %v350 = vld [vmem:[#allocation5 + $0x780] sm:$0xff]
    %v351 = vld [vmem:[#allocation5 + $0x788] sm:$0xff]
    %v352 = vld [vmem:[#allocation5 + $0x790] sm:$0xff]
    %v353 = vld [vmem:[#allocation5 + $0x798] sm:$0xff]
    %v354 = vld [vmem:[#allocation5 + $0x7a0] sm:$0xff]
    %v355 = vld [vmem:[#allocation5 + $0x7a8] sm:$0xff]
    %v356 = vld [vmem:[#allocation5 + $0x7b0] sm:$0xff]
    %v357 = vld [vmem:[#allocation5 + $0x7b8] sm:$0xff]
    %v358 = vld [vmem:[#allocation5 + $0x7c0] sm:$0xff]
    %v359 = vld [vmem:[#allocation5 + $0x7c8] sm:$0xff]
    %v360 = vld [vmem:[#allocation5 + $0x7d0] sm:$0xff]
    %v361 = vld [vmem:[#allocation5 + $0x7d8] sm:$0xff]
    %v362 = vld [vmem:[#allocation5 + $0x7e0] sm:$0xff]
    %v363 = vld [vmem:[#allocation5 + $0x7e8] sm:$0xff]
    %v364 = vld [vmem:[#allocation5 + $0x7f0] sm:$0xff]
    %v365 = vld [vmem:[#allocation5 + $0x7f8] sm:$0xff]
    %v366 = vld [vmem:[#allocation5 + $0x800] sm:$0xff]
    %v367 = vld [vmem:[#allocation5 + $0x808] sm:$0xff]
    %v368 = vld [vmem:[#allocation5 + $0x810] sm:$0xff]
    %v369 = vld [vmem:[#allocation5 + $0x818] sm:$0xff]
    %v370 = vld [vmem:[#allocation5 + $0x820] sm:$0xff]
    %v371 = vld [vmem:[#allocation5 + $0x828] sm:$0xff]
    %v372 = vld [vmem:[#allocation5 + $0x830] sm:$0xff]
    %v373 = vld [vmem:[#allocation5 + $0x838] sm:$0xff]
    %v374 = vld [vmem:[#allocation5 + $0x840] sm:$0xff]
    %v375 = vld [vmem:[#allocation5 + $0x848] sm:$0xff]
    %v376 = vld [vmem:[#allocation5 + $0x850] sm:$0xff]
    %v377 = vld [vmem:[#allocation5 + $0x858] sm:$0xff]
    %v378 = vld [vmem:[#allocation5 + $0x860] sm:$0xff]
    %v379 = vld [vmem:[#allocation5 + $0x868] sm:$0xff]
    %v380 = vld [vmem:[#allocation5 + $0x870] sm:$0xff]
    %v381 = vld [vmem:[#allocation5 + $0x878] sm:$0xff]
    %v382 = vld [vmem:[#allocation5 + $0x880] sm:$0xff]
    %v383 = vld [vmem:[#allocation5 + $0x888] sm:$0xff]
    %v384 = vld [vmem:[#allocation5 + $0x890] sm:$0xff]
    %v385 = vld [vmem:[#allocation5 + $0x898] sm:$0xff]
    %v386 = vld [vmem:[#allocation5 + $0x8a0] sm:$0xff]
    %v387 = vld [vmem:[#allocation5 + $0x8a8] sm:$0xff]
    %v388 = vld [vmem:[#allocation5 + $0x8b0] sm:$0xff]
    %v389 = vld [vmem:[#allocation5 + $0x8b8] sm:$0xff]
    %v390 = vld [vmem:[#allocation5 + $0x8c0] sm:$0xff]
    %v391 = vld [vmem:[#allocation5 + $0x8c8] sm:$0xff]
    %v392 = vld [vmem:[#allocation5 + $0x8d0] sm:$0xff]
    %v393 = vld [vmem:[#allocation5 + $0x8d8] sm:$0xff]
    %v394 = vld [vmem:[#allocation5 + $0x8e0] sm:$0xff]
    %v395 = vld [vmem:[#allocation5 + $0x8e8] sm:$0xff]
    %v396 = vld [vmem:[#allocation5 + $0x8f0] sm:$0xff]
    %v397 = vld [vmem:[#allocation5 + $0x8f8] sm:$0xff]
    %v401 = vperm.slane %v107, 0
    %v402 = vperm.slane %v107, 4
    %v403 = vperm.slane %v108, 0
    %v404 = vperm.slane %v108, 4
    %v405 = vperm.slane %v109, 0
    %v406 = vperm.slane %v109, 4
    %v413 = vperm.slane %v401, 0
    %v414 = vperm.slane %v402, 0
    %v415 = vperm.slane %v403, 0
    %v416 = vperm.slane %v404, 0
    %v417 = vperm.slane %v405, 0
    %v418 = vperm.slane %v406, 0
    %v707 = vunpack.c.l.b16 %v110
    %v708 = vunpack.c.h.b16 %v110
    %v709 = vunpack.c.l.b16 %v111
    %v710 = vunpack.c.h.b16 %v111
    %v711 = vunpack.c.l.b16 %v112
    %v712 = vunpack.c.h.b16 %v112
    %v713 = vunpack.c.l.b16 %v113
    %v714 = vunpack.c.h.b16 %v113
    %v715 = vunpack.c.l.b16 %v114
    %v716 = vunpack.c.h.b16 %v114
    %v717 = vunpack.c.l.b16 %v115
    %v718 = vunpack.c.h.b16 %v115
    %v719 = vunpack.c.l.b16 %v116
    %v720 = vunpack.c.h.b16 %v116
    %v721 = vunpack.c.l.b16 %v117
    %v722 = vunpack.c.h.b16 %v117
    %v723 = vunpack.c.l.b16 %v118
    %v724 = vunpack.c.h.b16 %v118
    %v725 = vunpack.c.l.b16 %v119
    %v726 = vunpack.c.h.b16 %v119
    %v727 = vunpack.c.l.b16 %v120
    %v728 = vunpack.c.h.b16 %v120
    %v729 = vunpack.c.l.b16 %v121
    %v730 = vunpack.c.h.b16 %v121
    %v731 = vunpack.c.l.b16 %v122
    %v732 = vunpack.c.h.b16 %v122
    %v733 = vunpack.c.l.b16 %v123
    %v734 = vunpack.c.h.b16 %v123
    %v735 = vunpack.c.l.b16 %v124
    %v736 = vunpack.c.h.b16 %v124
    %v737 = vunpack.c.l.b16 %v125
    %v738 = vunpack.c.h.b16 %v125
    %v739 = vunpack.c.l.b16 %v126
    %v740 = vunpack.c.h.b16 %v126
    %v741 = vunpack.c.l.b16 %v127
    %v742 = vunpack.c.h.b16 %v127
    %v743 = vunpack.c.l.b16 %v128
    %v744 = vunpack.c.h.b16 %v128
    %v745 = vunpack.c.l.b16 %v129
    %v746 = vunpack.c.h.b16 %v129
    %v747 = vunpack.c.l.b16 %v130
    %v748 = vunpack.c.h.b16 %v130
    %v749 = vunpack.c.l.b16 %v131
    %v750 = vunpack.c.h.b16 %v131
    %v751 = vunpack.c.l.b16 %v132
    %v752 = vunpack.c.h.b16 %v132
    %v753 = vunpack.c.l.b16 %v133
    %v754 = vunpack.c.h.b16 %v133
    %v755 = vunpack.c.l.b16 %v134
    %v756 = vunpack.c.h.b16 %v134
    %v757 = vunpack.c.l.b16 %v135
    %v758 = vunpack.c.h.b16 %v135
    %v759 = vunpack.c.l.b16 %v136
    %v760 = vunpack.c.h.b16 %v136
    %v761 = vunpack.c.l.b16 %v137
    %v762 = vunpack.c.h.b16 %v137
    %v763 = vunpack.c.l.b16 %v138
    %v764 = vunpack.c.h.b16 %v138
    %v765 = vunpack.c.l.b16 %v139
    %v766 = vunpack.c.h.b16 %v139
    %v767 = vunpack.c.l.b16 %v140
    %v768 = vunpack.c.h.b16 %v140
    %v769 = vunpack.c.l.b16 %v141
    %v770 = vunpack.c.h.b16 %v141
    %v771 = vunpack.c.l.b16 %v142
    %v772 = vunpack.c.h.b16 %v142
    %v773 = vunpack.c.l.b16 %v143
    %v774 = vunpack.c.h.b16 %v143
    %v775 = vunpack.c.l.b16 %v144
    %v776 = vunpack.c.h.b16 %v144
    %v777 = vunpack.c.l.b16 %v145
    %v778 = vunpack.c.h.b16 %v145
    %v779 = vunpack.c.l.b16 %v146
    %v780 = vunpack.c.h.b16 %v146
    %v781 = vunpack.c.l.b16 %v147
    %v782 = vunpack.c.h.b16 %v147
    %v783 = vunpack.c.l.b16 %v148
    %v784 = vunpack.c.h.b16 %v148
    %v785 = vunpack.c.l.b16 %v149
    %v786 = vunpack.c.h.b16 %v149
    %v787 = vunpack.c.l.b16 %v150
    %v788 = vunpack.c.h.b16 %v150
    %v789 = vunpack.c.l.b16 %v151
    %v790 = vunpack.c.h.b16 %v151
    %v791 = vunpack.c.l.b16 %v152
    %v792 = vunpack.c.h.b16 %v152
    %v793 = vunpack.c.l.b16 %v153
    %v794 = vunpack.c.h.b16 %v153
    %v795 = vunpack.c.l.b16 %v154
    %v796 = vunpack.c.h.b16 %v154
    %v797 = vunpack.c.l.b16 %v155
    %v798 = vunpack.c.h.b16 %v155
    %v799 = vunpack.c.l.b16 %v156
    %v800 = vunpack.c.h.b16 %v156
    %v801 = vunpack.c.l.b16 %v157
    %v802 = vunpack.c.h.b16 %v157
    %v803 = vunpack.c.l.b16 %v158
    %v804 = vunpack.c.h.b16 %v158
    %v805 = vunpack.c.l.b16 %v159
    %v806 = vunpack.c.h.b16 %v159
    %v807 = vunpack.c.l.b16 %v160
    %v808 = vunpack.c.h.b16 %v160
    %v809 = vunpack.c.l.b16 %v161
    %v810 = vunpack.c.h.b16 %v161
    %v811 = vunpack.c.l.b16 %v162
    %v812 = vunpack.c.h.b16 %v162
    %v813 = vunpack.c.l.b16 %v163
    %v814 = vunpack.c.h.b16 %v163
    %v815 = vunpack.c.l.b16 %v164
    %v816 = vunpack.c.h.b16 %v164
    %v817 = vunpack.c.l.b16 %v165
    %v818 = vunpack.c.h.b16 %v165
    %v819 = vunpack.c.l.b16 %v166
    %v820 = vunpack.c.h.b16 %v166
    %v821 = vunpack.c.l.b16 %v167
    %v822 = vunpack.c.h.b16 %v167
    %v823 = vunpack.c.l.b16 %v168
    %v824 = vunpack.c.h.b16 %v168
    %v825 = vunpack.c.l.b16 %v169
    %v826 = vunpack.c.h.b16 %v169
    %v827 = vunpack.c.l.b16 %v170
    %v828 = vunpack.c.h.b16 %v170
    %v829 = vunpack.c.l.b16 %v171
    %v830 = vunpack.c.h.b16 %v171
    %v831 = vunpack.c.l.b16 %v172
    %v832 = vunpack.c.h.b16 %v172
    %v833 = vunpack.c.l.b16 %v173
    %v834 = vunpack.c.h.b16 %v173
    %v835 = vunpack.c.l.b16 %v174
    %v836 = vunpack.c.h.b16 %v174
    %v837 = vunpack.c.l.b16 %v175
    %v838 = vunpack.c.h.b16 %v175
    %v839 = vunpack.c.l.b16 %v176
    %v840 = vunpack.c.h.b16 %v176
    %v841 = vunpack.c.l.b16 %v177
    %v842 = vunpack.c.h.b16 %v177
    %v843 = vunpack.c.l.b16 %v178
    %v844 = vunpack.c.h.b16 %v178
    %v845 = vunpack.c.l.b16 %v179
    %v846 = vunpack.c.h.b16 %v179
    %v847 = vunpack.c.l.b16 %v180
    %v848 = vunpack.c.h.b16 %v180
    %v849 = vunpack.c.l.b16 %v181
    %v850 = vunpack.c.h.b16 %v181
    %v851 = vunpack.c.l.b16 %v182
    %v852 = vunpack.c.h.b16 %v182
    %v853 = vunpack.c.l.b16 %v183
    %v854 = vunpack.c.h.b16 %v183
    %v855 = vunpack.c.l.b16 %v184
    %v856 = vunpack.c.h.b16 %v184
    %v857 = vunpack.c.l.b16 %v185
    %v858 = vunpack.c.h.b16 %v185
    %v859 = vunpack.c.l.b16 %v186
    %v860 = vunpack.c.h.b16 %v186
    %v861 = vunpack.c.l.b16 %v187
    %v862 = vunpack.c.h.b16 %v187
    %v863 = vunpack.c.l.b16 %v188
    %v864 = vunpack.c.h.b16 %v188
    %v865 = vunpack.c.l.b16 %v189
    %v866 = vunpack.c.h.b16 %v189
    %v867 = vunpack.c.l.b16 %v190
    %v868 = vunpack.c.h.b16 %v190
    %v869 = vunpack.c.l.b16 %v191
    %v870 = vunpack.c.h.b16 %v191
    %v871 = vunpack.c.l.b16 %v192
    %v872 = vunpack.c.h.b16 %v192
    %v873 = vunpack.c.l.b16 %v193
    %v874 = vunpack.c.h.b16 %v193
    %v875 = vunpack.c.l.b16 %v194
    %v876 = vunpack.c.h.b16 %v194
    %v877 = vunpack.c.l.b16 %v195
    %v878 = vunpack.c.h.b16 %v195
    %v879 = vunpack.c.l.b16 %v196
    %v880 = vunpack.c.h.b16 %v196
    %v881 = vunpack.c.l.b16 %v197
    %v882 = vunpack.c.h.b16 %v197
    %v883 = vunpack.c.l.b16 %v198
    %v884 = vunpack.c.h.b16 %v198
    %v885 = vunpack.c.l.b16 %v199
    %v886 = vunpack.c.h.b16 %v199
    %v887 = vunpack.c.l.b16 %v200
    %v888 = vunpack.c.h.b16 %v200
    %v889 = vunpack.c.l.b16 %v201
    %v890 = vunpack.c.h.b16 %v201
    %v891 = vunpack.c.l.b16 %v202
    %v892 = vunpack.c.h.b16 %v202
    %v893 = vunpack.c.l.b16 %v203
    %v894 = vunpack.c.h.b16 %v203
    %v895 = vunpack.c.l.b16 %v204
    %v896 = vunpack.c.h.b16 %v204
    %v897 = vunpack.c.l.b16 %v205
    %v898 = vunpack.c.h.b16 %v205
    %v899 = vunpack.c.l.b16 %v206
    %v900 = vunpack.c.h.b16 %v206
    %v901 = vunpack.c.l.b16 %v207
    %v902 = vunpack.c.h.b16 %v207
    %v903 = vunpack.c.l.b16 %v208
    %v904 = vunpack.c.h.b16 %v208
    %v905 = vunpack.c.l.b16 %v209
    %v906 = vunpack.c.h.b16 %v209
    %v907 = vunpack.c.l.b16 %v210
    %v908 = vunpack.c.h.b16 %v210
    %v909 = vunpack.c.l.b16 %v211
    %v910 = vunpack.c.h.b16 %v211
    %v911 = vunpack.c.l.b16 %v212
    %v912 = vunpack.c.h.b16 %v212
    %v913 = vunpack.c.l.b16 %v213
    %v914 = vunpack.c.h.b16 %v213
    %v915 = vunpack.c.l.b16 %v214
    %v916 = vunpack.c.h.b16 %v214
    %v917 = vunpack.c.l.b16 %v215
    %v918 = vunpack.c.h.b16 %v215
    %v919 = vunpack.c.l.b16 %v216
    %v920 = vunpack.c.h.b16 %v216
    %v921 = vunpack.c.l.b16 %v217
    %v922 = vunpack.c.h.b16 %v217
    %v923 = vunpack.c.l.b16 %v218
    %v924 = vunpack.c.h.b16 %v218
    %v925 = vunpack.c.l.b16 %v219
    %v926 = vunpack.c.h.b16 %v219
    %v927 = vunpack.c.l.b16 %v220
    %v928 = vunpack.c.h.b16 %v220
    %v929 = vunpack.c.l.b16 %v221
    %v930 = vunpack.c.h.b16 %v221
    %v931 = vunpack.c.l.b16 %v222
    %v932 = vunpack.c.h.b16 %v222
    %v933 = vunpack.c.l.b16 %v223
    %v934 = vunpack.c.h.b16 %v223
    %v935 = vunpack.c.l.b16 %v224
    %v936 = vunpack.c.h.b16 %v224
    %v937 = vunpack.c.l.b16 %v225
    %v938 = vunpack.c.h.b16 %v225
    %v939 = vunpack.c.l.b16 %v226
    %v940 = vunpack.c.h.b16 %v226
    %v941 = vunpack.c.l.b16 %v227
    %v942 = vunpack.c.h.b16 %v227
    %v943 = vunpack.c.l.b16 %v228
    %v944 = vunpack.c.h.b16 %v228
    %v945 = vunpack.c.l.b16 %v229
    %v946 = vunpack.c.h.b16 %v229
    %v947 = vunpack.c.l.b16 %v230
    %v948 = vunpack.c.h.b16 %v230
    %v949 = vunpack.c.l.b16 %v231
    %v950 = vunpack.c.h.b16 %v231
    %v951 = vunpack.c.l.b16 %v232
    %v952 = vunpack.c.h.b16 %v232
    %v953 = vunpack.c.l.b16 %v233
    %v954 = vunpack.c.h.b16 %v233
    %v955 = vunpack.c.l.b16 %v234
    %v956 = vunpack.c.h.b16 %v234
    %v957 = vunpack.c.l.b16 %v235
    %v958 = vunpack.c.h.b16 %v235
    %v959 = vunpack.c.l.b16 %v236
    %v960 = vunpack.c.h.b16 %v236
    %v961 = vunpack.c.l.b16 %v237
    %v962 = vunpack.c.h.b16 %v237
    %v963 = vunpack.c.l.b16 %v238
    %v964 = vunpack.c.h.b16 %v238
    %v965 = vunpack.c.l.b16 %v239
    %v966 = vunpack.c.h.b16 %v239
    %v967 = vunpack.c.l.b16 %v240
    %v968 = vunpack.c.h.b16 %v240
    %v969 = vunpack.c.l.b16 %v241
    %v970 = vunpack.c.h.b16 %v241
    %v971 = vunpack.c.l.b16 %v242
    %v972 = vunpack.c.h.b16 %v242
    %v973 = vunpack.c.l.b16 %v243
    %v974 = vunpack.c.h.b16 %v243
    %v975 = vunpack.c.l.b16 %v244
    %v976 = vunpack.c.h.b16 %v244
    %v977 = vunpack.c.l.b16 %v245
    %v978 = vunpack.c.h.b16 %v245
    %v979 = vunpack.c.l.b16 %v246
    %v980 = vunpack.c.h.b16 %v246
    %v981 = vunpack.c.l.b16 %v247
    %v982 = vunpack.c.h.b16 %v247
    %v983 = vunpack.c.l.b16 %v248
    %v984 = vunpack.c.h.b16 %v248
    %v985 = vunpack.c.l.b16 %v249
    %v986 = vunpack.c.h.b16 %v249
    %v987 = vunpack.c.l.b16 %v250
    %v988 = vunpack.c.h.b16 %v250
    %v989 = vunpack.c.l.b16 %v251
    %v990 = vunpack.c.h.b16 %v251
    %v991 = vunpack.c.l.b16 %v252
    %v992 = vunpack.c.h.b16 %v252
    %v993 = vunpack.c.l.b16 %v253
    %v994 = vunpack.c.h.b16 %v253
    %v995 = vunpack.c.l.b16 %v254
    %v996 = vunpack.c.h.b16 %v254
    %v997 = vunpack.c.l.b16 %v255
    %v998 = vunpack.c.h.b16 %v255
    %v999 = vunpack.c.l.b16 %v256
    %v1000 = vunpack.c.h.b16 %v256
    %v1001 = vunpack.c.l.b16 %v257
    %v1002 = vunpack.c.h.b16 %v257
    %v1003 = vunpack.c.l.b16 %v258
    %v1004 = vunpack.c.h.b16 %v258
    %v1005 = vunpack.c.l.b16 %v259
    %v1006 = vunpack.c.h.b16 %v259
    %v1007 = vunpack.c.l.b16 %v260
    %v1008 = vunpack.c.h.b16 %v260
    %v1009 = vunpack.c.l.b16 %v261
    %v1010 = vunpack.c.h.b16 %v261
    %v1011 = vunpack.c.l.b16 %v262
    %v1012 = vunpack.c.h.b16 %v262
    %v1013 = vunpack.c.l.b16 %v263
    %v1014 = vunpack.c.h.b16 %v263
    %v1015 = vunpack.c.l.b16 %v264
    %v1016 = vunpack.c.h.b16 %v264
    %v1017 = vunpack.c.l.b16 %v265
    %v1018 = vunpack.c.h.b16 %v265
    %v1019 = vunpack.c.l.b16 %v266
    %v1020 = vunpack.c.h.b16 %v266
    %v1021 = vunpack.c.l.b16 %v267
    %v1022 = vunpack.c.h.b16 %v267
    %v1023 = vunpack.c.l.b16 %v268
    %v1024 = vunpack.c.h.b16 %v268
    %v1025 = vunpack.c.l.b16 %v269
    %v1026 = vunpack.c.h.b16 %v269
    %v1027 = vunpack.c.l.b16 %v270
    %v1028 = vunpack.c.h.b16 %v270
    %v1029 = vunpack.c.l.b16 %v271
    %v1030 = vunpack.c.h.b16 %v271
    %v1031 = vunpack.c.l.b16 %v272
    %v1032 = vunpack.c.h.b16 %v272
    %v1033 = vunpack.c.l.b16 %v273
    %v1034 = vunpack.c.h.b16 %v273
    %v1035 = vunpack.c.l.b16 %v274
    %v1036 = vunpack.c.h.b16 %v274
    %v1037 = vunpack.c.l.b16 %v275
    %v1038 = vunpack.c.h.b16 %v275
    %v1039 = vunpack.c.l.b16 %v276
    %v1040 = vunpack.c.h.b16 %v276
    %v1041 = vunpack.c.l.b16 %v277
    %v1042 = vunpack.c.h.b16 %v277
    %v1043 = vunpack.c.l.b16 %v278
    %v1044 = vunpack.c.h.b16 %v278
    %v1045 = vunpack.c.l.b16 %v279
    %v1046 = vunpack.c.h.b16 %v279
    %v1047 = vunpack.c.l.b16 %v280
    %v1048 = vunpack.c.h.b16 %v280
    %v1049 = vunpack.c.l.b16 %v281
    %v1050 = vunpack.c.h.b16 %v281
    %v1051 = vunpack.c.l.b16 %v282
    %v1052 = vunpack.c.h.b16 %v282
    %v1053 = vunpack.c.l.b16 %v283
    %v1054 = vunpack.c.h.b16 %v283
    %v1055 = vunpack.c.l.b16 %v284
    %v1056 = vunpack.c.h.b16 %v284
    %v1057 = vunpack.c.l.b16 %v285
    %v1058 = vunpack.c.h.b16 %v285
    %v1059 = vunpack.c.l.b16 %v286
    %v1060 = vunpack.c.h.b16 %v286
    %v1061 = vunpack.c.l.b16 %v287
    %v1062 = vunpack.c.h.b16 %v287
    %v1063 = vunpack.c.l.b16 %v288
    %v1064 = vunpack.c.h.b16 %v288
    %v1065 = vunpack.c.l.b16 %v289
    %v1066 = vunpack.c.h.b16 %v289
    %v1067 = vunpack.c.l.b16 %v290
    %v1068 = vunpack.c.h.b16 %v290
    %v1069 = vunpack.c.l.b16 %v291
    %v1070 = vunpack.c.h.b16 %v291
    %v1071 = vunpack.c.l.b16 %v292
    %v1072 = vunpack.c.h.b16 %v292
    %v1073 = vunpack.c.l.b16 %v293
    %v1074 = vunpack.c.h.b16 %v293
    %v1075 = vunpack.c.l.b16 %v294
    %v1076 = vunpack.c.h.b16 %v294
    %v1077 = vunpack.c.l.b16 %v295
    %v1078 = vunpack.c.h.b16 %v295
    %v1079 = vunpack.c.l.b16 %v296
    %v1080 = vunpack.c.h.b16 %v296
    %v1081 = vunpack.c.l.b16 %v297
    %v1082 = vunpack.c.h.b16 %v297
    %v1083 = vunpack.c.l.b16 %v298
    %v1084 = vunpack.c.h.b16 %v298
    %v1085 = vunpack.c.l.b16 %v299
    %v1086 = vunpack.c.h.b16 %v299
    %v1087 = vunpack.c.l.b16 %v300
    %v1088 = vunpack.c.h.b16 %v300
    %v1089 = vunpack.c.l.b16 %v301
    %v1090 = vunpack.c.h.b16 %v301
    %v1091 = vunpack.c.l.b16 %v302
    %v1092 = vunpack.c.h.b16 %v302
    %v1093 = vunpack.c.l.b16 %v303
    %v1094 = vunpack.c.h.b16 %v303
    %v1095 = vunpack.c.l.b16 %v304
    %v1096 = vunpack.c.h.b16 %v304
    %v1097 = vunpack.c.l.b16 %v305
    %v1098 = vunpack.c.h.b16 %v305
    %v1099 = vunpack.c.l.b16 %v306
    %v1100 = vunpack.c.h.b16 %v306
    %v1101 = vunpack.c.l.b16 %v307
    %v1102 = vunpack.c.h.b16 %v307
    %v1103 = vunpack.c.l.b16 %v308
    %v1104 = vunpack.c.h.b16 %v308
    %v1105 = vunpack.c.l.b16 %v309
    %v1106 = vunpack.c.h.b16 %v309
    %v1107 = vunpack.c.l.b16 %v310
    %v1108 = vunpack.c.h.b16 %v310
    %v1109 = vunpack.c.l.b16 %v311
    %v1110 = vunpack.c.h.b16 %v311
    %v1111 = vunpack.c.l.b16 %v312
    %v1112 = vunpack.c.h.b16 %v312
    %v1113 = vunpack.c.l.b16 %v313
    %v1114 = vunpack.c.h.b16 %v313
    %v1115 = vunpack.c.l.b16 %v314
    %v1116 = vunpack.c.h.b16 %v314
    %v1117 = vunpack.c.l.b16 %v315
    %v1118 = vunpack.c.h.b16 %v315
    %v1119 = vunpack.c.l.b16 %v316
    %v1120 = vunpack.c.h.b16 %v316
    %v1121 = vunpack.c.l.b16 %v317
    %v1122 = vunpack.c.h.b16 %v317
    %v1123 = vunpack.c.l.b16 %v318
    %v1124 = vunpack.c.h.b16 %v318
    %v1125 = vunpack.c.l.b16 %v319
    %v1126 = vunpack.c.h.b16 %v319
    %v1127 = vunpack.c.l.b16 %v320
    %v1128 = vunpack.c.h.b16 %v320
    %v1129 = vunpack.c.l.b16 %v321
    %v1130 = vunpack.c.h.b16 %v321
    %v1131 = vunpack.c.l.b16 %v322
    %v1132 = vunpack.c.h.b16 %v322
    %v1133 = vunpack.c.l.b16 %v323
    %v1134 = vunpack.c.h.b16 %v323
    %v1135 = vunpack.c.l.b16 %v324
    %v1136 = vunpack.c.h.b16 %v324
    %v1137 = vunpack.c.l.b16 %v325
    %v1138 = vunpack.c.h.b16 %v325
    %v1139 = vunpack.c.l.b16 %v326
    %v1140 = vunpack.c.h.b16 %v326
    %v1141 = vunpack.c.l.b16 %v327
    %v1142 = vunpack.c.h.b16 %v327
    %v1143 = vunpack.c.l.b16 %v328
    %v1144 = vunpack.c.h.b16 %v328
    %v1145 = vunpack.c.l.b16 %v329
    %v1146 = vunpack.c.h.b16 %v329
    %v1147 = vunpack.c.l.b16 %v330
    %v1148 = vunpack.c.h.b16 %v330
    %v1149 = vunpack.c.l.b16 %v331
    %v1150 = vunpack.c.h.b16 %v331
    %v1151 = vunpack.c.l.b16 %v332
    %v1152 = vunpack.c.h.b16 %v332
    %v1153 = vunpack.c.l.b16 %v333
    %v1154 = vunpack.c.h.b16 %v333
    %v1155 = vunpack.c.l.b16 %v334
    %v1156 = vunpack.c.h.b16 %v334
    %v1157 = vunpack.c.l.b16 %v335
    %v1158 = vunpack.c.h.b16 %v335
    %v1159 = vunpack.c.l.b16 %v336
    %v1160 = vunpack.c.h.b16 %v336
    %v1161 = vunpack.c.l.b16 %v337
    %v1162 = vunpack.c.h.b16 %v337
    %v1163 = vunpack.c.l.b16 %v338
    %v1164 = vunpack.c.h.b16 %v338
    %v1165 = vunpack.c.l.b16 %v339
    %v1166 = vunpack.c.h.b16 %v339
    %v1167 = vunpack.c.l.b16 %v340
    %v1168 = vunpack.c.h.b16 %v340
    %v1169 = vunpack.c.l.b16 %v341
    %v1170 = vunpack.c.h.b16 %v341
    %v1171 = vunpack.c.l.b16 %v342
    %v1172 = vunpack.c.h.b16 %v342
    %v1173 = vunpack.c.l.b16 %v343
    %v1174 = vunpack.c.h.b16 %v343
    %v1175 = vunpack.c.l.b16 %v344
    %v1176 = vunpack.c.h.b16 %v344
    %v1177 = vunpack.c.l.b16 %v345
    %v1178 = vunpack.c.h.b16 %v345
    %v1179 = vunpack.c.l.b16 %v346
    %v1180 = vunpack.c.h.b16 %v346
    %v1181 = vunpack.c.l.b16 %v347
    %v1182 = vunpack.c.h.b16 %v347
    %v1183 = vunpack.c.l.b16 %v348
    %v1184 = vunpack.c.h.b16 %v348
    %v1185 = vunpack.c.l.b16 %v349
    %v1186 = vunpack.c.h.b16 %v349
    %v1187 = vunpack.c.l.b16 %v350
    %v1188 = vunpack.c.h.b16 %v350
    %v1189 = vunpack.c.l.b16 %v351
    %v1190 = vunpack.c.h.b16 %v351
    %v1191 = vunpack.c.l.b16 %v352
    %v1192 = vunpack.c.h.b16 %v352
    %v1193 = vunpack.c.l.b16 %v353
    %v1194 = vunpack.c.h.b16 %v353
    %v1195 = vunpack.c.l.b16 %v354
    %v1196 = vunpack.c.h.b16 %v354
    %v1197 = vunpack.c.l.b16 %v355
    %v1198 = vunpack.c.h.b16 %v355
    %v1199 = vunpack.c.l.b16 %v356
    %v1200 = vunpack.c.h.b16 %v356
    %v1201 = vunpack.c.l.b16 %v357
    %v1202 = vunpack.c.h.b16 %v357
    %v1203 = vunpack.c.l.b16 %v358
    %v1204 = vunpack.c.h.b16 %v358
    %v1205 = vunpack.c.l.b16 %v359
    %v1206 = vunpack.c.h.b16 %v359
    %v1207 = vunpack.c.l.b16 %v360
    %v1208 = vunpack.c.h.b16 %v360
    %v1209 = vunpack.c.l.b16 %v361
    %v1210 = vunpack.c.h.b16 %v361
    %v1211 = vunpack.c.l.b16 %v362
    %v1212 = vunpack.c.h.b16 %v362
    %v1213 = vunpack.c.l.b16 %v363
    %v1214 = vunpack.c.h.b16 %v363
    %v1215 = vunpack.c.l.b16 %v364
    %v1216 = vunpack.c.h.b16 %v364
    %v1217 = vunpack.c.l.b16 %v365
    %v1218 = vunpack.c.h.b16 %v365
    %v1219 = vunpack.c.l.b16 %v366
    %v1220 = vunpack.c.h.b16 %v366
    %v1221 = vunpack.c.l.b16 %v367
    %v1222 = vunpack.c.h.b16 %v367
    %v1223 = vunpack.c.l.b16 %v368
    %v1224 = vunpack.c.h.b16 %v368
    %v1225 = vunpack.c.l.b16 %v369
    %v1226 = vunpack.c.h.b16 %v369
    %v1227 = vunpack.c.l.b16 %v370
    %v1228 = vunpack.c.h.b16 %v370
    %v1229 = vunpack.c.l.b16 %v371
    %v1230 = vunpack.c.h.b16 %v371
    %v1231 = vunpack.c.l.b16 %v372
    %v1232 = vunpack.c.h.b16 %v372
    %v1233 = vunpack.c.l.b16 %v373
    %v1234 = vunpack.c.h.b16 %v373
    %v1235 = vunpack.c.l.b16 %v374
    %v1236 = vunpack.c.h.b16 %v374
    %v1237 = vunpack.c.l.b16 %v375
    %v1238 = vunpack.c.h.b16 %v375
    %v1239 = vunpack.c.l.b16 %v376
    %v1240 = vunpack.c.h.b16 %v376
    %v1241 = vunpack.c.l.b16 %v377
    %v1242 = vunpack.c.h.b16 %v377
    %v1243 = vunpack.c.l.b16 %v378
    %v1244 = vunpack.c.h.b16 %v378
    %v1245 = vunpack.c.l.b16 %v379
    %v1246 = vunpack.c.h.b16 %v379
    %v1247 = vunpack.c.l.b16 %v380
    %v1248 = vunpack.c.h.b16 %v380
    %v1249 = vunpack.c.l.b16 %v381
    %v1250 = vunpack.c.h.b16 %v381
    %v1251 = vunpack.c.l.b16 %v382
    %v1252 = vunpack.c.h.b16 %v382
    %v1253 = vunpack.c.l.b16 %v383
    %v1254 = vunpack.c.h.b16 %v383
    %v1255 = vunpack.c.l.b16 %v384
    %v1256 = vunpack.c.h.b16 %v384
    %v1257 = vunpack.c.l.b16 %v385
    %v1258 = vunpack.c.h.b16 %v385
    %v1259 = vunpack.c.l.b16 %v386
    %v1260 = vunpack.c.h.b16 %v386
    %v1261 = vunpack.c.l.b16 %v387
    %v1262 = vunpack.c.h.b16 %v387
    %v1263 = vunpack.c.l.b16 %v388
    %v1264 = vunpack.c.h.b16 %v388
    %v1265 = vunpack.c.l.b16 %v389
    %v1266 = vunpack.c.h.b16 %v389
    %v1267 = vunpack.c.l.b16 %v390
    %v1268 = vunpack.c.h.b16 %v390
    %v1269 = vunpack.c.l.b16 %v391
    %v1270 = vunpack.c.h.b16 %v391
    %v1271 = vunpack.c.l.b16 %v392
    %v1272 = vunpack.c.h.b16 %v392
    %v1273 = vunpack.c.l.b16 %v393
    %v1274 = vunpack.c.h.b16 %v393
    %v1275 = vunpack.c.l.b16 %v394
    %v1276 = vunpack.c.h.b16 %v394
    %v1277 = vunpack.c.l.b16 %v395
    %v1278 = vunpack.c.h.b16 %v395
    %v1279 = vunpack.c.l.b16 %v396
    %v1280 = vunpack.c.h.b16 %v396
    %v1281 = vunpack.c.l.b16 %v397
    %v1282 = vunpack.c.h.b16 %v397
    %v1283 = vpack.c.b16 %v713, %v707
    %v1284 = vpack.c.b16 %v714, %v708
    %v1285 = vpack.c.b16 %v715, %v709
    %v1286 = vpack.c.b16 %v716, %v710
    %v1287 = vpack.c.b16 %v717, %v711
    %v1288 = vpack.c.b16 %v718, %v712
    %v1289 = vpack.c.b16 %v725, %v719
    %v1290 = vpack.c.b16 %v726, %v720
    %v1291 = vpack.c.b16 %v727, %v721
    %v1292 = vpack.c.b16 %v728, %v722
    %v1293 = vpack.c.b16 %v729, %v723
    %v1294 = vpack.c.b16 %v730, %v724
    %v1295 = vpack.c.b16 %v737, %v731
    %v1296 = vpack.c.b16 %v738, %v732
    %v1297 = vpack.c.b16 %v739, %v733
    %v1298 = vpack.c.b16 %v740, %v734
    %v1299 = vpack.c.b16 %v741, %v735
    %v1300 = vpack.c.b16 %v742, %v736
    %v1301 = vpack.c.b16 %v749, %v743
    %v1302 = vpack.c.b16 %v750, %v744
    %v1303 = vpack.c.b16 %v751, %v745
    %v1304 = vpack.c.b16 %v752, %v746
    %v1305 = vpack.c.b16 %v753, %v747
    %v1306 = vpack.c.b16 %v754, %v748
    %v1307 = vpack.c.b16 %v761, %v755
    %v1308 = vpack.c.b16 %v762, %v756
    %v1309 = vpack.c.b16 %v763, %v757
    %v1310 = vpack.c.b16 %v764, %v758
    %v1311 = vpack.c.b16 %v765, %v759
    %v1312 = vpack.c.b16 %v766, %v760
    %v1313 = vpack.c.b16 %v773, %v767
    %v1314 = vpack.c.b16 %v774, %v768
    %v1315 = vpack.c.b16 %v775, %v769
    %v1316 = vpack.c.b16 %v776, %v770
    %v1317 = vpack.c.b16 %v777, %v771
    %v1318 = vpack.c.b16 %v778, %v772
    %v1319 = vpack.c.b16 %v785, %v779
    %v1320 = vpack.c.b16 %v786, %v780
    %v1321 = vpack.c.b16 %v787, %v781
    %v1322 = vpack.c.b16 %v788, %v782
    %v1323 = vpack.c.b16 %v789, %v783
    %v1324 = vpack.c.b16 %v790, %v784
    %v1325 = vpack.c.b16 %v797, %v791
    %v1326 = vpack.c.b16 %v798, %v792
    %v1327 = vpack.c.b16 %v799, %v793
    %v1328 = vpack.c.b16 %v800, %v794
    %v1329 = vpack.c.b16 %v801, %v795
    %v1330 = vpack.c.b16 %v802, %v796
    %v1331 = vpack.c.b16 %v809, %v803
    %v1332 = vpack.c.b16 %v810, %v804
    %v1333 = vpack.c.b16 %v811, %v805
    %v1334 = vpack.c.b16 %v812, %v806
    %v1335 = vpack.c.b16 %v813, %v807
    %v1336 = vpack.c.b16 %v814, %v808
    %v1337 = vpack.c.b16 %v821, %v815
    %v1338 = vpack.c.b16 %v822, %v816
    %v1339 = vpack.c.b16 %v823, %v817
    %v1340 = vpack.c.b16 %v824, %v818
    %v1341 = vpack.c.b16 %v825, %v819
    %v1342 = vpack.c.b16 %v826, %v820
    %v1343 = vpack.c.b16 %v833, %v827
    %v1344 = vpack.c.b16 %v834, %v828
    %v1345 = vpack.c.b16 %v835, %v829
    %v1346 = vpack.c.b16 %v836, %v830
    %v1347 = vpack.c.b16 %v837, %v831
    %v1348 = vpack.c.b16 %v838, %v832
    %v1349 = vpack.c.b16 %v845, %v839
    %v1350 = vpack.c.b16 %v846, %v840
    %v1351 = vpack.c.b16 %v847, %v841
    %v1352 = vpack.c.b16 %v848, %v842
    %v1353 = vpack.c.b16 %v849, %v843
    %v1354 = vpack.c.b16 %v850, %v844
    %v1355 = vpack.c.b16 %v857, %v851
    %v1356 = vpack.c.b16 %v858, %v852
    %v1357 = vpack.c.b16 %v859, %v853
    %v1358 = vpack.c.b16 %v860, %v854
    %v1359 = vpack.c.b16 %v861, %v855
    %v1360 = vpack.c.b16 %v862, %v856
    %v1361 = vpack.c.b16 %v869, %v863
    %v1362 = vpack.c.b16 %v870, %v864
    %v1363 = vpack.c.b16 %v871, %v865
    %v1364 = vpack.c.b16 %v872, %v866
    %v1365 = vpack.c.b16 %v873, %v867
    %v1366 = vpack.c.b16 %v874, %v868
    %v1367 = vpack.c.b16 %v881, %v875
    %v1368 = vpack.c.b16 %v882, %v876
    %v1369 = vpack.c.b16 %v883, %v877
    %v1370 = vpack.c.b16 %v884, %v878
    %v1371 = vpack.c.b16 %v885, %v879
    %v1372 = vpack.c.b16 %v886, %v880
    %v1373 = vpack.c.b16 %v893, %v887
    %v1374 = vpack.c.b16 %v894, %v888
    %v1375 = vpack.c.b16 %v895, %v889
    %v1376 = vpack.c.b16 %v896, %v890
    %v1377 = vpack.c.b16 %v897, %v891
    %v1378 = vpack.c.b16 %v898, %v892
    %v1379 = vpack.c.b16 %v905, %v899
    %v1380 = vpack.c.b16 %v906, %v900
    %v1381 = vpack.c.b16 %v907, %v901
    %v1382 = vpack.c.b16 %v908, %v902
    %v1383 = vpack.c.b16 %v909, %v903
    %v1384 = vpack.c.b16 %v910, %v904
    %v1385 = vpack.c.b16 %v917, %v911
    %v1386 = vpack.c.b16 %v918, %v912
    %v1387 = vpack.c.b16 %v919, %v913
    %v1388 = vpack.c.b16 %v920, %v914
    %v1389 = vpack.c.b16 %v921, %v915
    %v1390 = vpack.c.b16 %v922, %v916
    %v1391 = vpack.c.b16 %v929, %v923
    %v1392 = vpack.c.b16 %v930, %v924
    %v1393 = vpack.c.b16 %v931, %v925
    %v1394 = vpack.c.b16 %v932, %v926
    %v1395 = vpack.c.b16 %v933, %v927
    %v1396 = vpack.c.b16 %v934, %v928
    %v1397 = vpack.c.b16 %v941, %v935
    %v1398 = vpack.c.b16 %v942, %v936
    %v1399 = vpack.c.b16 %v943, %v937
    %v1400 = vpack.c.b16 %v944, %v938
    %v1401 = vpack.c.b16 %v945, %v939
    %v1402 = vpack.c.b16 %v946, %v940
    %v1403 = vpack.c.b16 %v953, %v947
    %v1404 = vpack.c.b16 %v954, %v948
    %v1405 = vpack.c.b16 %v955, %v949
    %v1406 = vpack.c.b16 %v956, %v950
    %v1407 = vpack.c.b16 %v957, %v951
    %v1408 = vpack.c.b16 %v958, %v952
    %v1409 = vpack.c.b16 %v965, %v959
    %v1410 = vpack.c.b16 %v966, %v960
    %v1411 = vpack.c.b16 %v967, %v961
    %v1412 = vpack.c.b16 %v968, %v962
    %v1413 = vpack.c.b16 %v969, %v963
    %v1414 = vpack.c.b16 %v970, %v964
    %v1415 = vpack.c.b16 %v977, %v971
    %v1416 = vpack.c.b16 %v978, %v972
    %v1417 = vpack.c.b16 %v979, %v973
    %v1418 = vpack.c.b16 %v980, %v974
    %v1419 = vpack.c.b16 %v981, %v975
    %v1420 = vpack.c.b16 %v982, %v976
    %v1421 = vpack.c.b16 %v989, %v983
    %v1422 = vpack.c.b16 %v990, %v984
    %v1423 = vpack.c.b16 %v991, %v985
    %v1424 = vpack.c.b16 %v992, %v986
    %v1425 = vpack.c.b16 %v993, %v987
    %v1426 = vpack.c.b16 %v994, %v988
    %v1427 = vpack.c.b16 %v1001, %v995
    %v1428 = vpack.c.b16 %v1002, %v996
    %v1429 = vpack.c.b16 %v1003, %v997
    %v1430 = vpack.c.b16 %v1004, %v998
    %v1431 = vpack.c.b16 %v1005, %v999
    %v1432 = vpack.c.b16 %v1006, %v1000
    %v1433 = vpack.c.b16 %v1013, %v1007
    %v1434 = vpack.c.b16 %v1014, %v1008
    %v1435 = vpack.c.b16 %v1015, %v1009
    %v1436 = vpack.c.b16 %v1016, %v1010
    %v1437 = vpack.c.b16 %v1017, %v1011
    %v1438 = vpack.c.b16 %v1018, %v1012
    %v1439 = vpack.c.b16 %v1025, %v1019
    %v1440 = vpack.c.b16 %v1026, %v1020
    %v1441 = vpack.c.b16 %v1027, %v1021
    %v1442 = vpack.c.b16 %v1028, %v1022
    %v1443 = vpack.c.b16 %v1029, %v1023
    %v1444 = vpack.c.b16 %v1030, %v1024
    %v1445 = vpack.c.b16 %v1037, %v1031
    %v1446 = vpack.c.b16 %v1038, %v1032
    %v1447 = vpack.c.b16 %v1039, %v1033
    %v1448 = vpack.c.b16 %v1040, %v1034
    %v1449 = vpack.c.b16 %v1041, %v1035
    %v1450 = vpack.c.b16 %v1042, %v1036
    %v1451 = vpack.c.b16 %v1049, %v1043
    %v1452 = vpack.c.b16 %v1050, %v1044
    %v1453 = vpack.c.b16 %v1051, %v1045
    %v1454 = vpack.c.b16 %v1052, %v1046
    %v1455 = vpack.c.b16 %v1053, %v1047
    %v1456 = vpack.c.b16 %v1054, %v1048
    %v1457 = vpack.c.b16 %v1061, %v1055
    %v1458 = vpack.c.b16 %v1062, %v1056
    %v1459 = vpack.c.b16 %v1063, %v1057
    %v1460 = vpack.c.b16 %v1064, %v1058
    %v1461 = vpack.c.b16 %v1065, %v1059
    %v1462 = vpack.c.b16 %v1066, %v1060
    %v1463 = vpack.c.b16 %v1073, %v1067
    %v1464 = vpack.c.b16 %v1074, %v1068
    %v1465 = vpack.c.b16 %v1075, %v1069
    %v1466 = vpack.c.b16 %v1076, %v1070
    %v1467 = vpack.c.b16 %v1077, %v1071
    %v1468 = vpack.c.b16 %v1078, %v1072
    %v1469 = vpack.c.b16 %v1085, %v1079
    %v1470 = vpack.c.b16 %v1086, %v1080
    %v1471 = vpack.c.b16 %v1087, %v1081
    %v1472 = vpack.c.b16 %v1088, %v1082
    %v1473 = vpack.c.b16 %v1089, %v1083
    %v1474 = vpack.c.b16 %v1090, %v1084
    %v1475 = vpack.c.b16 %v1097, %v1091
    %v1476 = vpack.c.b16 %v1098, %v1092
    %v1477 = vpack.c.b16 %v1099, %v1093
    %v1478 = vpack.c.b16 %v1100, %v1094
    %v1479 = vpack.c.b16 %v1101, %v1095
    %v1480 = vpack.c.b16 %v1102, %v1096
    %v1481 = vpack.c.b16 %v1109, %v1103
    %v1482 = vpack.c.b16 %v1110, %v1104
    %v1483 = vpack.c.b16 %v1111, %v1105
    %v1484 = vpack.c.b16 %v1112, %v1106
    %v1485 = vpack.c.b16 %v1113, %v1107
    %v1486 = vpack.c.b16 %v1114, %v1108
    %v1487 = vpack.c.b16 %v1121, %v1115
    %v1488 = vpack.c.b16 %v1122, %v1116
    %v1489 = vpack.c.b16 %v1123, %v1117
    %v1490 = vpack.c.b16 %v1124, %v1118
    %v1491 = vpack.c.b16 %v1125, %v1119
    %v1492 = vpack.c.b16 %v1126, %v1120
    %v1493 = vpack.c.b16 %v1133, %v1127
    %v1494 = vpack.c.b16 %v1134, %v1128
    %v1495 = vpack.c.b16 %v1135, %v1129
    %v1496 = vpack.c.b16 %v1136, %v1130
    %v1497 = vpack.c.b16 %v1137, %v1131
    %v1498 = vpack.c.b16 %v1138, %v1132
    %v1499 = vpack.c.b16 %v1145, %v1139
    %v1500 = vpack.c.b16 %v1146, %v1140
    %v1501 = vpack.c.b16 %v1147, %v1141
    %v1502 = vpack.c.b16 %v1148, %v1142
    %v1503 = vpack.c.b16 %v1149, %v1143
    %v1504 = vpack.c.b16 %v1150, %v1144
    %v1505 = vpack.c.b16 %v1157, %v1151
    %v1506 = vpack.c.b16 %v1158, %v1152
    %v1507 = vpack.c.b16 %v1159, %v1153
    %v1508 = vpack.c.b16 %v1160, %v1154
    %v1509 = vpack.c.b16 %v1161, %v1155
    %v1510 = vpack.c.b16 %v1162, %v1156
    %v1511 = vpack.c.b16 %v1169, %v1163
    %v1512 = vpack.c.b16 %v1170, %v1164
    %v1513 = vpack.c.b16 %v1171, %v1165
    %v1514 = vpack.c.b16 %v1172, %v1166
    %v1515 = vpack.c.b16 %v1173, %v1167
    %v1516 = vpack.c.b16 %v1174, %v1168
    %v1517 = vpack.c.b16 %v1181, %v1175
    %v1518 = vpack.c.b16 %v1182, %v1176
    %v1519 = vpack.c.b16 %v1183, %v1177
    %v1520 = vpack.c.b16 %v1184, %v1178
    %v1521 = vpack.c.b16 %v1185, %v1179
    %v1522 = vpack.c.b16 %v1186, %v1180
    %v1523 = vpack.c.b16 %v1193, %v1187
    %v1524 = vpack.c.b16 %v1194, %v1188
    %v1525 = vpack.c.b16 %v1195, %v1189
    %v1526 = vpack.c.b16 %v1196, %v1190
    %v1527 = vpack.c.b16 %v1197, %v1191
    %v1528 = vpack.c.b16 %v1198, %v1192
    %v1529 = vpack.c.b16 %v1205, %v1199
    %v1530 = vpack.c.b16 %v1206, %v1200
    %v1531 = vpack.c.b16 %v1207, %v1201
    %v1532 = vpack.c.b16 %v1208, %v1202
    %v1533 = vpack.c.b16 %v1209, %v1203
    %v1534 = vpack.c.b16 %v1210, %v1204
    %v1535 = vpack.c.b16 %v1217, %v1211
    %v1536 = vpack.c.b16 %v1218, %v1212
    %v1537 = vpack.c.b16 %v1219, %v1213
    %v1538 = vpack.c.b16 %v1220, %v1214
    %v1539 = vpack.c.b16 %v1221, %v1215
    %v1540 = vpack.c.b16 %v1222, %v1216
    %v1541 = vpack.c.b16 %v1229, %v1223
    %v1542 = vpack.c.b16 %v1230, %v1224
    %v1543 = vpack.c.b16 %v1231, %v1225
    %v1544 = vpack.c.b16 %v1232, %v1226
    %v1545 = vpack.c.b16 %v1233, %v1227
    %v1546 = vpack.c.b16 %v1234, %v1228
    %v1547 = vpack.c.b16 %v1241, %v1235
    %v1548 = vpack.c.b16 %v1242, %v1236
    %v1549 = vpack.c.b16 %v1243, %v1237
    %v1550 = vpack.c.b16 %v1244, %v1238
    %v1551 = vpack.c.b16 %v1245, %v1239
    %v1552 = vpack.c.b16 %v1246, %v1240
    %v1553 = vpack.c.b16 %v1253, %v1247
    %v1554 = vpack.c.b16 %v1254, %v1248
    %v1555 = vpack.c.b16 %v1255, %v1249
    %v1556 = vpack.c.b16 %v1256, %v1250
    %v1557 = vpack.c.b16 %v1257, %v1251
    %v1558 = vpack.c.b16 %v1258, %v1252
    %v1559 = vpack.c.b16 %v1265, %v1259
    %v1560 = vpack.c.b16 %v1266, %v1260
    %v1561 = vpack.c.b16 %v1267, %v1261
    %v1562 = vpack.c.b16 %v1268, %v1262
    %v1563 = vpack.c.b16 %v1269, %v1263
    %v1564 = vpack.c.b16 %v1270, %v1264
    %v1565 = vpack.c.b16 %v1277, %v1271
    %v1566 = vpack.c.b16 %v1278, %v1272
    %v1567 = vpack.c.b16 %v1279, %v1273
    %v1568 = vpack.c.b16 %v1280, %v1274
    %v1569 = vpack.c.b16 %v1281, %v1275
    %v1570 = vpack.c.b16 %v1282, %v1276
    %1859 = vmatpush.bf16.msra.mxu0 %v1325
    %1860 = vmatpush.bf16.msra.mxu0 %v1319
    %1861 = vmatpush.bf16.msra.mxu0 %v1313
    %1862 = vmatpush.bf16.msra.mxu0 %v1307
    %1863 = vmatpush.bf16.msra.mxu0 %v1301
    %1864 = vmatpush.bf16.msra.mxu0 %v1295
    %1865 = vmatpush.bf16.msra.mxu0 %v1289
    %1866 = vmatpush.bf16.msra.mxu0 %v1283
    %1867 = vmatmul.bf16.gmra.mxu0 %v101
    %v1868 = vpop.f32.mrf.mxu0
    %v1869 = vadd.f32 %v413, %v1868
    %v1870 = vpop.f32.mrf.mxu0
    %1871 = vdwg.mxu0
    %1872 = vmatpush.bf16.msra.mxu0 %v1373
    %1873 = vmatpush.bf16.msra.mxu0 %v1367
    %1874 = vmatpush.bf16.msra.mxu0 %v1361
    %1875 = vmatpush.bf16.msra.mxu0 %v1355
    %1876 = vmatpush.bf16.msra.mxu0 %v1349
    %1877 = vmatpush.bf16.msra.mxu0 %v1343
    %1878 = vmatpush.bf16.msra.mxu0 %v1337
    %1879 = vmatpush.bf16.msra.mxu0 %v1331
    %1880 = vmatmul.bf16.gmra.mxu0 %v102
    %v1881 = vpop.f32.mrf.mxu0
    %v1882 = vadd.f32 %v1869, %v1881
    %v1883 = vpop.f32.mrf.mxu0
    %1884 = vdwg.mxu0
    %1885 = vmatpush.bf16.msra.mxu0 %v1421
    %1886 = vmatpush.bf16.msra.mxu0 %v1415
    %1887 = vmatpush.bf16.msra.mxu0 %v1409
    %1888 = vmatpush.bf16.msra.mxu0 %v1403
    %1889 = vmatpush.bf16.msra.mxu0 %v1397
    %1890 = vmatpush.bf16.msra.mxu0 %v1391
    %1891 = vmatpush.bf16.msra.mxu0 %v1385
    %1892 = vmatpush.bf16.msra.mxu0 %v1379
    %1893 = vmatmul.bf16.gmra.mxu0 %v103
    %v1894 = vpop.f32.mrf.mxu0
    %v1895 = vadd.f32 %v1882, %v1894
    %v1896 = vpop.f32.mrf.mxu0
    %1897 = vdwg.mxu0
    %1898 = vmatpush.bf16.msra.mxu0 %v1469
    %1899 = vmatpush.bf16.msra.mxu0 %v1463
    %1900 = vmatpush.bf16.msra.mxu0 %v1457
    %1901 = vmatpush.bf16.msra.mxu0 %v1451
    %1902 = vmatpush.bf16.msra.mxu0 %v1445
    %1903 = vmatpush.bf16.msra.mxu0 %v1439
    %1904 = vmatpush.bf16.msra.mxu0 %v1433
    %1905 = vmatpush.bf16.msra.mxu0 %v1427
    %1906 = vmatmul.bf16.gmra.mxu0 %v104
    %v1907 = vpop.f32.mrf.mxu0
    %v1908 = vadd.f32 %v1895, %v1907
    %v1909 = vpop.f32.mrf.mxu0
    %1910 = vdwg.mxu0
    %1911 = vmatpush.bf16.msra.mxu0 %v1517
    %1912 = vmatpush.bf16.msra.mxu0 %v1511
    %1913 = vmatpush.bf16.msra.mxu0 %v1505
    %1914 = vmatpush.bf16.msra.mxu0 %v1499
    %1915 = vmatpush.bf16.msra.mxu0 %v1493
    %1916 = vmatpush.bf16.msra.mxu0 %v1487
    %1917 = vmatpush.bf16.msra.mxu0 %v1481
    %1918 = vmatpush.bf16.msra.mxu0 %v1475
    %1919 = vmatmul.bf16.gmra.mxu0 %v105
    %v1920 = vpop.f32.mrf.mxu0
    %v1921 = vadd.f32 %v1908, %v1920
    %v1922 = vpop.f32.mrf.mxu0
    %1923 = vdwg.mxu0
    %1924 = vmatpush.bf16.msra.mxu0 %v1565
    %1925 = vmatpush.bf16.msra.mxu0 %v1559
    %1926 = vmatpush.bf16.msra.mxu0 %v1553
    %1927 = vmatpush.bf16.msra.mxu0 %v1547
    %1928 = vmatpush.bf16.msra.mxu0 %v1541
    %1929 = vmatpush.bf16.msra.mxu0 %v1535
    %1930 = vmatpush.bf16.msra.mxu0 %v1529
    %1931 = vmatpush.bf16.msra.mxu0 %v1523
    %1932 = vmatmul.bf16.gmra.mxu0 %v106
    %v1933 = vpop.f32.mrf.mxu0
    %v1934 = vadd.f32 %v1921, %v1933
    %v1935 = vpop.f32.mrf.mxu0
    %1936 = vdwg.mxu0
    %1937 = vmatpush.bf16.msra.mxu0 %v1326
    %1938 = vmatpush.bf16.msra.mxu0 %v1320
    %1939 = vmatpush.bf16.msra.mxu0 %v1314
    %1940 = vmatpush.bf16.msra.mxu0 %v1308
    %1941 = vmatpush.bf16.msra.mxu0 %v1302
    %1942 = vmatpush.bf16.msra.mxu0 %v1296
    %1943 = vmatpush.bf16.msra.mxu0 %v1290
    %1944 = vmatpush.bf16.msra.mxu0 %v1284
    %1945 = vmatmul.bf16.gmra.mxu0 %v101
    %v1946 = vpop.f32.mrf.mxu0
    %v1947 = vadd.f32 %v414, %v1946
    %v1948 = vpop.f32.mrf.mxu0
    %1949 = vdwg.mxu0
    %1950 = vmatpush.bf16.msra.mxu0 %v1374
    %1951 = vmatpush.bf16.msra.mxu0 %v1368
    %1952 = vmatpush.bf16.msra.mxu0 %v1362
    %1953 = vmatpush.bf16.msra.mxu0 %v1356
    %1954 = vmatpush.bf16.msra.mxu0 %v1350
    %1955 = vmatpush.bf16.msra.mxu0 %v1344
    %1956 = vmatpush.bf16.msra.mxu0 %v1338
    %1957 = vmatpush.bf16.msra.mxu0 %v1332
    %1958 = vmatmul.bf16.gmra.mxu0 %v102
    %v1959 = vpop.f32.mrf.mxu0
    %v1960 = vadd.f32 %v1947, %v1959
    %v1961 = vpop.f32.mrf.mxu0
    %1962 = vdwg.mxu0
    %1963 = vmatpush.bf16.msra.mxu0 %v1422
    %1964 = vmatpush.bf16.msra.mxu0 %v1416
    %1965 = vmatpush.bf16.msra.mxu0 %v1410
    %1966 = vmatpush.bf16.msra.mxu0 %v1404
    %1967 = vmatpush.bf16.msra.mxu0 %v1398
    %1968 = vmatpush.bf16.msra.mxu0 %v1392
    %1969 = vmatpush.bf16.msra.mxu0 %v1386
    %1970 = vmatpush.bf16.msra.mxu0 %v1380
    %1971 = vmatmul.bf16.gmra.mxu0 %v103
    %v1972 = vpop.f32.mrf.mxu0
    %v1973 = vadd.f32 %v1960, %v1972
    %v1974 = vpop.f32.mrf.mxu0
    %1975 = vdwg.mxu0
    %1976 = vmatpush.bf16.msra.mxu0 %v1470
    %1977 = vmatpush.bf16.msra.mxu0 %v1464
    %1978 = vmatpush.bf16.msra.mxu0 %v1458
    %1979 = vmatpush.bf16.msra.mxu0 %v1452
    %1980 = vmatpush.bf16.msra.mxu0 %v1446
    %1981 = vmatpush.bf16.msra.mxu0 %v1440
    %1982 = vmatpush.bf16.msra.mxu0 %v1434
    %1983 = vmatpush.bf16.msra.mxu0 %v1428
    %1984 = vmatmul.bf16.gmra.mxu0 %v104
    %v1985 = vpop.f32.mrf.mxu0
    %v1986 = vadd.f32 %v1973, %v1985
    %v1987 = vpop.f32.mrf.mxu0
    %1988 = vdwg.mxu0
    %1989 = vmatpush.bf16.msra.mxu0 %v1518
    %1990 = vmatpush.bf16.msra.mxu0 %v1512
    %1991 = vmatpush.bf16.msra.mxu0 %v1506
    %1992 = vmatpush.bf16.msra.mxu0 %v1500
    %1993 = vmatpush.bf16.msra.mxu0 %v1494
    %1994 = vmatpush.bf16.msra.mxu0 %v1488
    %1995 = vmatpush.bf16.msra.mxu0 %v1482
    %1996 = vmatpush.bf16.msra.mxu0 %v1476
    %1997 = vmatmul.bf16.gmra.mxu0 %v105
    %v1998 = vpop.f32.mrf.mxu0
    %v1999 = vadd.f32 %v1986, %v1998
    %v2000 = vpop.f32.mrf.mxu0
    %2001 = vdwg.mxu0
    %2002 = vmatpush.bf16.msra.mxu0 %v1566
    %2003 = vmatpush.bf16.msra.mxu0 %v1560
    %2004 = vmatpush.bf16.msra.mxu0 %v1554
    %2005 = vmatpush.bf16.msra.mxu0 %v1548
    %2006 = vmatpush.bf16.msra.mxu0 %v1542
    %2007 = vmatpush.bf16.msra.mxu0 %v1536
    %2008 = vmatpush.bf16.msra.mxu0 %v1530
    %2009 = vmatpush.bf16.msra.mxu0 %v1524
    %2010 = vmatmul.bf16.gmra.mxu0 %v106
    %v2011 = vpop.f32.mrf.mxu0
    %v2012 = vadd.f32 %v1999, %v2011
    %v2013 = vpop.f32.mrf.mxu0
    %2014 = vdwg.mxu0
    %2015 = vmatpush.bf16.msra.mxu0 %v1327
    %2016 = vmatpush.bf16.msra.mxu0 %v1321
    %2017 = vmatpush.bf16.msra.mxu0 %v1315
    %2018 = vmatpush.bf16.msra.mxu0 %v1309
    %2019 = vmatpush.bf16.msra.mxu0 %v1303
    %2020 = vmatpush.bf16.msra.mxu0 %v1297
    %2021 = vmatpush.bf16.msra.mxu0 %v1291
    %2022 = vmatpush.bf16.msra.mxu0 %v1285
    %2023 = vmatmul.bf16.gmra.mxu0 %v101
    %v2024 = vpop.f32.mrf.mxu0
    %v2025 = vadd.f32 %v415, %v2024
    %v2026 = vpop.f32.mrf.mxu0
    %2027 = vdwg.mxu0
    %2028 = vmatpush.bf16.msra.mxu0 %v1375
    %2029 = vmatpush.bf16.msra.mxu0 %v1369
    %2030 = vmatpush.bf16.msra.mxu0 %v1363
    %2031 = vmatpush.bf16.msra.mxu0 %v1357
    %2032 = vmatpush.bf16.msra.mxu0 %v1351
    %2033 = vmatpush.bf16.msra.mxu0 %v1345
    %2034 = vmatpush.bf16.msra.mxu0 %v1339
    %2035 = vmatpush.bf16.msra.mxu0 %v1333
    %2036 = vmatmul.bf16.gmra.mxu0 %v102
    %v2037 = vpop.f32.mrf.mxu0
    %v2038 = vadd.f32 %v2025, %v2037
    %v2039 = vpop.f32.mrf.mxu0
    %2040 = vdwg.mxu0
    %2041 = vmatpush.bf16.msra.mxu0 %v1423
    %2042 = vmatpush.bf16.msra.mxu0 %v1417
    %2043 = vmatpush.bf16.msra.mxu0 %v1411
    %2044 = vmatpush.bf16.msra.mxu0 %v1405
    %2045 = vmatpush.bf16.msra.mxu0 %v1399
    %2046 = vmatpush.bf16.msra.mxu0 %v1393
    %2047 = vmatpush.bf16.msra.mxu0 %v1387
    %2048 = vmatpush.bf16.msra.mxu0 %v1381
    %2049 = vmatmul.bf16.gmra.mxu0 %v103
    %v2050 = vpop.f32.mrf.mxu0
    %v2051 = vadd.f32 %v2038, %v2050
    %v2052 = vpop.f32.mrf.mxu0
    %2053 = vdwg.mxu0
    %2054 = vmatpush.bf16.msra.mxu0 %v1471
    %2055 = vmatpush.bf16.msra.mxu0 %v1465
    %2056 = vmatpush.bf16.msra.mxu0 %v1459
    %2057 = vmatpush.bf16.msra.mxu0 %v1453
    %2058 = vmatpush.bf16.msra.mxu0 %v1447
    %2059 = vmatpush.bf16.msra.mxu0 %v1441
    %2060 = vmatpush.bf16.msra.mxu0 %v1435
    %2061 = vmatpush.bf16.msra.mxu0 %v1429
    %2062 = vmatmul.bf16.gmra.mxu0 %v104
    %v2063 = vpop.f32.mrf.mxu0
    %v2064 = vadd.f32 %v2051, %v2063
    %v2065 = vpop.f32.mrf.mxu0
    %2066 = vdwg.mxu0
    %2067 = vmatpush.bf16.msra.mxu0 %v1519
    %2068 = vmatpush.bf16.msra.mxu0 %v1513
    %2069 = vmatpush.bf16.msra.mxu0 %v1507
    %2070 = vmatpush.bf16.msra.mxu0 %v1501
    %2071 = vmatpush.bf16.msra.mxu0 %v1495
    %2072 = vmatpush.bf16.msra.mxu0 %v1489
    %2073 = vmatpush.bf16.msra.mxu0 %v1483
    %2074 = vmatpush.bf16.msra.mxu0 %v1477
    %2075 = vmatmul.bf16.gmra.mxu0 %v105
    %v2076 = vpop.f32.mrf.mxu0
    %v2077 = vadd.f32 %v2064, %v2076
    %v2078 = vpop.f32.mrf.mxu0
    %2079 = vdwg.mxu0
    %2080 = vmatpush.bf16.msra.mxu0 %v1567
    %2081 = vmatpush.bf16.msra.mxu0 %v1561
    %2082 = vmatpush.bf16.msra.mxu0 %v1555
    %2083 = vmatpush.bf16.msra.mxu0 %v1549
    %2084 = vmatpush.bf16.msra.mxu0 %v1543
    %2085 = vmatpush.bf16.msra.mxu0 %v1537
    %2086 = vmatpush.bf16.msra.mxu0 %v1531
    %2087 = vmatpush.bf16.msra.mxu0 %v1525
    %2088 = vmatmul.bf16.gmra.mxu0 %v106
    %v2089 = vpop.f32.mrf.mxu0
    %v2090 = vadd.f32 %v2077, %v2089
    %v2091 = vpop.f32.mrf.mxu0
    %2092 = vdwg.mxu0
    %2093 = vmatpush.bf16.msra.mxu0 %v1328
    %2094 = vmatpush.bf16.msra.mxu0 %v1322
    %2095 = vmatpush.bf16.msra.mxu0 %v1316
    %2096 = vmatpush.bf16.msra.mxu0 %v1310
    %2097 = vmatpush.bf16.msra.mxu0 %v1304
    %2098 = vmatpush.bf16.msra.mxu0 %v1298
    %2099 = vmatpush.bf16.msra.mxu0 %v1292
    %2100 = vmatpush.bf16.msra.mxu0 %v1286
    %2101 = vmatmul.bf16.gmra.mxu0 %v101
    %v2102 = vpop.f32.mrf.mxu0
    %v2103 = vadd.f32 %v416, %v2102
    %v2104 = vpop.f32.mrf.mxu0
    %2105 = vdwg.mxu0
    %2106 = vmatpush.bf16.msra.mxu0 %v1376
    %2107 = vmatpush.bf16.msra.mxu0 %v1370
    %2108 = vmatpush.bf16.msra.mxu0 %v1364
    %2109 = vmatpush.bf16.msra.mxu0 %v1358
    %2110 = vmatpush.bf16.msra.mxu0 %v1352
    %2111 = vmatpush.bf16.msra.mxu0 %v1346
    %2112 = vmatpush.bf16.msra.mxu0 %v1340
    %2113 = vmatpush.bf16.msra.mxu0 %v1334
    %2114 = vmatmul.bf16.gmra.mxu0 %v102
    %v2115 = vpop.f32.mrf.mxu0
    %v2116 = vadd.f32 %v2103, %v2115
    %v2117 = vpop.f32.mrf.mxu0
    %2118 = vdwg.mxu0
    %2119 = vmatpush.bf16.msra.mxu0 %v1424
    %2120 = vmatpush.bf16.msra.mxu0 %v1418
    %2121 = vmatpush.bf16.msra.mxu0 %v1412
    %2122 = vmatpush.bf16.msra.mxu0 %v1406
    %2123 = vmatpush.bf16.msra.mxu0 %v1400
    %2124 = vmatpush.bf16.msra.mxu0 %v1394
    %2125 = vmatpush.bf16.msra.mxu0 %v1388
    %2126 = vmatpush.bf16.msra.mxu0 %v1382
    %2127 = vmatmul.bf16.gmra.mxu0 %v103
    %v2128 = vpop.f32.mrf.mxu0
    %v2129 = vadd.f32 %v2116, %v2128
    %v2130 = vpop.f32.mrf.mxu0
    %2131 = vdwg.mxu0
    %2132 = vmatpush.bf16.msra.mxu0 %v1472
    %2133 = vmatpush.bf16.msra.mxu0 %v1466
    %2134 = vmatpush.bf16.msra.mxu0 %v1460
    %2135 = vmatpush.bf16.msra.mxu0 %v1454
    %2136 = vmatpush.bf16.msra.mxu0 %v1448
    %2137 = vmatpush.bf16.msra.mxu0 %v1442
    %2138 = vmatpush.bf16.msra.mxu0 %v1436
    %2139 = vmatpush.bf16.msra.mxu0 %v1430
    %2140 = vmatmul.bf16.gmra.mxu0 %v104
    %v2141 = vpop.f32.mrf.mxu0
    %v2142 = vadd.f32 %v2129, %v2141
    %v2143 = vpop.f32.mrf.mxu0
    %2144 = vdwg.mxu0
    %2145 = vmatpush.bf16.msra.mxu0 %v1520
    %2146 = vmatpush.bf16.msra.mxu0 %v1514
    %2147 = vmatpush.bf16.msra.mxu0 %v1508
    %2148 = vmatpush.bf16.msra.mxu0 %v1502
    %2149 = vmatpush.bf16.msra.mxu0 %v1496
    %2150 = vmatpush.bf16.msra.mxu0 %v1490
    %2151 = vmatpush.bf16.msra.mxu0 %v1484
    %2152 = vmatpush.bf16.msra.mxu0 %v1478
    %2153 = vmatmul.bf16.gmra.mxu0 %v105
    %v2154 = vpop.f32.mrf.mxu0
    %v2155 = vadd.f32 %v2142, %v2154
    %v2156 = vpop.f32.mrf.mxu0
    %2157 = vdwg.mxu0
    %2158 = vmatpush.bf16.msra.mxu0 %v1568
    %2159 = vmatpush.bf16.msra.mxu0 %v1562
    %2160 = vmatpush.bf16.msra.mxu0 %v1556
    %2161 = vmatpush.bf16.msra.mxu0 %v1550
    %2162 = vmatpush.bf16.msra.mxu0 %v1544
    %2163 = vmatpush.bf16.msra.mxu0 %v1538
    %2164 = vmatpush.bf16.msra.mxu0 %v1532
    %2165 = vmatpush.bf16.msra.mxu0 %v1526
    %2166 = vmatmul.bf16.gmra.mxu0 %v106
    %v2167 = vpop.f32.mrf.mxu0
    %v2168 = vadd.f32 %v2155, %v2167
    %v2169 = vpop.f32.mrf.mxu0
    %2170 = vdwg.mxu0
    %2171 = vmatpush.bf16.msra.mxu0 %v1329
    %2172 = vmatpush.bf16.msra.mxu0 %v1323
    %2173 = vmatpush.bf16.msra.mxu0 %v1317
    %2174 = vmatpush.bf16.msra.mxu0 %v1311
    %2175 = vmatpush.bf16.msra.mxu0 %v1305
    %2176 = vmatpush.bf16.msra.mxu0 %v1299
    %2177 = vmatpush.bf16.msra.mxu0 %v1293
    %2178 = vmatpush.bf16.msra.mxu0 %v1287
    %2179 = vmatmul.bf16.gmra.mxu0 %v101
    %v2180 = vpop.f32.mrf.mxu0
    %v2181 = vadd.f32 %v417, %v2180
    %v2182 = vpop.f32.mrf.mxu0
    %2183 = vdwg.mxu0
    %2184 = vmatpush.bf16.msra.mxu0 %v1377
    %2185 = vmatpush.bf16.msra.mxu0 %v1371
    %2186 = vmatpush.bf16.msra.mxu0 %v1365
    %2187 = vmatpush.bf16.msra.mxu0 %v1359
    %2188 = vmatpush.bf16.msra.mxu0 %v1353
    %2189 = vmatpush.bf16.msra.mxu0 %v1347
    %2190 = vmatpush.bf16.msra.mxu0 %v1341
    %2191 = vmatpush.bf16.msra.mxu0 %v1335
    %2192 = vmatmul.bf16.gmra.mxu0 %v102
    %v2193 = vpop.f32.mrf.mxu0
    %v2194 = vadd.f32 %v2181, %v2193
    %v2195 = vpop.f32.mrf.mxu0
    %2196 = vdwg.mxu0
    %2197 = vmatpush.bf16.msra.mxu0 %v1425
    %2198 = vmatpush.bf16.msra.mxu0 %v1419
    %2199 = vmatpush.bf16.msra.mxu0 %v1413
    %2200 = vmatpush.bf16.msra.mxu0 %v1407
    %2201 = vmatpush.bf16.msra.mxu0 %v1401
    %2202 = vmatpush.bf16.msra.mxu0 %v1395
    %2203 = vmatpush.bf16.msra.mxu0 %v1389
    %2204 = vmatpush.bf16.msra.mxu0 %v1383
    %2205 = vmatmul.bf16.gmra.mxu0 %v103
    %v2206 = vpop.f32.mrf.mxu0
    %v2207 = vadd.f32 %v2194, %v2206
    %v2208 = vpop.f32.mrf.mxu0
    %2209 = vdwg.mxu0
    %2210 = vmatpush.bf16.msra.mxu0 %v1473
    %2211 = vmatpush.bf16.msra.mxu0 %v1467
    %2212 = vmatpush.bf16.msra.mxu0 %v1461
    %2213 = vmatpush.bf16.msra.mxu0 %v1455
    %2214 = vmatpush.bf16.msra.mxu0 %v1449
    %2215 = vmatpush.bf16.msra.mxu0 %v1443
    %2216 = vmatpush.bf16.msra.mxu0 %v1437
    %2217 = vmatpush.bf16.msra.mxu0 %v1431
    %2218 = vmatmul.bf16.gmra.mxu0 %v104
    %v2219 = vpop.f32.mrf.mxu0
    %v2220 = vadd.f32 %v2207, %v2219
    %v2221 = vpop.f32.mrf.mxu0
    %2222 = vdwg.mxu0
    %2223 = vmatpush.bf16.msra.mxu0 %v1521
    %2224 = vmatpush.bf16.msra.mxu0 %v1515
    %2225 = vmatpush.bf16.msra.mxu0 %v1509
    %2226 = vmatpush.bf16.msra.mxu0 %v1503
    %2227 = vmatpush.bf16.msra.mxu0 %v1497
    %2228 = vmatpush.bf16.msra.mxu0 %v1491
    %2229 = vmatpush.bf16.msra.mxu0 %v1485
    %2230 = vmatpush.bf16.msra.mxu0 %v1479
    %2231 = vmatmul.bf16.gmra.mxu0 %v105
    %v2232 = vpop.f32.mrf.mxu0
    %v2233 = vadd.f32 %v2220, %v2232
    %v2234 = vpop.f32.mrf.mxu0
    %2235 = vdwg.mxu0
    %2236 = vmatpush.bf16.msra.mxu0 %v1569
    %2237 = vmatpush.bf16.msra.mxu0 %v1563
    %2238 = vmatpush.bf16.msra.mxu0 %v1557
    %2239 = vmatpush.bf16.msra.mxu0 %v1551
    %2240 = vmatpush.bf16.msra.mxu0 %v1545
    %2241 = vmatpush.bf16.msra.mxu0 %v1539
    %2242 = vmatpush.bf16.msra.mxu0 %v1533
    %2243 = vmatpush.bf16.msra.mxu0 %v1527
    %2244 = vmatmul.bf16.gmra.mxu0 %v106
    %v2245 = vpop.f32.mrf.mxu0
    %v2246 = vadd.f32 %v2233, %v2245
    %v2247 = vpop.f32.mrf.mxu0
    %2248 = vdwg.mxu0
    %2249 = vmatpush.bf16.msra.mxu0 %v1330
    %2250 = vmatpush.bf16.msra.mxu0 %v1324
    %2251 = vmatpush.bf16.msra.mxu0 %v1318
    %2252 = vmatpush.bf16.msra.mxu0 %v1312
    %2253 = vmatpush.bf16.msra.mxu0 %v1306
    %2254 = vmatpush.bf16.msra.mxu0 %v1300
    %2255 = vmatpush.bf16.msra.mxu0 %v1294
    %2256 = vmatpush.bf16.msra.mxu0 %v1288
    %2257 = vmatmul.bf16.gmra.mxu0 %v101
    %v2258 = vpop.f32.mrf.mxu0
    %v2259 = vadd.f32 %v418, %v2258
    %v2260 = vpop.f32.mrf.mxu0
    %2261 = vdwg.mxu0
    %2262 = vmatpush.bf16.msra.mxu0 %v1378
    %2263 = vmatpush.bf16.msra.mxu0 %v1372
    %2264 = vmatpush.bf16.msra.mxu0 %v1366
    %2265 = vmatpush.bf16.msra.mxu0 %v1360
    %2266 = vmatpush.bf16.msra.mxu0 %v1354
    %2267 = vmatpush.bf16.msra.mxu0 %v1348
    %2268 = vmatpush.bf16.msra.mxu0 %v1342
    %2269 = vmatpush.bf16.msra.mxu0 %v1336
    %2270 = vmatmul.bf16.gmra.mxu0 %v102
    %v2271 = vpop.f32.mrf.mxu0
    %v2272 = vadd.f32 %v2259, %v2271
    %v2273 = vpop.f32.mrf.mxu0
    %2274 = vdwg.mxu0
    %2275 = vmatpush.bf16.msra.mxu0 %v1426
    %2276 = vmatpush.bf16.msra.mxu0 %v1420
    %2277 = vmatpush.bf16.msra.mxu0 %v1414
    %2278 = vmatpush.bf16.msra.mxu0 %v1408
    %2279 = vmatpush.bf16.msra.mxu0 %v1402
    %2280 = vmatpush.bf16.msra.mxu0 %v1396
    %2281 = vmatpush.bf16.msra.mxu0 %v1390
    %2282 = vmatpush.bf16.msra.mxu0 %v1384
    %2283 = vmatmul.bf16.gmra.mxu0 %v103
    %v2284 = vpop.f32.mrf.mxu0
    %v2285 = vadd.f32 %v2272, %v2284
    %v2286 = vpop.f32.mrf.mxu0
    %2287 = vdwg.mxu0
    %2288 = vmatpush.bf16.msra.mxu0 %v1474
    %2289 = vmatpush.bf16.msra.mxu0 %v1468
    %2290 = vmatpush.bf16.msra.mxu0 %v1462
    %2291 = vmatpush.bf16.msra.mxu0 %v1456
    %2292 = vmatpush.bf16.msra.mxu0 %v1450
    %2293 = vmatpush.bf16.msra.mxu0 %v1444
    %2294 = vmatpush.bf16.msra.mxu0 %v1438
    %2295 = vmatpush.bf16.msra.mxu0 %v1432
    %2296 = vmatmul.bf16.gmra.mxu0 %v104
    %v2297 = vpop.f32.mrf.mxu0
    %v2298 = vadd.f32 %v2285, %v2297
    %v2299 = vpop.f32.mrf.mxu0
    %2300 = vdwg.mxu0
    %2301 = vmatpush.bf16.msra.mxu0 %v1522
    %2302 = vmatpush.bf16.msra.mxu0 %v1516
    %2303 = vmatpush.bf16.msra.mxu0 %v1510
    %2304 = vmatpush.bf16.msra.mxu0 %v1504
    %2305 = vmatpush.bf16.msra.mxu0 %v1498
    %2306 = vmatpush.bf16.msra.mxu0 %v1492
    %2307 = vmatpush.bf16.msra.mxu0 %v1486
    %2308 = vmatpush.bf16.msra.mxu0 %v1480
    %2309 = vmatmul.bf16.gmra.mxu0 %v105
    %v2310 = vpop.f32.mrf.mxu0
    %v2311 = vadd.f32 %v2298, %v2310
    %v2312 = vpop.f32.mrf.mxu0
    %2313 = vdwg.mxu0
    %2314 = vmatpush.bf16.msra.mxu0 %v1570
    %2315 = vmatpush.bf16.msra.mxu0 %v1564
    %2316 = vmatpush.bf16.msra.mxu0 %v1558
    %2317 = vmatpush.bf16.msra.mxu0 %v1552
    %2318 = vmatpush.bf16.msra.mxu0 %v1546
    %2319 = vmatpush.bf16.msra.mxu0 %v1540
    %2320 = vmatpush.bf16.msra.mxu0 %v1534
    %2321 = vmatpush.bf16.msra.mxu0 %v1528
    %2322 = vmatmul.bf16.gmra.mxu0 %v106
    %v2323 = vpop.f32.mrf.mxu0
    %v2324 = vadd.f32 %v2311, %v2323
    %v2325 = vpop.f32.mrf.mxu0
    %2326 = vdwg.mxu0
    %vm2327 = vcmp.gt.f32.partialorder %v1934, 0.0
    %vm2328 = vcmp.gt.f32.partialorder %v2012, 0.0
    %vm2329 = vcmp.gt.f32.partialorder %v2090, 0.0
    %vm2330 = vcmp.gt.f32.partialorder %v2168, 0.0
    %vm2331 = vcmp.gt.f32.partialorder %v2246, 0.0
    %vm2332 = vcmp.gt.f32.partialorder %v2324, 0.0
    %v2333 = vmul.f32 %v1934, 0.01
    %v2334 = vmul.f32 %v2012, 0.01
    %v2335 = vmul.f32 %v2090, 0.01
    %v2336 = vmul.f32 %v2168, 0.01
    %v2337 = vmul.f32 %v2246, 0.01
    %v2338 = vmul.f32 %v2324, 0.01
    %v2339 = vsel %vm2327, %v1934, %v2333
    %v2340 = vsel %vm2328, %v2012, %v2334
    %v2341 = vsel %vm2329, %v2090, %v2335
    %v2342 = vsel %vm2330, %v2168, %v2336
    %v2343 = vsel %vm2331, %v2246, %v2337
    %v2344 = vsel %vm2332, %v2324, %v2338
    %v2345 = vpack.c.bf16 %v2339, %v2339
    %v2346 = vpack.c.bf16 %v2340, %v2340
    %v2347 = vpack.c.bf16 %v2341, %v2341
    %v2348 = vpack.c.bf16 %v2342, %v2342
    %v2349 = vpack.c.bf16 %v2343, %v2343
    %v2350 = vpack.c.bf16 %v2344, %v2344
    %v2351 = vld [vmem:[#allocation7] sm:$0xff]
    %v2352 = vld [vmem:[#allocation7 + $0x8] sm:$0xff]
    %v2353 = vld [vmem:[#allocation7 + $0x10] sm:$0xff]
    %v2354 = vld [vmem:[#allocation7 + $0x18] sm:$0xff]
    %v2355 = vld [vmem:[#allocation7 + $0x20] sm:$0xff]
    %v2356 = vld [vmem:[#allocation7 + $0x28] sm:$0xff]
    %v2357 = vld [vmem:[#allocation7 + $0x30] sm:$0xff]
    %v2358 = vld [vmem:[#allocation7 + $0x38] sm:$0xff]
    %v2359 = vld [vmem:[#allocation7 + $0x40] sm:$0xff]
    %v2360 = vld [vmem:[#allocation7 + $0x48] sm:$0xff]
    %v2361 = vld [vmem:[#allocation7 + $0x50] sm:$0xff]
    %v2362 = vld [vmem:[#allocation7 + $0x58] sm:$0xff]
    %v2363 = vld [vmem:[#allocation7 + $0x60] sm:$0xff]
    %v2364 = vld [vmem:[#allocation7 + $0x68] sm:$0xff]
    %v2365 = vld [vmem:[#allocation7 + $0x70] sm:$0xff]
    %v2366 = vld [vmem:[#allocation7 + $0x78] sm:$0xff]
    %v2367 = vld [vmem:[#allocation7 + $0x80] sm:$0xff]
    %v2368 = vld [vmem:[#allocation7 + $0x88] sm:$0xff]
    %v2369 = vld [vmem:[#allocation7 + $0x90] sm:$0xff]
    %v2370 = vld [vmem:[#allocation7 + $0x98] sm:$0xff]
    %v2371 = vld [vmem:[#allocation7 + $0xa0] sm:$0xff]
    %v2372 = vld [vmem:[#allocation7 + $0xa8] sm:$0xff]
    %v2373 = vld [vmem:[#allocation7 + $0xb0] sm:$0xff]
    %v2374 = vld [vmem:[#allocation7 + $0xb8] sm:$0xff]
    %v2375 = vld [vmem:[#allocation7 + $0xc0] sm:$0xff]
    %v2376 = vld [vmem:[#allocation7 + $0xc8] sm:$0xff]
    %v2377 = vld [vmem:[#allocation7 + $0xd0] sm:$0xff]
    %v2378 = vld [vmem:[#allocation7 + $0xd8] sm:$0xff]
    %v2379 = vld [vmem:[#allocation7 + $0xe0] sm:$0xff]
    %v2380 = vld [vmem:[#allocation7 + $0xe8] sm:$0xff]
    %v2381 = vld [vmem:[#allocation7 + $0xf0] sm:$0xff]
    %v2382 = vld [vmem:[#allocation7 + $0xf8] sm:$0xff]
    %v2383 = vld [vmem:[#allocation7 + $0x100] sm:$0xff]
    %v2384 = vld [vmem:[#allocation7 + $0x108] sm:$0xff]
    %v2385 = vld [vmem:[#allocation7 + $0x110] sm:$0xff]
    %v2386 = vld [vmem:[#allocation7 + $0x118] sm:$0xff]
    %v2387 = vld [vmem:[#allocation7 + $0x120] sm:$0xff]
    %v2388 = vld [vmem:[#allocation7 + $0x128] sm:$0xff]
    %v2389 = vld [vmem:[#allocation7 + $0x130] sm:$0xff]
    %v2390 = vld [vmem:[#allocation7 + $0x138] sm:$0xff]
    %v2391 = vld [vmem:[#allocation7 + $0x140] sm:$0xff]
    %v2392 = vld [vmem:[#allocation7 + $0x148] sm:$0xff]
    %v2393 = vld [vmem:[#allocation7 + $0x150] sm:$0xff]
    %v2394 = vld [vmem:[#allocation7 + $0x158] sm:$0xff]
    %v2395 = vld [vmem:[#allocation7 + $0x160] sm:$0xff]
    %v2396 = vld [vmem:[#allocation7 + $0x168] sm:$0xff]
    %v2397 = vld [vmem:[#allocation7 + $0x170] sm:$0xff]
    %v2398 = vld [vmem:[#allocation7 + $0x178] sm:$0xff]
    %v2399 = vld [vmem:[#allocation7 + $0x180] sm:$0xff]
    %v2400 = vld [vmem:[#allocation7 + $0x188] sm:$0xff]
    %v2401 = vld [vmem:[#allocation7 + $0x190] sm:$0xff]
    %v2402 = vld [vmem:[#allocation7 + $0x198] sm:$0xff]
    %v2403 = vld [vmem:[#allocation7 + $0x1a0] sm:$0xff]
    %v2404 = vld [vmem:[#allocation7 + $0x1a8] sm:$0xff]
    %v2405 = vld [vmem:[#allocation7 + $0x1b0] sm:$0xff]
    %v2406 = vld [vmem:[#allocation7 + $0x1b8] sm:$0xff]
    %v2407 = vld [vmem:[#allocation7 + $0x1c0] sm:$0xff]
    %v2408 = vld [vmem:[#allocation7 + $0x1c8] sm:$0xff]
    %v2409 = vld [vmem:[#allocation7 + $0x1d0] sm:$0xff]
    %v2410 = vld [vmem:[#allocation7 + $0x1d8] sm:$0xff]
    %v2411 = vld [vmem:[#allocation7 + $0x1e0] sm:$0xff]
    %v2412 = vld [vmem:[#allocation7 + $0x1e8] sm:$0xff]
    %v2413 = vld [vmem:[#allocation7 + $0x1f0] sm:$0xff]
    %v2414 = vld [vmem:[#allocation7 + $0x1f8] sm:$0xff]
    %v2415 = vld [vmem:[#allocation7 + $0x200] sm:$0xff]
    %v2416 = vld [vmem:[#allocation7 + $0x208] sm:$0xff]
    %v2417 = vld [vmem:[#allocation7 + $0x210] sm:$0xff]
    %v2418 = vld [vmem:[#allocation7 + $0x218] sm:$0xff]
    %v2419 = vld [vmem:[#allocation7 + $0x220] sm:$0xff]
    %v2420 = vld [vmem:[#allocation7 + $0x228] sm:$0xff]
    %v2421 = vld [vmem:[#allocation7 + $0x230] sm:$0xff]
    %v2422 = vld [vmem:[#allocation7 + $0x238] sm:$0xff]
    %v2423 = vld [vmem:[#allocation7 + $0x240] sm:$0xff]
    %v2424 = vld [vmem:[#allocation7 + $0x248] sm:$0xff]
    %v2425 = vld [vmem:[#allocation7 + $0x250] sm:$0xff]
    %v2426 = vld [vmem:[#allocation7 + $0x258] sm:$0xff]
    %v2427 = vld [vmem:[#allocation7 + $0x260] sm:$0xff]
    %v2428 = vld [vmem:[#allocation7 + $0x268] sm:$0xff]
    %v2429 = vld [vmem:[#allocation7 + $0x270] sm:$0xff]
    %v2430 = vld [vmem:[#allocation7 + $0x278] sm:$0xff]
    %v2431 = vld [vmem:[#allocation7 + $0x280] sm:$0xff]
    %v2432 = vld [vmem:[#allocation7 + $0x288] sm:$0xff]
    %v2433 = vld [vmem:[#allocation7 + $0x290] sm:$0xff]
    %v2434 = vld [vmem:[#allocation7 + $0x298] sm:$0xff]
    %v2435 = vld [vmem:[#allocation7 + $0x2a0] sm:$0xff]
    %v2436 = vld [vmem:[#allocation7 + $0x2a8] sm:$0xff]
    %v2437 = vld [vmem:[#allocation7 + $0x2b0] sm:$0xff]
    %v2438 = vld [vmem:[#allocation7 + $0x2b8] sm:$0xff]
    %v2439 = vld [vmem:[#allocation7 + $0x2c0] sm:$0xff]
    %v2440 = vld [vmem:[#allocation7 + $0x2c8] sm:$0xff]
    %v2441 = vld [vmem:[#allocation7 + $0x2d0] sm:$0xff]
    %v2442 = vld [vmem:[#allocation7 + $0x2d8] sm:$0xff]
    %v2443 = vld [vmem:[#allocation7 + $0x2e0] sm:$0xff]
    %v2444 = vld [vmem:[#allocation7 + $0x2e8] sm:$0xff]
    %v2445 = vld [vmem:[#allocation7 + $0x2f0] sm:$0xff]
    %v2446 = vld [vmem:[#allocation7 + $0x2f8] sm:$0xff]
    %v2447 = vld [vmem:[#allocation7 + $0x300] sm:$0xff]
    %v2448 = vld [vmem:[#allocation7 + $0x308] sm:$0xff]
    %v2449 = vld [vmem:[#allocation7 + $0x310] sm:$0xff]
    %v2450 = vld [vmem:[#allocation7 + $0x318] sm:$0xff]
    %v2451 = vld [vmem:[#allocation7 + $0x320] sm:$0xff]
    %v2452 = vld [vmem:[#allocation7 + $0x328] sm:$0xff]
    %v2453 = vld [vmem:[#allocation7 + $0x330] sm:$0xff]
    %v2454 = vld [vmem:[#allocation7 + $0x338] sm:$0xff]
    %v2455 = vld [vmem:[#allocation7 + $0x340] sm:$0xff]
    %v2456 = vld [vmem:[#allocation7 + $0x348] sm:$0xff]
    %v2457 = vld [vmem:[#allocation7 + $0x350] sm:$0xff]
    %v2458 = vld [vmem:[#allocation7 + $0x358] sm:$0xff]
    %v2459 = vld [vmem:[#allocation7 + $0x360] sm:$0xff]
    %v2460 = vld [vmem:[#allocation7 + $0x368] sm:$0xff]
    %v2461 = vld [vmem:[#allocation7 + $0x370] sm:$0xff]
    %v2462 = vld [vmem:[#allocation7 + $0x378] sm:$0xff]
    %v2463 = vld [vmem:[#allocation7 + $0x380] sm:$0xff]
    %v2464 = vld [vmem:[#allocation7 + $0x388] sm:$0xff]
    %v2465 = vld [vmem:[#allocation7 + $0x390] sm:$0xff]
    %v2466 = vld [vmem:[#allocation7 + $0x398] sm:$0xff]
    %v2467 = vld [vmem:[#allocation7 + $0x3a0] sm:$0xff]
    %v2468 = vld [vmem:[#allocation7 + $0x3a8] sm:$0xff]
    %v2469 = vld [vmem:[#allocation7 + $0x3b0] sm:$0xff]
    %v2470 = vld [vmem:[#allocation7 + $0x3b8] sm:$0xff]
    %v2471 = vld [vmem:[#allocation7 + $0x3c0] sm:$0xff]
    %v2472 = vld [vmem:[#allocation7 + $0x3c8] sm:$0xff]
    %v2473 = vld [vmem:[#allocation7 + $0x3d0] sm:$0xff]
    %v2474 = vld [vmem:[#allocation7 + $0x3d8] sm:$0xff]
    %v2475 = vld [vmem:[#allocation7 + $0x3e0] sm:$0xff]
    %v2476 = vld [vmem:[#allocation7 + $0x3e8] sm:$0xff]
    %v2477 = vld [vmem:[#allocation7 + $0x3f0] sm:$0xff]
    %v2478 = vld [vmem:[#allocation7 + $0x3f8] sm:$0xff]
    %v2479 = vld [vmem:[#allocation7 + $0x400] sm:$0xff]
    %v2480 = vld [vmem:[#allocation7 + $0x408] sm:$0xff]
    %v2481 = vld [vmem:[#allocation7 + $0x410] sm:$0xff]
    %v2482 = vld [vmem:[#allocation7 + $0x418] sm:$0xff]
    %v2483 = vld [vmem:[#allocation7 + $0x420] sm:$0xff]
    %v2484 = vld [vmem:[#allocation7 + $0x428] sm:$0xff]
    %v2485 = vld [vmem:[#allocation7 + $0x430] sm:$0xff]
    %v2486 = vld [vmem:[#allocation7 + $0x438] sm:$0xff]
    %v2487 = vld [vmem:[#allocation7 + $0x440] sm:$0xff]
    %v2488 = vld [vmem:[#allocation7 + $0x448] sm:$0xff]
    %v2489 = vld [vmem:[#allocation7 + $0x450] sm:$0xff]
    %v2490 = vld [vmem:[#allocation7 + $0x458] sm:$0xff]
    %v2491 = vld [vmem:[#allocation7 + $0x460] sm:$0xff]
    %v2492 = vld [vmem:[#allocation7 + $0x468] sm:$0xff]
    %v2493 = vld [vmem:[#allocation7 + $0x470] sm:$0xff]
    %v2494 = vld [vmem:[#allocation7 + $0x478] sm:$0xff]
    %v2495 = vld [vmem:[#allocation7 + $0x480] sm:$0xff]
    %v2496 = vld [vmem:[#allocation7 + $0x488] sm:$0xff]
    %v2497 = vld [vmem:[#allocation7 + $0x490] sm:$0xff]
    %v2498 = vld [vmem:[#allocation7 + $0x498] sm:$0xff]
    %v2499 = vld [vmem:[#allocation7 + $0x4a0] sm:$0xff]
    %v2500 = vld [vmem:[#allocation7 + $0x4a8] sm:$0xff]
    %v2501 = vld [vmem:[#allocation7 + $0x4b0] sm:$0xff]
    %v2502 = vld [vmem:[#allocation7 + $0x4b8] sm:$0xff]
    %v2503 = vld [vmem:[#allocation7 + $0x4c0] sm:$0xff]
    %v2504 = vld [vmem:[#allocation7 + $0x4c8] sm:$0xff]
    %v2505 = vld [vmem:[#allocation7 + $0x4d0] sm:$0xff]
    %v2506 = vld [vmem:[#allocation7 + $0x4d8] sm:$0xff]
    %v2507 = vld [vmem:[#allocation7 + $0x4e0] sm:$0xff]
    %v2508 = vld [vmem:[#allocation7 + $0x4e8] sm:$0xff]
    %v2509 = vld [vmem:[#allocation7 + $0x4f0] sm:$0xff]
    %v2510 = vld [vmem:[#allocation7 + $0x4f8] sm:$0xff]
    %v2511 = vld [vmem:[#allocation7 + $0x500] sm:$0xff]
    %v2512 = vld [vmem:[#allocation7 + $0x508] sm:$0xff]
    %v2513 = vld [vmem:[#allocation7 + $0x510] sm:$0xff]
    %v2514 = vld [vmem:[#allocation7 + $0x518] sm:$0xff]
    %v2515 = vld [vmem:[#allocation7 + $0x520] sm:$0xff]
    %v2516 = vld [vmem:[#allocation7 + $0x528] sm:$0xff]
    %v2517 = vld [vmem:[#allocation7 + $0x530] sm:$0xff]
    %v2518 = vld [vmem:[#allocation7 + $0x538] sm:$0xff]
    %v2519 = vld [vmem:[#allocation7 + $0x540] sm:$0xff]
    %v2520 = vld [vmem:[#allocation7 + $0x548] sm:$0xff]
    %v2521 = vld [vmem:[#allocation7 + $0x550] sm:$0xff]
    %v2522 = vld [vmem:[#allocation7 + $0x558] sm:$0xff]
    %v2523 = vld [vmem:[#allocation7 + $0x560] sm:$0xff]
    %v2524 = vld [vmem:[#allocation7 + $0x568] sm:$0xff]
    %v2525 = vld [vmem:[#allocation7 + $0x570] sm:$0xff]
    %v2526 = vld [vmem:[#allocation7 + $0x578] sm:$0xff]
    %v2527 = vld [vmem:[#allocation7 + $0x580] sm:$0xff]
    %v2528 = vld [vmem:[#allocation7 + $0x588] sm:$0xff]
    %v2529 = vld [vmem:[#allocation7 + $0x590] sm:$0xff]
    %v2530 = vld [vmem:[#allocation7 + $0x598] sm:$0xff]
    %v2531 = vld [vmem:[#allocation7 + $0x5a0] sm:$0xff]
    %v2532 = vld [vmem:[#allocation7 + $0x5a8] sm:$0xff]
    %v2533 = vld [vmem:[#allocation7 + $0x5b0] sm:$0xff]
    %v2534 = vld [vmem:[#allocation7 + $0x5b8] sm:$0xff]
    %v2535 = vld [vmem:[#allocation7 + $0x5c0] sm:$0xff]
    %v2536 = vld [vmem:[#allocation7 + $0x5c8] sm:$0xff]
    %v2537 = vld [vmem:[#allocation7 + $0x5d0] sm:$0xff]
    %v2538 = vld [vmem:[#allocation7 + $0x5d8] sm:$0xff]
    %v2539 = vld [vmem:[#allocation7 + $0x5e0] sm:$0xff]
    %v2540 = vld [vmem:[#allocation7 + $0x5e8] sm:$0xff]
    %v2541 = vld [vmem:[#allocation7 + $0x5f0] sm:$0xff]
    %v2542 = vld [vmem:[#allocation7 + $0x5f8] sm:$0xff]
    %v2543 = vld [vmem:[#allocation7 + $0x600] sm:$0xff]
    %v2544 = vld [vmem:[#allocation7 + $0x608] sm:$0xff]
    %v2545 = vld [vmem:[#allocation7 + $0x610] sm:$0xff]
    %v2546 = vld [vmem:[#allocation7 + $0x618] sm:$0xff]
    %v2547 = vld [vmem:[#allocation7 + $0x620] sm:$0xff]
    %v2548 = vld [vmem:[#allocation7 + $0x628] sm:$0xff]
    %v2549 = vld [vmem:[#allocation7 + $0x630] sm:$0xff]
    %v2550 = vld [vmem:[#allocation7 + $0x638] sm:$0xff]
    %v2551 = vld [vmem:[#allocation7 + $0x640] sm:$0xff]
    %v2552 = vld [vmem:[#allocation7 + $0x648] sm:$0xff]
    %v2553 = vld [vmem:[#allocation7 + $0x650] sm:$0xff]
    %v2554 = vld [vmem:[#allocation7 + $0x658] sm:$0xff]
    %v2555 = vld [vmem:[#allocation7 + $0x660] sm:$0xff]
    %v2556 = vld [vmem:[#allocation7 + $0x668] sm:$0xff]
    %v2557 = vld [vmem:[#allocation7 + $0x670] sm:$0xff]
    %v2558 = vld [vmem:[#allocation7 + $0x678] sm:$0xff]
    %v2559 = vld [vmem:[#allocation7 + $0x680] sm:$0xff]
    %v2560 = vld [vmem:[#allocation7 + $0x688] sm:$0xff]
    %v2561 = vld [vmem:[#allocation7 + $0x690] sm:$0xff]
    %v2562 = vld [vmem:[#allocation7 + $0x698] sm:$0xff]
    %v2563 = vld [vmem:[#allocation7 + $0x6a0] sm:$0xff]
    %v2564 = vld [vmem:[#allocation7 + $0x6a8] sm:$0xff]
    %v2565 = vld [vmem:[#allocation7 + $0x6b0] sm:$0xff]
    %v2566 = vld [vmem:[#allocation7 + $0x6b8] sm:$0xff]
    %v2567 = vld [vmem:[#allocation7 + $0x6c0] sm:$0xff]
    %v2568 = vld [vmem:[#allocation7 + $0x6c8] sm:$0xff]
    %v2569 = vld [vmem:[#allocation7 + $0x6d0] sm:$0xff]
    %v2570 = vld [vmem:[#allocation7 + $0x6d8] sm:$0xff]
    %v2571 = vld [vmem:[#allocation7 + $0x6e0] sm:$0xff]
    %v2572 = vld [vmem:[#allocation7 + $0x6e8] sm:$0xff]
    %v2573 = vld [vmem:[#allocation7 + $0x6f0] sm:$0xff]
    %v2574 = vld [vmem:[#allocation7 + $0x6f8] sm:$0xff]
    %v2575 = vld [vmem:[#allocation7 + $0x700] sm:$0xff]
    %v2576 = vld [vmem:[#allocation7 + $0x708] sm:$0xff]
    %v2577 = vld [vmem:[#allocation7 + $0x710] sm:$0xff]
    %v2578 = vld [vmem:[#allocation7 + $0x718] sm:$0xff]
    %v2579 = vld [vmem:[#allocation7 + $0x720] sm:$0xff]
    %v2580 = vld [vmem:[#allocation7 + $0x728] sm:$0xff]
    %v2581 = vld [vmem:[#allocation7 + $0x730] sm:$0xff]
    %v2582 = vld [vmem:[#allocation7 + $0x738] sm:$0xff]
    %v2583 = vld [vmem:[#allocation7 + $0x740] sm:$0xff]
    %v2584 = vld [vmem:[#allocation7 + $0x748] sm:$0xff]
    %v2585 = vld [vmem:[#allocation7 + $0x750] sm:$0xff]
    %v2586 = vld [vmem:[#allocation7 + $0x758] sm:$0xff]
    %v2587 = vld [vmem:[#allocation7 + $0x760] sm:$0xff]
    %v2588 = vld [vmem:[#allocation7 + $0x768] sm:$0xff]
    %v2589 = vld [vmem:[#allocation7 + $0x770] sm:$0xff]
    %v2590 = vld [vmem:[#allocation7 + $0x778] sm:$0xff]
    %v2591 = vld [vmem:[#allocation7 + $0x780] sm:$0xff]
    %v2592 = vld [vmem:[#allocation7 + $0x788] sm:$0xff]
    %v2593 = vld [vmem:[#allocation7 + $0x790] sm:$0xff]
    %v2594 = vld [vmem:[#allocation7 + $0x798] sm:$0xff]
    %v2595 = vld [vmem:[#allocation7 + $0x7a0] sm:$0xff]
    %v2596 = vld [vmem:[#allocation7 + $0x7a8] sm:$0xff]
    %v2597 = vld [vmem:[#allocation7 + $0x7b0] sm:$0xff]
    %v2598 = vld [vmem:[#allocation7 + $0x7b8] sm:$0xff]
    %v2599 = vld [vmem:[#allocation7 + $0x7c0] sm:$0xff]
    %v2600 = vld [vmem:[#allocation7 + $0x7c8] sm:$0xff]
    %v2601 = vld [vmem:[#allocation7 + $0x7d0] sm:$0xff]
    %v2602 = vld [vmem:[#allocation7 + $0x7d8] sm:$0xff]
    %v2603 = vld [vmem:[#allocation7 + $0x7e0] sm:$0xff]
    %v2604 = vld [vmem:[#allocation7 + $0x7e8] sm:$0xff]
    %v2605 = vld [vmem:[#allocation7 + $0x7f0] sm:$0xff]
    %v2606 = vld [vmem:[#allocation7 + $0x7f8] sm:$0xff]
    %v2607 = vld [vmem:[#allocation7 + $0x800] sm:$0xff]
    %v2608 = vld [vmem:[#allocation7 + $0x808] sm:$0xff]
    %v2609 = vld [vmem:[#allocation7 + $0x810] sm:$0xff]
    %v2610 = vld [vmem:[#allocation7 + $0x818] sm:$0xff]
    %v2611 = vld [vmem:[#allocation7 + $0x820] sm:$0xff]
    %v2612 = vld [vmem:[#allocation7 + $0x828] sm:$0xff]
    %v2613 = vld [vmem:[#allocation7 + $0x830] sm:$0xff]
    %v2614 = vld [vmem:[#allocation7 + $0x838] sm:$0xff]
    %v2615 = vld [vmem:[#allocation7 + $0x840] sm:$0xff]
    %v2616 = vld [vmem:[#allocation7 + $0x848] sm:$0xff]
    %v2617 = vld [vmem:[#allocation7 + $0x850] sm:$0xff]
    %v2618 = vld [vmem:[#allocation7 + $0x858] sm:$0xff]
    %v2619 = vld [vmem:[#allocation7 + $0x860] sm:$0xff]
    %v2620 = vld [vmem:[#allocation7 + $0x868] sm:$0xff]
    %v2621 = vld [vmem:[#allocation7 + $0x870] sm:$0xff]
    %v2622 = vld [vmem:[#allocation7 + $0x878] sm:$0xff]
    %v2623 = vld [vmem:[#allocation7 + $0x880] sm:$0xff]
    %v2624 = vld [vmem:[#allocation7 + $0x888] sm:$0xff]
    %v2625 = vld [vmem:[#allocation7 + $0x890] sm:$0xff]
    %v2626 = vld [vmem:[#allocation7 + $0x898] sm:$0xff]
    %v2627 = vld [vmem:[#allocation7 + $0x8a0] sm:$0xff]
    %v2628 = vld [vmem:[#allocation7 + $0x8a8] sm:$0xff]
    %v2629 = vld [vmem:[#allocation7 + $0x8b0] sm:$0xff]
    %v2630 = vld [vmem:[#allocation7 + $0x8b8] sm:$0xff]
    %v2631 = vld [vmem:[#allocation7 + $0x8c0] sm:$0xff]
    %v2632 = vld [vmem:[#allocation7 + $0x8c8] sm:$0xff]
    %v2633 = vld [vmem:[#allocation7 + $0x8d0] sm:$0xff]
    %v2634 = vld [vmem:[#allocation7 + $0x8d8] sm:$0xff]
    %v2635 = vld [vmem:[#allocation7 + $0x8e0] sm:$0xff]
    %v2636 = vld [vmem:[#allocation7 + $0x8e8] sm:$0xff]
    %v2637 = vld [vmem:[#allocation7 + $0x8f0] sm:$0xff]
    %v2638 = vld [vmem:[#allocation7 + $0x8f8] sm:$0xff]
    %v2639 = vperm.slane %v107, 1
    %v2640 = vperm.slane %v107, 5
    %v2641 = vperm.slane %v108, 1
    %v2642 = vperm.slane %v108, 5
    %v2643 = vperm.slane %v109, 1
    %v2644 = vperm.slane %v109, 5
    %v2651 = vperm.slane %v2639, 1
    %v2652 = vperm.slane %v2640, 1
    %v2653 = vperm.slane %v2641, 1
    %v2654 = vperm.slane %v2642, 1
    %v2655 = vperm.slane %v2643, 1
    %v2656 = vperm.slane %v2644, 1
    %v2945 = vunpack.c.l.b16 %v2351
    %v2946 = vunpack.c.h.b16 %v2351
    %v2947 = vunpack.c.l.b16 %v2352
    %v2948 = vunpack.c.h.b16 %v2352
    %v2949 = vunpack.c.l.b16 %v2353
    %v2950 = vunpack.c.h.b16 %v2353
    %v2951 = vunpack.c.l.b16 %v2354
    %v2952 = vunpack.c.h.b16 %v2354
    %v2953 = vunpack.c.l.b16 %v2355
    %v2954 = vunpack.c.h.b16 %v2355
    %v2955 = vunpack.c.l.b16 %v2356
    %v2956 = vunpack.c.h.b16 %v2356
    %v2957 = vunpack.c.l.b16 %v2357
    %v2958 = vunpack.c.h.b16 %v2357
    %v2959 = vunpack.c.l.b16 %v2358
    %v2960 = vunpack.c.h.b16 %v2358
    %v2961 = vunpack.c.l.b16 %v2359
    %v2962 = vunpack.c.h.b16 %v2359
    %v2963 = vunpack.c.l.b16 %v2360
    %v2964 = vunpack.c.h.b16 %v2360
    %v2965 = vunpack.c.l.b16 %v2361
    %v2966 = vunpack.c.h.b16 %v2361
    %v2967 = vunpack.c.l.b16 %v2362
    %v2968 = vunpack.c.h.b16 %v2362
    %v2969 = vunpack.c.l.b16 %v2363
    %v2970 = vunpack.c.h.b16 %v2363
    %v2971 = vunpack.c.l.b16 %v2364
    %v2972 = vunpack.c.h.b16 %v2364
    %v2973 = vunpack.c.l.b16 %v2365
    %v2974 = vunpack.c.h.b16 %v2365
    %v2975 = vunpack.c.l.b16 %v2366
    %v2976 = vunpack.c.h.b16 %v2366
    %v2977 = vunpack.c.l.b16 %v2367
    %v2978 = vunpack.c.h.b16 %v2367
    %v2979 = vunpack.c.l.b16 %v2368
    %v2980 = vunpack.c.h.b16 %v2368
    %v2981 = vunpack.c.l.b16 %v2369
    %v2982 = vunpack.c.h.b16 %v2369
    %v2983 = vunpack.c.l.b16 %v2370
    %v2984 = vunpack.c.h.b16 %v2370
    %v2985 = vunpack.c.l.b16 %v2371
    %v2986 = vunpack.c.h.b16 %v2371
    %v2987 = vunpack.c.l.b16 %v2372
    %v2988 = vunpack.c.h.b16 %v2372
    %v2989 = vunpack.c.l.b16 %v2373
    %v2990 = vunpack.c.h.b16 %v2373
    %v2991 = vunpack.c.l.b16 %v2374
    %v2992 = vunpack.c.h.b16 %v2374
    %v2993 = vunpack.c.l.b16 %v2375
    %v2994 = vunpack.c.h.b16 %v2375
    %v2995 = vunpack.c.l.b16 %v2376
    %v2996 = vunpack.c.h.b16 %v2376
    %v2997 = vunpack.c.l.b16 %v2377
    %v2998 = vunpack.c.h.b16 %v2377
    %v2999 = vunpack.c.l.b16 %v2378
    %v3000 = vunpack.c.h.b16 %v2378
    %v3001 = vunpack.c.l.b16 %v2379
    %v3002 = vunpack.c.h.b16 %v2379
    %v3003 = vunpack.c.l.b16 %v2380
    %v3004 = vunpack.c.h.b16 %v2380
    %v3005 = vunpack.c.l.b16 %v2381
    %v3006 = vunpack.c.h.b16 %v2381
    %v3007 = vunpack.c.l.b16 %v2382
    %v3008 = vunpack.c.h.b16 %v2382
    %v3009 = vunpack.c.l.b16 %v2383
    %v3010 = vunpack.c.h.b16 %v2383
    %v3011 = vunpack.c.l.b16 %v2384
    %v3012 = vunpack.c.h.b16 %v2384
    %v3013 = vunpack.c.l.b16 %v2385
    %v3014 = vunpack.c.h.b16 %v2385
    %v3015 = vunpack.c.l.b16 %v2386
    %v3016 = vunpack.c.h.b16 %v2386
    %v3017 = vunpack.c.l.b16 %v2387
    %v3018 = vunpack.c.h.b16 %v2387
    %v3019 = vunpack.c.l.b16 %v2388
    %v3020 = vunpack.c.h.b16 %v2388
    %v3021 = vunpack.c.l.b16 %v2389
    %v3022 = vunpack.c.h.b16 %v2389
    %v3023 = vunpack.c.l.b16 %v2390
    %v3024 = vunpack.c.h.b16 %v2390
    %v3025 = vunpack.c.l.b16 %v2391
    %v3026 = vunpack.c.h.b16 %v2391
    %v3027 = vunpack.c.l.b16 %v2392
    %v3028 = vunpack.c.h.b16 %v2392
    %v3029 = vunpack.c.l.b16 %v2393
    %v3030 = vunpack.c.h.b16 %v2393
    %v3031 = vunpack.c.l.b16 %v2394
    %v3032 = vunpack.c.h.b16 %v2394
    %v3033 = vunpack.c.l.b16 %v2395
    %v3034 = vunpack.c.h.b16 %v2395
    %v3035 = vunpack.c.l.b16 %v2396
    %v3036 = vunpack.c.h.b16 %v2396
    %v3037 = vunpack.c.l.b16 %v2397
    %v3038 = vunpack.c.h.b16 %v2397
    %v3039 = vunpack.c.l.b16 %v2398
    %v3040 = vunpack.c.h.b16 %v2398
    %v3041 = vunpack.c.l.b16 %v2399
    %v3042 = vunpack.c.h.b16 %v2399
    %v3043 = vunpack.c.l.b16 %v2400
    %v3044 = vunpack.c.h.b16 %v2400
    %v3045 = vunpack.c.l.b16 %v2401
    %v3046 = vunpack.c.h.b16 %v2401
    %v3047 = vunpack.c.l.b16 %v2402
    %v3048 = vunpack.c.h.b16 %v2402
    %v3049 = vunpack.c.l.b16 %v2403
    %v3050 = vunpack.c.h.b16 %v2403
    %v3051 = vunpack.c.l.b16 %v2404
    %v3052 = vunpack.c.h.b16 %v2404
    %v3053 = vunpack.c.l.b16 %v2405
    %v3054 = vunpack.c.h.b16 %v2405
    %v3055 = vunpack.c.l.b16 %v2406
    %v3056 = vunpack.c.h.b16 %v2406
    %v3057 = vunpack.c.l.b16 %v2407
    %v3058 = vunpack.c.h.b16 %v2407
    %v3059 = vunpack.c.l.b16 %v2408
    %v3060 = vunpack.c.h.b16 %v2408
    %v3061 = vunpack.c.l.b16 %v2409
    %v3062 = vunpack.c.h.b16 %v2409
    %v3063 = vunpack.c.l.b16 %v2410
    %v3064 = vunpack.c.h.b16 %v2410
    %v3065 = vunpack.c.l.b16 %v2411
    %v3066 = vunpack.c.h.b16 %v2411
    %v3067 = vunpack.c.l.b16 %v2412
    %v3068 = vunpack.c.h.b16 %v2412
    %v3069 = vunpack.c.l.b16 %v2413
    %v3070 = vunpack.c.h.b16 %v2413
    %v3071 = vunpack.c.l.b16 %v2414
    %v3072 = vunpack.c.h.b16 %v2414
    %v3073 = vunpack.c.l.b16 %v2415
    %v3074 = vunpack.c.h.b16 %v2415
    %v3075 = vunpack.c.l.b16 %v2416
    %v3076 = vunpack.c.h.b16 %v2416
    %v3077 = vunpack.c.l.b16 %v2417
    %v3078 = vunpack.c.h.b16 %v2417
    %v3079 = vunpack.c.l.b16 %v2418
    %v3080 = vunpack.c.h.b16 %v2418
    %v3081 = vunpack.c.l.b16 %v2419
    %v3082 = vunpack.c.h.b16 %v2419
    %v3083 = vunpack.c.l.b16 %v2420
    %v3084 = vunpack.c.h.b16 %v2420
    %v3085 = vunpack.c.l.b16 %v2421
    %v3086 = vunpack.c.h.b16 %v2421
    %v3087 = vunpack.c.l.b16 %v2422
    %v3088 = vunpack.c.h.b16 %v2422
    %v3089 = vunpack.c.l.b16 %v2423
    %v3090 = vunpack.c.h.b16 %v2423
    %v3091 = vunpack.c.l.b16 %v2424
    %v3092 = vunpack.c.h.b16 %v2424
    %v3093 = vunpack.c.l.b16 %v2425
    %v3094 = vunpack.c.h.b16 %v2425
    %v3095 = vunpack.c.l.b16 %v2426
    %v3096 = vunpack.c.h.b16 %v2426
    %v3097 = vunpack.c.l.b16 %v2427
    %v3098 = vunpack.c.h.b16 %v2427
    %v3099 = vunpack.c.l.b16 %v2428
    %v3100 = vunpack.c.h.b16 %v2428
    %v3101 = vunpack.c.l.b16 %v2429
    %v3102 = vunpack.c.h.b16 %v2429
    %v3103 = vunpack.c.l.b16 %v2430
    %v3104 = vunpack.c.h.b16 %v2430
    %v3105 = vunpack.c.l.b16 %v2431
    %v3106 = vunpack.c.h.b16 %v2431
    %v3107 = vunpack.c.l.b16 %v2432
    %v3108 = vunpack.c.h.b16 %v2432
    %v3109 = vunpack.c.l.b16 %v2433
    %v3110 = vunpack.c.h.b16 %v2433
    %v3111 = vunpack.c.l.b16 %v2434
    %v3112 = vunpack.c.h.b16 %v2434
    %v3113 = vunpack.c.l.b16 %v2435
    %v3114 = vunpack.c.h.b16 %v2435
    %v3115 = vunpack.c.l.b16 %v2436
    %v3116 = vunpack.c.h.b16 %v2436
    %v3117 = vunpack.c.l.b16 %v2437
    %v3118 = vunpack.c.h.b16 %v2437
    %v3119 = vunpack.c.l.b16 %v2438
    %v3120 = vunpack.c.h.b16 %v2438
    %v3121 = vunpack.c.l.b16 %v2439
    %v3122 = vunpack.c.h.b16 %v2439
    %v3123 = vunpack.c.l.b16 %v2440
    %v3124 = vunpack.c.h.b16 %v2440
    %v3125 = vunpack.c.l.b16 %v2441
    %v3126 = vunpack.c.h.b16 %v2441
    %v3127 = vunpack.c.l.b16 %v2442
    %v3128 = vunpack.c.h.b16 %v2442
    %v3129 = vunpack.c.l.b16 %v2443
    %v3130 = vunpack.c.h.b16 %v2443
    %v3131 = vunpack.c.l.b16 %v2444
    %v3132 = vunpack.c.h.b16 %v2444
    %v3133 = vunpack.c.l.b16 %v2445
    %v3134 = vunpack.c.h.b16 %v2445
    %v3135 = vunpack.c.l.b16 %v2446
    %v3136 = vunpack.c.h.b16 %v2446
    %v3137 = vunpack.c.l.b16 %v2447
    %v3138 = vunpack.c.h.b16 %v2447
    %v3139 = vunpack.c.l.b16 %v2448
    %v3140 = vunpack.c.h.b16 %v2448
    %v3141 = vunpack.c.l.b16 %v2449
    %v3142 = vunpack.c.h.b16 %v2449
    %v3143 = vunpack.c.l.b16 %v2450
    %v3144 = vunpack.c.h.b16 %v2450
    %v3145 = vunpack.c.l.b16 %v2451
    %v3146 = vunpack.c.h.b16 %v2451
    %v3147 = vunpack.c.l.b16 %v2452
    %v3148 = vunpack.c.h.b16 %v2452
    %v3149 = vunpack.c.l.b16 %v2453
    %v3150 = vunpack.c.h.b16 %v2453
    %v3151 = vunpack.c.l.b16 %v2454
    %v3152 = vunpack.c.h.b16 %v2454
    %v3153 = vunpack.c.l.b16 %v2455
    %v3154 = vunpack.c.h.b16 %v2455
    %v3155 = vunpack.c.l.b16 %v2456
    %v3156 = vunpack.c.h.b16 %v2456
    %v3157 = vunpack.c.l.b16 %v2457
    %v3158 = vunpack.c.h.b16 %v2457
    %v3159 = vunpack.c.l.b16 %v2458
    %v3160 = vunpack.c.h.b16 %v2458
    %v3161 = vunpack.c.l.b16 %v2459
    %v3162 = vunpack.c.h.b16 %v2459
    %v3163 = vunpack.c.l.b16 %v2460
    %v3164 = vunpack.c.h.b16 %v2460
    %v3165 = vunpack.c.l.b16 %v2461
    %v3166 = vunpack.c.h.b16 %v2461
    %v3167 = vunpack.c.l.b16 %v2462
    %v3168 = vunpack.c.h.b16 %v2462
    %v3169 = vunpack.c.l.b16 %v2463
    %v3170 = vunpack.c.h.b16 %v2463
    %v3171 = vunpack.c.l.b16 %v2464
    %v3172 = vunpack.c.h.b16 %v2464
    %v3173 = vunpack.c.l.b16 %v2465
    %v3174 = vunpack.c.h.b16 %v2465
    %v3175 = vunpack.c.l.b16 %v2466
    %v3176 = vunpack.c.h.b16 %v2466
    %v3177 = vunpack.c.l.b16 %v2467
    %v3178 = vunpack.c.h.b16 %v2467
    %v3179 = vunpack.c.l.b16 %v2468
    %v3180 = vunpack.c.h.b16 %v2468
    %v3181 = vunpack.c.l.b16 %v2469
    %v3182 = vunpack.c.h.b16 %v2469
    %v3183 = vunpack.c.l.b16 %v2470
    %v3184 = vunpack.c.h.b16 %v2470
    %v3185 = vunpack.c.l.b16 %v2471
    %v3186 = vunpack.c.h.b16 %v2471
    %v3187 = vunpack.c.l.b16 %v2472
    %v3188 = vunpack.c.h.b16 %v2472
    %v3189 = vunpack.c.l.b16 %v2473
    %v3190 = vunpack.c.h.b16 %v2473
    %v3191 = vunpack.c.l.b16 %v2474
    %v3192 = vunpack.c.h.b16 %v2474
    %v3193 = vunpack.c.l.b16 %v2475
    %v3194 = vunpack.c.h.b16 %v2475
    %v3195 = vunpack.c.l.b16 %v2476
    %v3196 = vunpack.c.h.b16 %v2476
    %v3197 = vunpack.c.l.b16 %v2477
    %v3198 = vunpack.c.h.b16 %v2477
    %v3199 = vunpack.c.l.b16 %v2478
    %v3200 = vunpack.c.h.b16 %v2478
    %v3201 = vunpack.c.l.b16 %v2479
    %v3202 = vunpack.c.h.b16 %v2479
    %v3203 = vunpack.c.l.b16 %v2480
    %v3204 = vunpack.c.h.b16 %v2480
    %v3205 = vunpack.c.l.b16 %v2481
    %v3206 = vunpack.c.h.b16 %v2481
    %v3207 = vunpack.c.l.b16 %v2482
    %v3208 = vunpack.c.h.b16 %v2482
    %v3209 = vunpack.c.l.b16 %v2483
    %v3210 = vunpack.c.h.b16 %v2483
    %v3211 = vunpack.c.l.b16 %v2484
    %v3212 = vunpack.c.h.b16 %v2484
    %v3213 = vunpack.c.l.b16 %v2485
    %v3214 = vunpack.c.h.b16 %v2485
    %v3215 = vunpack.c.l.b16 %v2486
    %v3216 = vunpack.c.h.b16 %v2486
    %v3217 = vunpack.c.l.b16 %v2487
    %v3218 = vunpack.c.h.b16 %v2487
    %v3219 = vunpack.c.l.b16 %v2488
    %v3220 = vunpack.c.h.b16 %v2488
    %v3221 = vunpack.c.l.b16 %v2489
    %v3222 = vunpack.c.h.b16 %v2489
    %v3223 = vunpack.c.l.b16 %v2490
    %v3224 = vunpack.c.h.b16 %v2490
    %v3225 = vunpack.c.l.b16 %v2491
    %v3226 = vunpack.c.h.b16 %v2491
    %v3227 = vunpack.c.l.b16 %v2492
    %v3228 = vunpack.c.h.b16 %v2492
    %v3229 = vunpack.c.l.b16 %v2493
    %v3230 = vunpack.c.h.b16 %v2493
    %v3231 = vunpack.c.l.b16 %v2494
    %v3232 = vunpack.c.h.b16 %v2494
    %v3233 = vunpack.c.l.b16 %v2495
    %v3234 = vunpack.c.h.b16 %v2495
    %v3235 = vunpack.c.l.b16 %v2496
    %v3236 = vunpack.c.h.b16 %v2496
    %v3237 = vunpack.c.l.b16 %v2497
    %v3238 = vunpack.c.h.b16 %v2497
    %v3239 = vunpack.c.l.b16 %v2498
    %v3240 = vunpack.c.h.b16 %v2498
    %v3241 = vunpack.c.l.b16 %v2499
    %v3242 = vunpack.c.h.b16 %v2499
    %v3243 = vunpack.c.l.b16 %v2500
    %v3244 = vunpack.c.h.b16 %v2500
    %v3245 = vunpack.c.l.b16 %v2501
    %v3246 = vunpack.c.h.b16 %v2501
    %v3247 = vunpack.c.l.b16 %v2502
    %v3248 = vunpack.c.h.b16 %v2502
    %v3249 = vunpack.c.l.b16 %v2503
    %v3250 = vunpack.c.h.b16 %v2503
    %v3251 = vunpack.c.l.b16 %v2504
    %v3252 = vunpack.c.h.b16 %v2504
    %v3253 = vunpack.c.l.b16 %v2505
    %v3254 = vunpack.c.h.b16 %v2505
    %v3255 = vunpack.c.l.b16 %v2506
    %v3256 = vunpack.c.h.b16 %v2506
    %v3257 = vunpack.c.l.b16 %v2507
    %v3258 = vunpack.c.h.b16 %v2507
    %v3259 = vunpack.c.l.b16 %v2508
    %v3260 = vunpack.c.h.b16 %v2508
    %v3261 = vunpack.c.l.b16 %v2509
    %v3262 = vunpack.c.h.b16 %v2509
    %v3263 = vunpack.c.l.b16 %v2510
    %v3264 = vunpack.c.h.b16 %v2510
    %v3265 = vunpack.c.l.b16 %v2511
    %v3266 = vunpack.c.h.b16 %v2511
    %v3267 = vunpack.c.l.b16 %v2512
    %v3268 = vunpack.c.h.b16 %v2512
    %v3269 = vunpack.c.l.b16 %v2513
    %v3270 = vunpack.c.h.b16 %v2513
    %v3271 = vunpack.c.l.b16 %v2514
    %v3272 = vunpack.c.h.b16 %v2514
    %v3273 = vunpack.c.l.b16 %v2515
    %v3274 = vunpack.c.h.b16 %v2515
    %v3275 = vunpack.c.l.b16 %v2516
    %v3276 = vunpack.c.h.b16 %v2516
    %v3277 = vunpack.c.l.b16 %v2517
    %v3278 = vunpack.c.h.b16 %v2517
    %v3279 = vunpack.c.l.b16 %v2518
    %v3280 = vunpack.c.h.b16 %v2518
    %v3281 = vunpack.c.l.b16 %v2519
    %v3282 = vunpack.c.h.b16 %v2519
    %v3283 = vunpack.c.l.b16 %v2520
    %v3284 = vunpack.c.h.b16 %v2520
    %v3285 = vunpack.c.l.b16 %v2521
    %v3286 = vunpack.c.h.b16 %v2521
    %v3287 = vunpack.c.l.b16 %v2522
    %v3288 = vunpack.c.h.b16 %v2522
    %v3289 = vunpack.c.l.b16 %v2523
    %v3290 = vunpack.c.h.b16 %v2523
    %v3291 = vunpack.c.l.b16 %v2524
    %v3292 = vunpack.c.h.b16 %v2524
    %v3293 = vunpack.c.l.b16 %v2525
    %v3294 = vunpack.c.h.b16 %v2525
    %v3295 = vunpack.c.l.b16 %v2526
    %v3296 = vunpack.c.h.b16 %v2526
    %v3297 = vunpack.c.l.b16 %v2527
    %v3298 = vunpack.c.h.b16 %v2527
    %v3299 = vunpack.c.l.b16 %v2528
    %v3300 = vunpack.c.h.b16 %v2528
    %v3301 = vunpack.c.l.b16 %v2529
    %v3302 = vunpack.c.h.b16 %v2529
    %v3303 = vunpack.c.l.b16 %v2530
    %v3304 = vunpack.c.h.b16 %v2530
    %v3305 = vunpack.c.l.b16 %v2531
    %v3306 = vunpack.c.h.b16 %v2531
    %v3307 = vunpack.c.l.b16 %v2532
    %v3308 = vunpack.c.h.b16 %v2532
    %v3309 = vunpack.c.l.b16 %v2533
    %v3310 = vunpack.c.h.b16 %v2533
    %v3311 = vunpack.c.l.b16 %v2534
    %v3312 = vunpack.c.h.b16 %v2534
    %v3313 = vunpack.c.l.b16 %v2535
    %v3314 = vunpack.c.h.b16 %v2535
    %v3315 = vunpack.c.l.b16 %v2536
    %v3316 = vunpack.c.h.b16 %v2536
    %v3317 = vunpack.c.l.b16 %v2537
    %v3318 = vunpack.c.h.b16 %v2537
    %v3319 = vunpack.c.l.b16 %v2538
    %v3320 = vunpack.c.h.b16 %v2538
    %v3321 = vunpack.c.l.b16 %v2539
    %v3322 = vunpack.c.h.b16 %v2539
    %v3323 = vunpack.c.l.b16 %v2540
    %v3324 = vunpack.c.h.b16 %v2540
    %v3325 = vunpack.c.l.b16 %v2541
    %v3326 = vunpack.c.h.b16 %v2541
    %v3327 = vunpack.c.l.b16 %v2542
    %v3328 = vunpack.c.h.b16 %v2542
    %v3329 = vunpack.c.l.b16 %v2543
    %v3330 = vunpack.c.h.b16 %v2543
    %v3331 = vunpack.c.l.b16 %v2544
    %v3332 = vunpack.c.h.b16 %v2544
    %v3333 = vunpack.c.l.b16 %v2545
    %v3334 = vunpack.c.h.b16 %v2545
    %v3335 = vunpack.c.l.b16 %v2546
    %v3336 = vunpack.c.h.b16 %v2546
    %v3337 = vunpack.c.l.b16 %v2547
    %v3338 = vunpack.c.h.b16 %v2547
    %v3339 = vunpack.c.l.b16 %v2548
    %v3340 = vunpack.c.h.b16 %v2548
    %v3341 = vunpack.c.l.b16 %v2549
    %v3342 = vunpack.c.h.b16 %v2549
    %v3343 = vunpack.c.l.b16 %v2550
    %v3344 = vunpack.c.h.b16 %v2550
    %v3345 = vunpack.c.l.b16 %v2551
    %v3346 = vunpack.c.h.b16 %v2551
    %v3347 = vunpack.c.l.b16 %v2552
    %v3348 = vunpack.c.h.b16 %v2552
    %v3349 = vunpack.c.l.b16 %v2553
    %v3350 = vunpack.c.h.b16 %v2553
    %v3351 = vunpack.c.l.b16 %v2554
    %v3352 = vunpack.c.h.b16 %v2554
    %v3353 = vunpack.c.l.b16 %v2555
    %v3354 = vunpack.c.h.b16 %v2555
    %v3355 = vunpack.c.l.b16 %v2556
    %v3356 = vunpack.c.h.b16 %v2556
    %v3357 = vunpack.c.l.b16 %v2557
    %v3358 = vunpack.c.h.b16 %v2557
    %v3359 = vunpack.c.l.b16 %v2558
    %v3360 = vunpack.c.h.b16 %v2558
    %v3361 = vunpack.c.l.b16 %v2559
    %v3362 = vunpack.c.h.b16 %v2559
    %v3363 = vunpack.c.l.b16 %v2560
    %v3364 = vunpack.c.h.b16 %v2560
    %v3365 = vunpack.c.l.b16 %v2561
    %v3366 = vunpack.c.h.b16 %v2561
    %v3367 = vunpack.c.l.b16 %v2562
    %v3368 = vunpack.c.h.b16 %v2562
    %v3369 = vunpack.c.l.b16 %v2563
    %v3370 = vunpack.c.h.b16 %v2563
    %v3371 = vunpack.c.l.b16 %v2564
    %v3372 = vunpack.c.h.b16 %v2564
    %v3373 = vunpack.c.l.b16 %v2565
    %v3374 = vunpack.c.h.b16 %v2565
    %v3375 = vunpack.c.l.b16 %v2566
    %v3376 = vunpack.c.h.b16 %v2566
    %v3377 = vunpack.c.l.b16 %v2567
    %v3378 = vunpack.c.h.b16 %v2567
    %v3379 = vunpack.c.l.b16 %v2568
    %v3380 = vunpack.c.h.b16 %v2568
    %v3381 = vunpack.c.l.b16 %v2569
    %v3382 = vunpack.c.h.b16 %v2569
    %v3383 = vunpack.c.l.b16 %v2570
    %v3384 = vunpack.c.h.b16 %v2570
    %v3385 = vunpack.c.l.b16 %v2571
    %v3386 = vunpack.c.h.b16 %v2571
    %v3387 = vunpack.c.l.b16 %v2572
    %v3388 = vunpack.c.h.b16 %v2572
    %v3389 = vunpack.c.l.b16 %v2573
    %v3390 = vunpack.c.h.b16 %v2573
    %v3391 = vunpack.c.l.b16 %v2574
    %v3392 = vunpack.c.h.b16 %v2574
    %v3393 = vunpack.c.l.b16 %v2575
    %v3394 = vunpack.c.h.b16 %v2575
    %v3395 = vunpack.c.l.b16 %v2576
    %v3396 = vunpack.c.h.b16 %v2576
    %v3397 = vunpack.c.l.b16 %v2577
    %v3398 = vunpack.c.h.b16 %v2577
    %v3399 = vunpack.c.l.b16 %v2578
    %v3400 = vunpack.c.h.b16 %v2578
    %v3401 = vunpack.c.l.b16 %v2579
    %v3402 = vunpack.c.h.b16 %v2579
    %v3403 = vunpack.c.l.b16 %v2580
    %v3404 = vunpack.c.h.b16 %v2580
    %v3405 = vunpack.c.l.b16 %v2581
    %v3406 = vunpack.c.h.b16 %v2581
    %v3407 = vunpack.c.l.b16 %v2582
    %v3408 = vunpack.c.h.b16 %v2582
    %v3409 = vunpack.c.l.b16 %v2583
    %v3410 = vunpack.c.h.b16 %v2583
    %v3411 = vunpack.c.l.b16 %v2584
    %v3412 = vunpack.c.h.b16 %v2584
    %v3413 = vunpack.c.l.b16 %v2585
    %v3414 = vunpack.c.h.b16 %v2585
    %v3415 = vunpack.c.l.b16 %v2586
    %v3416 = vunpack.c.h.b16 %v2586
    %v3417 = vunpack.c.l.b16 %v2587
    %v3418 = vunpack.c.h.b16 %v2587
    %v3419 = vunpack.c.l.b16 %v2588
    %v3420 = vunpack.c.h.b16 %v2588
    %v3421 = vunpack.c.l.b16 %v2589
    %v3422 = vunpack.c.h.b16 %v2589
    %v3423 = vunpack.c.l.b16 %v2590
    %v3424 = vunpack.c.h.b16 %v2590
    %v3425 = vunpack.c.l.b16 %v2591
    %v3426 = vunpack.c.h.b16 %v2591
    %v3427 = vunpack.c.l.b16 %v2592
    %v3428 = vunpack.c.h.b16 %v2592
    %v3429 = vunpack.c.l.b16 %v2593
    %v3430 = vunpack.c.h.b16 %v2593
    %v3431 = vunpack.c.l.b16 %v2594
    %v3432 = vunpack.c.h.b16 %v2594
    %v3433 = vunpack.c.l.b16 %v2595
    %v3434 = vunpack.c.h.b16 %v2595
    %v3435 = vunpack.c.l.b16 %v2596
    %v3436 = vunpack.c.h.b16 %v2596
    %v3437 = vunpack.c.l.b16 %v2597
    %v3438 = vunpack.c.h.b16 %v2597
    %v3439 = vunpack.c.l.b16 %v2598
    %v3440 = vunpack.c.h.b16 %v2598
    %v3441 = vunpack.c.l.b16 %v2599
    %v3442 = vunpack.c.h.b16 %v2599
    %v3443 = vunpack.c.l.b16 %v2600
    %v3444 = vunpack.c.h.b16 %v2600
    %v3445 = vunpack.c.l.b16 %v2601
    %v3446 = vunpack.c.h.b16 %v2601
    %v3447 = vunpack.c.l.b16 %v2602
    %v3448 = vunpack.c.h.b16 %v2602
    %v3449 = vunpack.c.l.b16 %v2603
    %v3450 = vunpack.c.h.b16 %v2603
    %v3451 = vunpack.c.l.b16 %v2604
    %v3452 = vunpack.c.h.b16 %v2604
    %v3453 = vunpack.c.l.b16 %v2605
    %v3454 = vunpack.c.h.b16 %v2605
    %v3455 = vunpack.c.l.b16 %v2606
    %v3456 = vunpack.c.h.b16 %v2606
    %v3457 = vunpack.c.l.b16 %v2607
    %v3458 = vunpack.c.h.b16 %v2607
    %v3459 = vunpack.c.l.b16 %v2608
    %v3460 = vunpack.c.h.b16 %v2608
    %v3461 = vunpack.c.l.b16 %v2609
    %v3462 = vunpack.c.h.b16 %v2609
    %v3463 = vunpack.c.l.b16 %v2610
    %v3464 = vunpack.c.h.b16 %v2610
    %v3465 = vunpack.c.l.b16 %v2611
    %v3466 = vunpack.c.h.b16 %v2611
    %v3467 = vunpack.c.l.b16 %v2612
    %v3468 = vunpack.c.h.b16 %v2612
    %v3469 = vunpack.c.l.b16 %v2613
    %v3470 = vunpack.c.h.b16 %v2613
    %v3471 = vunpack.c.l.b16 %v2614
    %v3472 = vunpack.c.h.b16 %v2614
    %v3473 = vunpack.c.l.b16 %v2615
    %v3474 = vunpack.c.h.b16 %v2615
    %v3475 = vunpack.c.l.b16 %v2616
    %v3476 = vunpack.c.h.b16 %v2616
    %v3477 = vunpack.c.l.b16 %v2617
    %v3478 = vunpack.c.h.b16 %v2617
    %v3479 = vunpack.c.l.b16 %v2618
    %v3480 = vunpack.c.h.b16 %v2618
    %v3481 = vunpack.c.l.b16 %v2619
    %v3482 = vunpack.c.h.b16 %v2619
    %v3483 = vunpack.c.l.b16 %v2620
    %v3484 = vunpack.c.h.b16 %v2620
    %v3485 = vunpack.c.l.b16 %v2621
    %v3486 = vunpack.c.h.b16 %v2621
    %v3487 = vunpack.c.l.b16 %v2622
    %v3488 = vunpack.c.h.b16 %v2622
    %v3489 = vunpack.c.l.b16 %v2623
    %v3490 = vunpack.c.h.b16 %v2623
    %v3491 = vunpack.c.l.b16 %v2624
    %v3492 = vunpack.c.h.b16 %v2624
    %v3493 = vunpack.c.l.b16 %v2625
    %v3494 = vunpack.c.h.b16 %v2625
    %v3495 = vunpack.c.l.b16 %v2626
    %v3496 = vunpack.c.h.b16 %v2626
    %v3497 = vunpack.c.l.b16 %v2627
    %v3498 = vunpack.c.h.b16 %v2627
    %v3499 = vunpack.c.l.b16 %v2628
    %v3500 = vunpack.c.h.b16 %v2628
    %v3501 = vunpack.c.l.b16 %v2629
    %v3502 = vunpack.c.h.b16 %v2629
    %v3503 = vunpack.c.l.b16 %v2630
    %v3504 = vunpack.c.h.b16 %v2630
    %v3505 = vunpack.c.l.b16 %v2631
    %v3506 = vunpack.c.h.b16 %v2631
    %v3507 = vunpack.c.l.b16 %v2632
    %v3508 = vunpack.c.h.b16 %v2632
    %v3509 = vunpack.c.l.b16 %v2633
    %v3510 = vunpack.c.h.b16 %v2633
    %v3511 = vunpack.c.l.b16 %v2634
    %v3512 = vunpack.c.h.b16 %v2634
    %v3513 = vunpack.c.l.b16 %v2635
    %v3514 = vunpack.c.h.b16 %v2635
    %v3515 = vunpack.c.l.b16 %v2636
    %v3516 = vunpack.c.h.b16 %v2636
    %v3517 = vunpack.c.l.b16 %v2637
    %v3518 = vunpack.c.h.b16 %v2637
    %v3519 = vunpack.c.l.b16 %v2638
    %v3520 = vunpack.c.h.b16 %v2638
    %v3521 = vpack.c.b16 %v2951, %v2945
    %v3522 = vpack.c.b16 %v2952, %v2946
    %v3523 = vpack.c.b16 %v2953, %v2947
    %v3524 = vpack.c.b16 %v2954, %v2948
    %v3525 = vpack.c.b16 %v2955, %v2949
    %v3526 = vpack.c.b16 %v2956, %v2950
    %v3527 = vpack.c.b16 %v2963, %v2957
    %v3528 = vpack.c.b16 %v2964, %v2958
    %v3529 = vpack.c.b16 %v2965, %v2959
    %v3530 = vpack.c.b16 %v2966, %v2960
    %v3531 = vpack.c.b16 %v2967, %v2961
    %v3532 = vpack.c.b16 %v2968, %v2962
    %v3533 = vpack.c.b16 %v2975, %v2969
    %v3534 = vpack.c.b16 %v2976, %v2970
    %v3535 = vpack.c.b16 %v2977, %v2971
    %v3536 = vpack.c.b16 %v2978, %v2972
    %v3537 = vpack.c.b16 %v2979, %v2973
    %v3538 = vpack.c.b16 %v2980, %v2974
    %v3539 = vpack.c.b16 %v2987, %v2981
    %v3540 = vpack.c.b16 %v2988, %v2982
    %v3541 = vpack.c.b16 %v2989, %v2983
    %v3542 = vpack.c.b16 %v2990, %v2984
    %v3543 = vpack.c.b16 %v2991, %v2985
    %v3544 = vpack.c.b16 %v2992, %v2986
    %v3545 = vpack.c.b16 %v2999, %v2993
    %v3546 = vpack.c.b16 %v3000, %v2994
    %v3547 = vpack.c.b16 %v3001, %v2995
    %v3548 = vpack.c.b16 %v3002, %v2996
    %v3549 = vpack.c.b16 %v3003, %v2997
    %v3550 = vpack.c.b16 %v3004, %v2998
    %v3551 = vpack.c.b16 %v3011, %v3005
    %v3552 = vpack.c.b16 %v3012, %v3006
    %v3553 = vpack.c.b16 %v3013, %v3007
    %v3554 = vpack.c.b16 %v3014, %v3008
    %v3555 = vpack.c.b16 %v3015, %v3009
    %v3556 = vpack.c.b16 %v3016, %v3010
    %v3557 = vpack.c.b16 %v3023, %v3017
    %v3558 = vpack.c.b16 %v3024, %v3018
    %v3559 = vpack.c.b16 %v3025, %v3019
    %v3560 = vpack.c.b16 %v3026, %v3020
    %v3561 = vpack.c.b16 %v3027, %v3021
    %v3562 = vpack.c.b16 %v3028, %v3022
    %v3563 = vpack.c.b16 %v3035, %v3029
    %v3564 = vpack.c.b16 %v3036, %v3030
    %v3565 = vpack.c.b16 %v3037, %v3031
    %v3566 = vpack.c.b16 %v3038, %v3032
    %v3567 = vpack.c.b16 %v3039, %v3033
    %v3568 = vpack.c.b16 %v3040, %v3034
    %v3569 = vpack.c.b16 %v3047, %v3041
    %v3570 = vpack.c.b16 %v3048, %v3042
    %v3571 = vpack.c.b16 %v3049, %v3043
    %v3572 = vpack.c.b16 %v3050, %v3044
    %v3573 = vpack.c.b16 %v3051, %v3045
    %v3574 = vpack.c.b16 %v3052, %v3046
    %v3575 = vpack.c.b16 %v3059, %v3053
    %v3576 = vpack.c.b16 %v3060, %v3054
    %v3577 = vpack.c.b16 %v3061, %v3055
    %v3578 = vpack.c.b16 %v3062, %v3056
    %v3579 = vpack.c.b16 %v3063, %v3057
    %v3580 = vpack.c.b16 %v3064, %v3058
    %v3581 = vpack.c.b16 %v3071, %v3065
    %v3582 = vpack.c.b16 %v3072, %v3066
    %v3583 = vpack.c.b16 %v3073, %v3067
    %v3584 = vpack.c.b16 %v3074, %v3068
    %v3585 = vpack.c.b16 %v3075, %v3069
    %v3586 = vpack.c.b16 %v3076, %v3070
    %v3587 = vpack.c.b16 %v3083, %v3077
    %v3588 = vpack.c.b16 %v3084, %v3078
    %v3589 = vpack.c.b16 %v3085, %v3079
    %v3590 = vpack.c.b16 %v3086, %v3080
    %v3591 = vpack.c.b16 %v3087, %v3081
    %v3592 = vpack.c.b16 %v3088, %v3082
    %v3593 = vpack.c.b16 %v3095, %v3089
    %v3594 = vpack.c.b16 %v3096, %v3090
    %v3595 = vpack.c.b16 %v3097, %v3091
    %v3596 = vpack.c.b16 %v3098, %v3092
    %v3597 = vpack.c.b16 %v3099, %v3093
    %v3598 = vpack.c.b16 %v3100, %v3094
    %v3599 = vpack.c.b16 %v3107, %v3101
    %v3600 = vpack.c.b16 %v3108, %v3102
    %v3601 = vpack.c.b16 %v3109, %v3103
    %v3602 = vpack.c.b16 %v3110, %v3104
    %v3603 = vpack.c.b16 %v3111, %v3105
    %v3604 = vpack.c.b16 %v3112, %v3106
    %v3605 = vpack.c.b16 %v3119, %v3113
    %v3606 = vpack.c.b16 %v3120, %v3114
    %v3607 = vpack.c.b16 %v3121, %v3115
    %v3608 = vpack.c.b16 %v3122, %v3116
    %v3609 = vpack.c.b16 %v3123, %v3117
    %v3610 = vpack.c.b16 %v3124, %v3118
    %v3611 = vpack.c.b16 %v3131, %v3125
    %v3612 = vpack.c.b16 %v3132, %v3126
    %v3613 = vpack.c.b16 %v3133, %v3127
    %v3614 = vpack.c.b16 %v3134, %v3128
    %v3615 = vpack.c.b16 %v3135, %v3129
    %v3616 = vpack.c.b16 %v3136, %v3130
    %v3617 = vpack.c.b16 %v3143, %v3137
    %v3618 = vpack.c.b16 %v3144, %v3138
    %v3619 = vpack.c.b16 %v3145, %v3139
    %v3620 = vpack.c.b16 %v3146, %v3140
    %v3621 = vpack.c.b16 %v3147, %v3141
    %v3622 = vpack.c.b16 %v3148, %v3142
    %v3623 = vpack.c.b16 %v3155, %v3149
    %v3624 = vpack.c.b16 %v3156, %v3150
    %v3625 = vpack.c.b16 %v3157, %v3151
    %v3626 = vpack.c.b16 %v3158, %v3152
    %v3627 = vpack.c.b16 %v3159, %v3153
    %v3628 = vpack.c.b16 %v3160, %v3154
    %v3629 = vpack.c.b16 %v3167, %v3161
    %v3630 = vpack.c.b16 %v3168, %v3162
    %v3631 = vpack.c.b16 %v3169, %v3163
    %v3632 = vpack.c.b16 %v3170, %v3164
    %v3633 = vpack.c.b16 %v3171, %v3165
    %v3634 = vpack.c.b16 %v3172, %v3166
    %v3635 = vpack.c.b16 %v3179, %v3173
    %v3636 = vpack.c.b16 %v3180, %v3174
    %v3637 = vpack.c.b16 %v3181, %v3175
    %v3638 = vpack.c.b16 %v3182, %v3176
    %v3639 = vpack.c.b16 %v3183, %v3177
    %v3640 = vpack.c.b16 %v3184, %v3178
    %v3641 = vpack.c.b16 %v3191, %v3185
    %v3642 = vpack.c.b16 %v3192, %v3186
    %v3643 = vpack.c.b16 %v3193, %v3187
    %v3644 = vpack.c.b16 %v3194, %v3188
    %v3645 = vpack.c.b16 %v3195, %v3189
    %v3646 = vpack.c.b16 %v3196, %v3190
    %v3647 = vpack.c.b16 %v3203, %v3197
    %v3648 = vpack.c.b16 %v3204, %v3198
    %v3649 = vpack.c.b16 %v3205, %v3199
    %v3650 = vpack.c.b16 %v3206, %v3200
    %v3651 = vpack.c.b16 %v3207, %v3201
    %v3652 = vpack.c.b16 %v3208, %v3202
    %v3653 = vpack.c.b16 %v3215, %v3209
    %v3654 = vpack.c.b16 %v3216, %v3210
    %v3655 = vpack.c.b16 %v3217, %v3211
    %v3656 = vpack.c.b16 %v3218, %v3212
    %v3657 = vpack.c.b16 %v3219, %v3213
    %v3658 = vpack.c.b16 %v3220, %v3214
    %v3659 = vpack.c.b16 %v3227, %v3221
    %v3660 = vpack.c.b16 %v3228, %v3222
    %v3661 = vpack.c.b16 %v3229, %v3223
    %v3662 = vpack.c.b16 %v3230, %v3224
    %v3663 = vpack.c.b16 %v3231, %v3225
    %v3664 = vpack.c.b16 %v3232, %v3226
    %v3665 = vpack.c.b16 %v3239, %v3233
    %v3666 = vpack.c.b16 %v3240, %v3234
    %v3667 = vpack.c.b16 %v3241, %v3235
    %v3668 = vpack.c.b16 %v3242, %v3236
    %v3669 = vpack.c.b16 %v3243, %v3237
    %v3670 = vpack.c.b16 %v3244, %v3238
    %v3671 = vpack.c.b16 %v3251, %v3245
    %v3672 = vpack.c.b16 %v3252, %v3246
    %v3673 = vpack.c.b16 %v3253, %v3247
    %v3674 = vpack.c.b16 %v3254, %v3248
    %v3675 = vpack.c.b16 %v3255, %v3249
    %v3676 = vpack.c.b16 %v3256, %v3250
    %v3677 = vpack.c.b16 %v3263, %v3257
    %v3678 = vpack.c.b16 %v3264, %v3258
    %v3679 = vpack.c.b16 %v3265, %v3259
    %v3680 = vpack.c.b16 %v3266, %v3260
    %v3681 = vpack.c.b16 %v3267, %v3261
    %v3682 = vpack.c.b16 %v3268, %v3262
    %v3683 = vpack.c.b16 %v3275, %v3269
    %v3684 = vpack.c.b16 %v3276, %v3270
    %v3685 = vpack.c.b16 %v3277, %v3271
    %v3686 = vpack.c.b16 %v3278, %v3272
    %v3687 = vpack.c.b16 %v3279, %v3273
    %v3688 = vpack.c.b16 %v3280, %v3274
    %v3689 = vpack.c.b16 %v3287, %v3281
    %v3690 = vpack.c.b16 %v3288, %v3282
    %v3691 = vpack.c.b16 %v3289, %v3283
    %v3692 = vpack.c.b16 %v3290, %v3284
    %v3693 = vpack.c.b16 %v3291, %v3285
    %v3694 = vpack.c.b16 %v3292, %v3286
    %v3695 = vpack.c.b16 %v3299, %v3293
    %v3696 = vpack.c.b16 %v3300, %v3294
    %v3697 = vpack.c.b16 %v3301, %v3295
    %v3698 = vpack.c.b16 %v3302, %v3296
    %v3699 = vpack.c.b16 %v3303, %v3297
    %v3700 = vpack.c.b16 %v3304, %v3298
    %v3701 = vpack.c.b16 %v3311, %v3305
    %v3702 = vpack.c.b16 %v3312, %v3306
    %v3703 = vpack.c.b16 %v3313, %v3307
    %v3704 = vpack.c.b16 %v3314, %v3308
    %v3705 = vpack.c.b16 %v3315, %v3309
    %v3706 = vpack.c.b16 %v3316, %v3310
    %v3707 = vpack.c.b16 %v3323, %v3317
    %v3708 = vpack.c.b16 %v3324, %v3318
    %v3709 = vpack.c.b16 %v3325, %v3319
    %v3710 = vpack.c.b16 %v3326, %v3320
    %v3711 = vpack.c.b16 %v3327, %v3321
    %v3712 = vpack.c.b16 %v3328, %v3322
    %v3713 = vpack.c.b16 %v3335, %v3329
    %v3714 = vpack.c.b16 %v3336, %v3330
    %v3715 = vpack.c.b16 %v3337, %v3331
    %v3716 = vpack.c.b16 %v3338, %v3332
    %v3717 = vpack.c.b16 %v3339, %v3333
    %v3718 = vpack.c.b16 %v3340, %v3334
    %v3719 = vpack.c.b16 %v3347, %v3341
    %v3720 = vpack.c.b16 %v3348, %v3342
    %v3721 = vpack.c.b16 %v3349, %v3343
    %v3722 = vpack.c.b16 %v3350, %v3344
    %v3723 = vpack.c.b16 %v3351, %v3345
    %v3724 = vpack.c.b16 %v3352, %v3346
    %v3725 = vpack.c.b16 %v3359, %v3353
    %v3726 = vpack.c.b16 %v3360, %v3354
    %v3727 = vpack.c.b16 %v3361, %v3355
    %v3728 = vpack.c.b16 %v3362, %v3356
    %v3729 = vpack.c.b16 %v3363, %v3357
    %v3730 = vpack.c.b16 %v3364, %v3358
    %v3731 = vpack.c.b16 %v3371, %v3365
    %v3732 = vpack.c.b16 %v3372, %v3366
    %v3733 = vpack.c.b16 %v3373, %v3367
    %v3734 = vpack.c.b16 %v3374, %v3368
    %v3735 = vpack.c.b16 %v3375, %v3369
    %v3736 = vpack.c.b16 %v3376, %v3370
    %v3737 = vpack.c.b16 %v3383, %v3377
    %v3738 = vpack.c.b16 %v3384, %v3378
    %v3739 = vpack.c.b16 %v3385, %v3379
    %v3740 = vpack.c.b16 %v3386, %v3380
    %v3741 = vpack.c.b16 %v3387, %v3381
    %v3742 = vpack.c.b16 %v3388, %v3382
    %v3743 = vpack.c.b16 %v3395, %v3389
    %v3744 = vpack.c.b16 %v3396, %v3390
    %v3745 = vpack.c.b16 %v3397, %v3391
    %v3746 = vpack.c.b16 %v3398, %v3392
    %v3747 = vpack.c.b16 %v3399, %v3393
    %v3748 = vpack.c.b16 %v3400, %v3394
    %v3749 = vpack.c.b16 %v3407, %v3401
    %v3750 = vpack.c.b16 %v3408, %v3402
    %v3751 = vpack.c.b16 %v3409, %v3403
    %v3752 = vpack.c.b16 %v3410, %v3404
    %v3753 = vpack.c.b16 %v3411, %v3405
    %v3754 = vpack.c.b16 %v3412, %v3406
    %v3755 = vpack.c.b16 %v3419, %v3413
    %v3756 = vpack.c.b16 %v3420, %v3414
    %v3757 = vpack.c.b16 %v3421, %v3415
    %v3758 = vpack.c.b16 %v3422, %v3416
    %v3759 = vpack.c.b16 %v3423, %v3417
    %v3760 = vpack.c.b16 %v3424, %v3418
    %v3761 = vpack.c.b16 %v3431, %v3425
    %v3762 = vpack.c.b16 %v3432, %v3426
    %v3763 = vpack.c.b16 %v3433, %v3427
    %v3764 = vpack.c.b16 %v3434, %v3428
    %v3765 = vpack.c.b16 %v3435, %v3429
    %v3766 = vpack.c.b16 %v3436, %v3430
    %v3767 = vpack.c.b16 %v3443, %v3437
    %v3768 = vpack.c.b16 %v3444, %v3438
    %v3769 = vpack.c.b16 %v3445, %v3439
    %v3770 = vpack.c.b16 %v3446, %v3440
    %v3771 = vpack.c.b16 %v3447, %v3441
    %v3772 = vpack.c.b16 %v3448, %v3442
    %v3773 = vpack.c.b16 %v3455, %v3449
    %v3774 = vpack.c.b16 %v3456, %v3450
    %v3775 = vpack.c.b16 %v3457, %v3451
    %v3776 = vpack.c.b16 %v3458, %v3452
    %v3777 = vpack.c.b16 %v3459, %v3453
    %v3778 = vpack.c.b16 %v3460, %v3454
    %v3779 = vpack.c.b16 %v3467, %v3461
    %v3780 = vpack.c.b16 %v3468, %v3462
    %v3781 = vpack.c.b16 %v3469, %v3463
    %v3782 = vpack.c.b16 %v3470, %v3464
    %v3783 = vpack.c.b16 %v3471, %v3465
    %v3784 = vpack.c.b16 %v3472, %v3466
    %v3785 = vpack.c.b16 %v3479, %v3473
    %v3786 = vpack.c.b16 %v3480, %v3474
    %v3787 = vpack.c.b16 %v3481, %v3475
    %v3788 = vpack.c.b16 %v3482, %v3476
    %v3789 = vpack.c.b16 %v3483, %v3477
    %v3790 = vpack.c.b16 %v3484, %v3478
    %v3791 = vpack.c.b16 %v3491, %v3485
    %v3792 = vpack.c.b16 %v3492, %v3486
    %v3793 = vpack.c.b16 %v3493, %v3487
    %v3794 = vpack.c.b16 %v3494, %v3488
    %v3795 = vpack.c.b16 %v3495, %v3489
    %v3796 = vpack.c.b16 %v3496, %v3490
    %v3797 = vpack.c.b16 %v3503, %v3497
    %v3798 = vpack.c.b16 %v3504, %v3498
    %v3799 = vpack.c.b16 %v3505, %v3499
    %v3800 = vpack.c.b16 %v3506, %v3500
    %v3801 = vpack.c.b16 %v3507, %v3501
    %v3802 = vpack.c.b16 %v3508, %v3502
    %v3803 = vpack.c.b16 %v3515, %v3509
    %v3804 = vpack.c.b16 %v3516, %v3510
    %v3805 = vpack.c.b16 %v3517, %v3511
    %v3806 = vpack.c.b16 %v3518, %v3512
    %v3807 = vpack.c.b16 %v3519, %v3513
    %v3808 = vpack.c.b16 %v3520, %v3514
    %4097 = vmatpush.bf16.msra.mxu0 %v3563
    %4098 = vmatpush.bf16.msra.mxu0 %v3557
    %4099 = vmatpush.bf16.msra.mxu0 %v3551
    %4100 = vmatpush.bf16.msra.mxu0 %v3545
    %4101 = vmatpush.bf16.msra.mxu0 %v3539
    %4102 = vmatpush.bf16.msra.mxu0 %v3533
    %4103 = vmatpush.bf16.msra.mxu0 %v3527
    %4104 = vmatpush.bf16.msra.mxu0 %v3521
    %4105 = vmatmul.bf16.gmra.mxu0 %v2345
    %v4106 = vpop.f32.mrf.mxu0
    %v4107 = vadd.f32 %v2651, %v4106
    %v4108 = vpop.f32.mrf.mxu0
    %4109 = vdwg.mxu0
    %4110 = vmatpush.bf16.msra.mxu0 %v3611
    %4111 = vmatpush.bf16.msra.mxu0 %v3605
    %4112 = vmatpush.bf16.msra.mxu0 %v3599
    %4113 = vmatpush.bf16.msra.mxu0 %v3593
    %4114 = vmatpush.bf16.msra.mxu0 %v3587
    %4115 = vmatpush.bf16.msra.mxu0 %v3581
    %4116 = vmatpush.bf16.msra.mxu0 %v3575
    %4117 = vmatpush.bf16.msra.mxu0 %v3569
    %4118 = vmatmul.bf16.gmra.mxu0 %v2346
    %v4119 = vpop.f32.mrf.mxu0
    %v4120 = vadd.f32 %v4107, %v4119
    %v4121 = vpop.f32.mrf.mxu0
    %4122 = vdwg.mxu0
    %4123 = vmatpush.bf16.msra.mxu0 %v3659
    %4124 = vmatpush.bf16.msra.mxu0 %v3653
    %4125 = vmatpush.bf16.msra.mxu0 %v3647
    %4126 = vmatpush.bf16.msra.mxu0 %v3641
    %4127 = vmatpush.bf16.msra.mxu0 %v3635
    %4128 = vmatpush.bf16.msra.mxu0 %v3629
    %4129 = vmatpush.bf16.msra.mxu0 %v3623
    %4130 = vmatpush.bf16.msra.mxu0 %v3617
    %4131 = vmatmul.bf16.gmra.mxu0 %v2347
    %v4132 = vpop.f32.mrf.mxu0
    %v4133 = vadd.f32 %v4120, %v4132
    %v4134 = vpop.f32.mrf.mxu0
    %4135 = vdwg.mxu0
    %4136 = vmatpush.bf16.msra.mxu0 %v3707
    %4137 = vmatpush.bf16.msra.mxu0 %v3701
    %4138 = vmatpush.bf16.msra.mxu0 %v3695
    %4139 = vmatpush.bf16.msra.mxu0 %v3689
    %4140 = vmatpush.bf16.msra.mxu0 %v3683
    %4141 = vmatpush.bf16.msra.mxu0 %v3677
    %4142 = vmatpush.bf16.msra.mxu0 %v3671
    %4143 = vmatpush.bf16.msra.mxu0 %v3665
    %4144 = vmatmul.bf16.gmra.mxu0 %v2348
    %v4145 = vpop.f32.mrf.mxu0
    %v4146 = vadd.f32 %v4133, %v4145
    %v4147 = vpop.f32.mrf.mxu0
    %4148 = vdwg.mxu0
    %4149 = vmatpush.bf16.msra.mxu0 %v3755
    %4150 = vmatpush.bf16.msra.mxu0 %v3749
    %4151 = vmatpush.bf16.msra.mxu0 %v3743
    %4152 = vmatpush.bf16.msra.mxu0 %v3737
    %4153 = vmatpush.bf16.msra.mxu0 %v3731
    %4154 = vmatpush.bf16.msra.mxu0 %v3725
    %4155 = vmatpush.bf16.msra.mxu0 %v3719
    %4156 = vmatpush.bf16.msra.mxu0 %v3713
    %4157 = vmatmul.bf16.gmra.mxu0 %v2349
    %v4158 = vpop.f32.mrf.mxu0
    %v4159 = vadd.f32 %v4146, %v4158
    %v4160 = vpop.f32.mrf.mxu0
    %4161 = vdwg.mxu0
    %4162 = vmatpush.bf16.msra.mxu0 %v3803
    %4163 = vmatpush.bf16.msra.mxu0 %v3797
    %4164 = vmatpush.bf16.msra.mxu0 %v3791
    %4165 = vmatpush.bf16.msra.mxu0 %v3785
    %4166 = vmatpush.bf16.msra.mxu0 %v3779
    %4167 = vmatpush.bf16.msra.mxu0 %v3773
    %4168 = vmatpush.bf16.msra.mxu0 %v3767
    %4169 = vmatpush.bf16.msra.mxu0 %v3761
    %4170 = vmatmul.bf16.gmra.mxu0 %v2350
    %v4171 = vpop.f32.mrf.mxu0
    %v4172 = vadd.f32 %v4159, %v4171
    %v4173 = vpop.f32.mrf.mxu0
    %4174 = vdwg.mxu0
    %4175 = vmatpush.bf16.msra.mxu0 %v3564
    %4176 = vmatpush.bf16.msra.mxu0 %v3558
    %4177 = vmatpush.bf16.msra.mxu0 %v3552
    %4178 = vmatpush.bf16.msra.mxu0 %v3546
    %4179 = vmatpush.bf16.msra.mxu0 %v3540
    %4180 = vmatpush.bf16.msra.mxu0 %v3534
    %4181 = vmatpush.bf16.msra.mxu0 %v3528
    %4182 = vmatpush.bf16.msra.mxu0 %v3522
    %4183 = vmatmul.bf16.gmra.mxu0 %v2345
    %v4184 = vpop.f32.mrf.mxu0
    %v4185 = vadd.f32 %v2652, %v4184
    %v4186 = vpop.f32.mrf.mxu0
    %4187 = vdwg.mxu0
    %4188 = vmatpush.bf16.msra.mxu0 %v3612
    %4189 = vmatpush.bf16.msra.mxu0 %v3606
    %4190 = vmatpush.bf16.msra.mxu0 %v3600
    %4191 = vmatpush.bf16.msra.mxu0 %v3594
    %4192 = vmatpush.bf16.msra.mxu0 %v3588
    %4193 = vmatpush.bf16.msra.mxu0 %v3582
    %4194 = vmatpush.bf16.msra.mxu0 %v3576
    %4195 = vmatpush.bf16.msra.mxu0 %v3570
    %4196 = vmatmul.bf16.gmra.mxu0 %v2346
    %v4197 = vpop.f32.mrf.mxu0
    %v4198 = vadd.f32 %v4185, %v4197
    %v4199 = vpop.f32.mrf.mxu0
    %4200 = vdwg.mxu0
    %4201 = vmatpush.bf16.msra.mxu0 %v3660
    %4202 = vmatpush.bf16.msra.mxu0 %v3654
    %4203 = vmatpush.bf16.msra.mxu0 %v3648
    %4204 = vmatpush.bf16.msra.mxu0 %v3642
    %4205 = vmatpush.bf16.msra.mxu0 %v3636
    %4206 = vmatpush.bf16.msra.mxu0 %v3630
    %4207 = vmatpush.bf16.msra.mxu0 %v3624
    %4208 = vmatpush.bf16.msra.mxu0 %v3618
    %4209 = vmatmul.bf16.gmra.mxu0 %v2347
    %v4210 = vpop.f32.mrf.mxu0
    %v4211 = vadd.f32 %v4198, %v4210
    %v4212 = vpop.f32.mrf.mxu0
    %4213 = vdwg.mxu0
    %4214 = vmatpush.bf16.msra.mxu0 %v3708
    %4215 = vmatpush.bf16.msra.mxu0 %v3702
    %4216 = vmatpush.bf16.msra.mxu0 %v3696
    %4217 = vmatpush.bf16.msra.mxu0 %v3690
    %4218 = vmatpush.bf16.msra.mxu0 %v3684
    %4219 = vmatpush.bf16.msra.mxu0 %v3678
    %4220 = vmatpush.bf16.msra.mxu0 %v3672
    %4221 = vmatpush.bf16.msra.mxu0 %v3666
    %4222 = vmatmul.bf16.gmra.mxu0 %v2348
    %v4223 = vpop.f32.mrf.mxu0
    %v4224 = vadd.f32 %v4211, %v4223
    %v4225 = vpop.f32.mrf.mxu0
    %4226 = vdwg.mxu0
    %4227 = vmatpush.bf16.msra.mxu0 %v3756
    %4228 = vmatpush.bf16.msra.mxu0 %v3750
    %4229 = vmatpush.bf16.msra.mxu0 %v3744
    %4230 = vmatpush.bf16.msra.mxu0 %v3738
    %4231 = vmatpush.bf16.msra.mxu0 %v3732
    %4232 = vmatpush.bf16.msra.mxu0 %v3726
    %4233 = vmatpush.bf16.msra.mxu0 %v3720
    %4234 = vmatpush.bf16.msra.mxu0 %v3714
    %4235 = vmatmul.bf16.gmra.mxu0 %v2349
    %v4236 = vpop.f32.mrf.mxu0
    %v4237 = vadd.f32 %v4224, %v4236
    %v4238 = vpop.f32.mrf.mxu0
    %4239 = vdwg.mxu0
    %4240 = vmatpush.bf16.msra.mxu0 %v3804
    %4241 = vmatpush.bf16.msra.mxu0 %v3798
    %4242 = vmatpush.bf16.msra.mxu0 %v3792
    %4243 = vmatpush.bf16.msra.mxu0 %v3786
    %4244 = vmatpush.bf16.msra.mxu0 %v3780
    %4245 = vmatpush.bf16.msra.mxu0 %v3774
    %4246 = vmatpush.bf16.msra.mxu0 %v3768
    %4247 = vmatpush.bf16.msra.mxu0 %v3762
    %4248 = vmatmul.bf16.gmra.mxu0 %v2350
    %v4249 = vpop.f32.mrf.mxu0
    %v4250 = vadd.f32 %v4237, %v4249
    %v4251 = vpop.f32.mrf.mxu0
    %4252 = vdwg.mxu0
    %4253 = vmatpush.bf16.msra.mxu0 %v3565
    %4254 = vmatpush.bf16.msra.mxu0 %v3559
    %4255 = vmatpush.bf16.msra.mxu0 %v3553
    %4256 = vmatpush.bf16.msra.mxu0 %v3547
    %4257 = vmatpush.bf16.msra.mxu0 %v3541
    %4258 = vmatpush.bf16.msra.mxu0 %v3535
    %4259 = vmatpush.bf16.msra.mxu0 %v3529
    %4260 = vmatpush.bf16.msra.mxu0 %v3523
    %4261 = vmatmul.bf16.gmra.mxu0 %v2345
    %v4262 = vpop.f32.mrf.mxu0
    %v4263 = vadd.f32 %v2653, %v4262
    %v4264 = vpop.f32.mrf.mxu0
    %4265 = vdwg.mxu0
    %4266 = vmatpush.bf16.msra.mxu0 %v3613
    %4267 = vmatpush.bf16.msra.mxu0 %v3607
    %4268 = vmatpush.bf16.msra.mxu0 %v3601
    %4269 = vmatpush.bf16.msra.mxu0 %v3595
    %4270 = vmatpush.bf16.msra.mxu0 %v3589
    %4271 = vmatpush.bf16.msra.mxu0 %v3583
    %4272 = vmatpush.bf16.msra.mxu0 %v3577
    %4273 = vmatpush.bf16.msra.mxu0 %v3571
    %4274 = vmatmul.bf16.gmra.mxu0 %v2346
    %v4275 = vpop.f32.mrf.mxu0
    %v4276 = vadd.f32 %v4263, %v4275
    %v4277 = vpop.f32.mrf.mxu0
    %4278 = vdwg.mxu0
    %4279 = vmatpush.bf16.msra.mxu0 %v3661
    %4280 = vmatpush.bf16.msra.mxu0 %v3655
    %4281 = vmatpush.bf16.msra.mxu0 %v3649
    %4282 = vmatpush.bf16.msra.mxu0 %v3643
    %4283 = vmatpush.bf16.msra.mxu0 %v3637
    %4284 = vmatpush.bf16.msra.mxu0 %v3631
    %4285 = vmatpush.bf16.msra.mxu0 %v3625
    %4286 = vmatpush.bf16.msra.mxu0 %v3619
    %4287 = vmatmul.bf16.gmra.mxu0 %v2347
    %v4288 = vpop.f32.mrf.mxu0
    %v4289 = vadd.f32 %v4276, %v4288
    %v4290 = vpop.f32.mrf.mxu0
    %4291 = vdwg.mxu0
    %4292 = vmatpush.bf16.msra.mxu0 %v3709
    %4293 = vmatpush.bf16.msra.mxu0 %v3703
    %4294 = vmatpush.bf16.msra.mxu0 %v3697
    %4295 = vmatpush.bf16.msra.mxu0 %v3691
    %4296 = vmatpush.bf16.msra.mxu0 %v3685
    %4297 = vmatpush.bf16.msra.mxu0 %v3679
    %4298 = vmatpush.bf16.msra.mxu0 %v3673
    %4299 = vmatpush.bf16.msra.mxu0 %v3667
    %4300 = vmatmul.bf16.gmra.mxu0 %v2348
    %v4301 = vpop.f32.mrf.mxu0
    %v4302 = vadd.f32 %v4289, %v4301
    %v4303 = vpop.f32.mrf.mxu0
    %4304 = vdwg.mxu0
    %4305 = vmatpush.bf16.msra.mxu0 %v3757
    %4306 = vmatpush.bf16.msra.mxu0 %v3751
    %4307 = vmatpush.bf16.msra.mxu0 %v3745
    %4308 = vmatpush.bf16.msra.mxu0 %v3739
    %4309 = vmatpush.bf16.msra.mxu0 %v3733
    %4310 = vmatpush.bf16.msra.mxu0 %v3727
    %4311 = vmatpush.bf16.msra.mxu0 %v3721
    %4312 = vmatpush.bf16.msra.mxu0 %v3715
    %4313 = vmatmul.bf16.gmra.mxu0 %v2349
    %v4314 = vpop.f32.mrf.mxu0
    %v4315 = vadd.f32 %v4302, %v4314
    %v4316 = vpop.f32.mrf.mxu0
    %4317 = vdwg.mxu0
    %4318 = vmatpush.bf16.msra.mxu0 %v3805
    %4319 = vmatpush.bf16.msra.mxu0 %v3799
    %4320 = vmatpush.bf16.msra.mxu0 %v3793
    %4321 = vmatpush.bf16.msra.mxu0 %v3787
    %4322 = vmatpush.bf16.msra.mxu0 %v3781
    %4323 = vmatpush.bf16.msra.mxu0 %v3775
    %4324 = vmatpush.bf16.msra.mxu0 %v3769
    %4325 = vmatpush.bf16.msra.mxu0 %v3763
    %4326 = vmatmul.bf16.gmra.mxu0 %v2350
    %v4327 = vpop.f32.mrf.mxu0
    %v4328 = vadd.f32 %v4315, %v4327
    %v4329 = vpop.f32.mrf.mxu0
    %4330 = vdwg.mxu0
    %4331 = vmatpush.bf16.msra.mxu0 %v3566
    %4332 = vmatpush.bf16.msra.mxu0 %v3560
    %4333 = vmatpush.bf16.msra.mxu0 %v3554
    %4334 = vmatpush.bf16.msra.mxu0 %v3548
    %4335 = vmatpush.bf16.msra.mxu0 %v3542
    %4336 = vmatpush.bf16.msra.mxu0 %v3536
    %4337 = vmatpush.bf16.msra.mxu0 %v3530
    %4338 = vmatpush.bf16.msra.mxu0 %v3524
    %4339 = vmatmul.bf16.gmra.mxu0 %v2345
    %v4340 = vpop.f32.mrf.mxu0
    %v4341 = vadd.f32 %v2654, %v4340
    %v4342 = vpop.f32.mrf.mxu0
    %4343 = vdwg.mxu0
    %4344 = vmatpush.bf16.msra.mxu0 %v3614
    %4345 = vmatpush.bf16.msra.mxu0 %v3608
    %4346 = vmatpush.bf16.msra.mxu0 %v3602
    %4347 = vmatpush.bf16.msra.mxu0 %v3596
    %4348 = vmatpush.bf16.msra.mxu0 %v3590
    %4349 = vmatpush.bf16.msra.mxu0 %v3584
    %4350 = vmatpush.bf16.msra.mxu0 %v3578
    %4351 = vmatpush.bf16.msra.mxu0 %v3572
    %4352 = vmatmul.bf16.gmra.mxu0 %v2346
    %v4353 = vpop.f32.mrf.mxu0
    %v4354 = vadd.f32 %v4341, %v4353
    %v4355 = vpop.f32.mrf.mxu0
    %4356 = vdwg.mxu0
    %4357 = vmatpush.bf16.msra.mxu0 %v3662
    %4358 = vmatpush.bf16.msra.mxu0 %v3656
    %4359 = vmatpush.bf16.msra.mxu0 %v3650
    %4360 = vmatpush.bf16.msra.mxu0 %v3644
    %4361 = vmatpush.bf16.msra.mxu0 %v3638
    %4362 = vmatpush.bf16.msra.mxu0 %v3632
    %4363 = vmatpush.bf16.msra.mxu0 %v3626
    %4364 = vmatpush.bf16.msra.mxu0 %v3620
    %4365 = vmatmul.bf16.gmra.mxu0 %v2347
    %v4366 = vpop.f32.mrf.mxu0
    %v4367 = vadd.f32 %v4354, %v4366
    %v4368 = vpop.f32.mrf.mxu0
    %4369 = vdwg.mxu0
    %4370 = vmatpush.bf16.msra.mxu0 %v3710
    %4371 = vmatpush.bf16.msra.mxu0 %v3704
    %4372 = vmatpush.bf16.msra.mxu0 %v3698
    %4373 = vmatpush.bf16.msra.mxu0 %v3692
    %4374 = vmatpush.bf16.msra.mxu0 %v3686
    %4375 = vmatpush.bf16.msra.mxu0 %v3680
    %4376 = vmatpush.bf16.msra.mxu0 %v3674
    %4377 = vmatpush.bf16.msra.mxu0 %v3668
    %4378 = vmatmul.bf16.gmra.mxu0 %v2348
    %v4379 = vpop.f32.mrf.mxu0
    %v4380 = vadd.f32 %v4367, %v4379
    %v4381 = vpop.f32.mrf.mxu0
    %4382 = vdwg.mxu0
    %4383 = vmatpush.bf16.msra.mxu0 %v3758
    %4384 = vmatpush.bf16.msra.mxu0 %v3752
    %4385 = vmatpush.bf16.msra.mxu0 %v3746
    %4386 = vmatpush.bf16.msra.mxu0 %v3740
    %4387 = vmatpush.bf16.msra.mxu0 %v3734
    %4388 = vmatpush.bf16.msra.mxu0 %v3728
    %4389 = vmatpush.bf16.msra.mxu0 %v3722
    %4390 = vmatpush.bf16.msra.mxu0 %v3716
    %4391 = vmatmul.bf16.gmra.mxu0 %v2349
    %v4392 = vpop.f32.mrf.mxu0
    %v4393 = vadd.f32 %v4380, %v4392
    %v4394 = vpop.f32.mrf.mxu0
    %4395 = vdwg.mxu0
    %4396 = vmatpush.bf16.msra.mxu0 %v3806
    %4397 = vmatpush.bf16.msra.mxu0 %v3800
    %4398 = vmatpush.bf16.msra.mxu0 %v3794
    %4399 = vmatpush.bf16.msra.mxu0 %v3788
    %4400 = vmatpush.bf16.msra.mxu0 %v3782
    %4401 = vmatpush.bf16.msra.mxu0 %v3776
    %4402 = vmatpush.bf16.msra.mxu0 %v3770
    %4403 = vmatpush.bf16.msra.mxu0 %v3764
    %4404 = vmatmul.bf16.gmra.mxu0 %v2350
    %v4405 = vpop.f32.mrf.mxu0
    %v4406 = vadd.f32 %v4393, %v4405
    %v4407 = vpop.f32.mrf.mxu0
    %4408 = vdwg.mxu0
    %4409 = vmatpush.bf16.msra.mxu0 %v3567
    %4410 = vmatpush.bf16.msra.mxu0 %v3561
    %4411 = vmatpush.bf16.msra.mxu0 %v3555
    %4412 = vmatpush.bf16.msra.mxu0 %v3549
    %4413 = vmatpush.bf16.msra.mxu0 %v3543
    %4414 = vmatpush.bf16.msra.mxu0 %v3537
    %4415 = vmatpush.bf16.msra.mxu0 %v3531
    %4416 = vmatpush.bf16.msra.mxu0 %v3525
    %4417 = vmatmul.bf16.gmra.mxu0 %v2345
    %v4418 = vpop.f32.mrf.mxu0
    %v4419 = vadd.f32 %v2655, %v4418
    %v4420 = vpop.f32.mrf.mxu0
    %4421 = vdwg.mxu0
    %4422 = vmatpush.bf16.msra.mxu0 %v3615
    %4423 = vmatpush.bf16.msra.mxu0 %v3609
    %4424 = vmatpush.bf16.msra.mxu0 %v3603
    %4425 = vmatpush.bf16.msra.mxu0 %v3597
    %4426 = vmatpush.bf16.msra.mxu0 %v3591
    %4427 = vmatpush.bf16.msra.mxu0 %v3585
    %4428 = vmatpush.bf16.msra.mxu0 %v3579
    %4429 = vmatpush.bf16.msra.mxu0 %v3573
    %4430 = vmatmul.bf16.gmra.mxu0 %v2346
    %v4431 = vpop.f32.mrf.mxu0
    %v4432 = vadd.f32 %v4419, %v4431
    %v4433 = vpop.f32.mrf.mxu0
    %4434 = vdwg.mxu0
    %4435 = vmatpush.bf16.msra.mxu0 %v3663
    %4436 = vmatpush.bf16.msra.mxu0 %v3657
    %4437 = vmatpush.bf16.msra.mxu0 %v3651
    %4438 = vmatpush.bf16.msra.mxu0 %v3645
    %4439 = vmatpush.bf16.msra.mxu0 %v3639
    %4440 = vmatpush.bf16.msra.mxu0 %v3633
    %4441 = vmatpush.bf16.msra.mxu0 %v3627
    %4442 = vmatpush.bf16.msra.mxu0 %v3621
    %4443 = vmatmul.bf16.gmra.mxu0 %v2347
    %v4444 = vpop.f32.mrf.mxu0
    %v4445 = vadd.f32 %v4432, %v4444
    %v4446 = vpop.f32.mrf.mxu0
    %4447 = vdwg.mxu0
    %4448 = vmatpush.bf16.msra.mxu0 %v3711
    %4449 = vmatpush.bf16.msra.mxu0 %v3705
    %4450 = vmatpush.bf16.msra.mxu0 %v3699
    %4451 = vmatpush.bf16.msra.mxu0 %v3693
    %4452 = vmatpush.bf16.msra.mxu0 %v3687
    %4453 = vmatpush.bf16.msra.mxu0 %v3681
    %4454 = vmatpush.bf16.msra.mxu0 %v3675
    %4455 = vmatpush.bf16.msra.mxu0 %v3669
    %4456 = vmatmul.bf16.gmra.mxu0 %v2348
    %v4457 = vpop.f32.mrf.mxu0
    %v4458 = vadd.f32 %v4445, %v4457
    %v4459 = vpop.f32.mrf.mxu0
    %4460 = vdwg.mxu0
    %4461 = vmatpush.bf16.msra.mxu0 %v3759
    %4462 = vmatpush.bf16.msra.mxu0 %v3753
    %4463 = vmatpush.bf16.msra.mxu0 %v3747
    %4464 = vmatpush.bf16.msra.mxu0 %v3741
    %4465 = vmatpush.bf16.msra.mxu0 %v3735
    %4466 = vmatpush.bf16.msra.mxu0 %v3729
    %4467 = vmatpush.bf16.msra.mxu0 %v3723
    %4468 = vmatpush.bf16.msra.mxu0 %v3717
    %4469 = vmatmul.bf16.gmra.mxu0 %v2349
    %v4470 = vpop.f32.mrf.mxu0
    %v4471 = vadd.f32 %v4458, %v4470
    %v4472 = vpop.f32.mrf.mxu0
    %4473 = vdwg.mxu0
    %4474 = vmatpush.bf16.msra.mxu0 %v3807
    %4475 = vmatpush.bf16.msra.mxu0 %v3801
    %4476 = vmatpush.bf16.msra.mxu0 %v3795
    %4477 = vmatpush.bf16.msra.mxu0 %v3789
    %4478 = vmatpush.bf16.msra.mxu0 %v3783
    %4479 = vmatpush.bf16.msra.mxu0 %v3777
    %4480 = vmatpush.bf16.msra.mxu0 %v3771
    %4481 = vmatpush.bf16.msra.mxu0 %v3765
    %4482 = vmatmul.bf16.gmra.mxu0 %v2350
    %v4483 = vpop.f32.mrf.mxu0
    %v4484 = vadd.f32 %v4471, %v4483
    %v4485 = vpop.f32.mrf.mxu0
    %4486 = vdwg.mxu0
    %4487 = vmatpush.bf16.msra.mxu0 %v3568
    %4488 = vmatpush.bf16.msra.mxu0 %v3562
    %4489 = vmatpush.bf16.msra.mxu0 %v3556
    %4490 = vmatpush.bf16.msra.mxu0 %v3550
    %4491 = vmatpush.bf16.msra.mxu0 %v3544
    %4492 = vmatpush.bf16.msra.mxu0 %v3538
    %4493 = vmatpush.bf16.msra.mxu0 %v3532
    %4494 = vmatpush.bf16.msra.mxu0 %v3526
    %4495 = vmatmul.bf16.gmra.mxu0 %v2345
    %v4496 = vpop.f32.mrf.mxu0
    %v4497 = vadd.f32 %v2656, %v4496
    %v4498 = vpop.f32.mrf.mxu0
    %4499 = vdwg.mxu0
    %4500 = vmatpush.bf16.msra.mxu0 %v3616
    %4501 = vmatpush.bf16.msra.mxu0 %v3610
    %4502 = vmatpush.bf16.msra.mxu0 %v3604
    %4503 = vmatpush.bf16.msra.mxu0 %v3598
    %4504 = vmatpush.bf16.msra.mxu0 %v3592
    %4505 = vmatpush.bf16.msra.mxu0 %v3586
    %4506 = vmatpush.bf16.msra.mxu0 %v3580
    %4507 = vmatpush.bf16.msra.mxu0 %v3574
    %4508 = vmatmul.bf16.gmra.mxu0 %v2346
    %v4509 = vpop.f32.mrf.mxu0
    %v4510 = vadd.f32 %v4497, %v4509
    %v4511 = vpop.f32.mrf.mxu0
    %4512 = vdwg.mxu0
    %4513 = vmatpush.bf16.msra.mxu0 %v3664
    %4514 = vmatpush.bf16.msra.mxu0 %v3658
    %4515 = vmatpush.bf16.msra.mxu0 %v3652
    %4516 = vmatpush.bf16.msra.mxu0 %v3646
    %4517 = vmatpush.bf16.msra.mxu0 %v3640
    %4518 = vmatpush.bf16.msra.mxu0 %v3634
    %4519 = vmatpush.bf16.msra.mxu0 %v3628
    %4520 = vmatpush.bf16.msra.mxu0 %v3622
    %4521 = vmatmul.bf16.gmra.mxu0 %v2347
    %v4522 = vpop.f32.mrf.mxu0
    %v4523 = vadd.f32 %v4510, %v4522
    %v4524 = vpop.f32.mrf.mxu0
    %4525 = vdwg.mxu0
    %4526 = vmatpush.bf16.msra.mxu0 %v3712
    %4527 = vmatpush.bf16.msra.mxu0 %v3706
    %4528 = vmatpush.bf16.msra.mxu0 %v3700
    %4529 = vmatpush.bf16.msra.mxu0 %v3694
    %4530 = vmatpush.bf16.msra.mxu0 %v3688
    %4531 = vmatpush.bf16.msra.mxu0 %v3682
    %4532 = vmatpush.bf16.msra.mxu0 %v3676
    %4533 = vmatpush.bf16.msra.mxu0 %v3670
    %4534 = vmatmul.bf16.gmra.mxu0 %v2348
    %v4535 = vpop.f32.mrf.mxu0
    %v4536 = vadd.f32 %v4523, %v4535
    %v4537 = vpop.f32.mrf.mxu0
    %4538 = vdwg.mxu0
    %4539 = vmatpush.bf16.msra.mxu0 %v3760
    %4540 = vmatpush.bf16.msra.mxu0 %v3754
    %4541 = vmatpush.bf16.msra.mxu0 %v3748
    %4542 = vmatpush.bf16.msra.mxu0 %v3742
    %4543 = vmatpush.bf16.msra.mxu0 %v3736
    %4544 = vmatpush.bf16.msra.mxu0 %v3730
    %4545 = vmatpush.bf16.msra.mxu0 %v3724
    %4546 = vmatpush.bf16.msra.mxu0 %v3718
    %4547 = vmatmul.bf16.gmra.mxu0 %v2349
    %v4548 = vpop.f32.mrf.mxu0
    %v4549 = vadd.f32 %v4536, %v4548
    %v4550 = vpop.f32.mrf.mxu0
    %4551 = vdwg.mxu0
    %4552 = vmatpush.bf16.msra.mxu0 %v3808
    %4553 = vmatpush.bf16.msra.mxu0 %v3802
    %4554 = vmatpush.bf16.msra.mxu0 %v3796
    %4555 = vmatpush.bf16.msra.mxu0 %v3790
    %4556 = vmatpush.bf16.msra.mxu0 %v3784
    %4557 = vmatpush.bf16.msra.mxu0 %v3778
    %4558 = vmatpush.bf16.msra.mxu0 %v3772
    %4559 = vmatpush.bf16.msra.mxu0 %v3766
    %4560 = vmatmul.bf16.gmra.mxu0 %v2350
    %v4561 = vpop.f32.mrf.mxu0
    %v4562 = vadd.f32 %v4549, %v4561
    %v4563 = vpop.f32.mrf.mxu0
    %4564 = vdwg.mxu0
    %vm4565 = vcmp.gt.f32.partialorder %v4172, 0.0
    %vm4566 = vcmp.gt.f32.partialorder %v4250, 0.0
    %vm4567 = vcmp.gt.f32.partialorder %v4328, 0.0
    %vm4568 = vcmp.gt.f32.partialorder %v4406, 0.0
    %vm4569 = vcmp.gt.f32.partialorder %v4484, 0.0
    %vm4570 = vcmp.gt.f32.partialorder %v4562, 0.0
    %v4571 = vmul.f32 %v4172, 0.01
    %v4572 = vmul.f32 %v4250, 0.01
    %v4573 = vmul.f32 %v4328, 0.01
    %v4574 = vmul.f32 %v4406, 0.01
    %v4575 = vmul.f32 %v4484, 0.01
    %v4576 = vmul.f32 %v4562, 0.01
    %v4577 = vsel %vm4565, %v4172, %v4571
    %v4578 = vsel %vm4566, %v4250, %v4572
    %v4579 = vsel %vm4567, %v4328, %v4573
    %v4580 = vsel %vm4568, %v4406, %v4574
    %v4581 = vsel %vm4569, %v4484, %v4575
    %v4582 = vsel %vm4570, %v4562, %v4576
    %v4583 = vpack.c.bf16 %v4577, %v4577
    %v4584 = vpack.c.bf16 %v4578, %v4578
    %v4585 = vpack.c.bf16 %v4579, %v4579
    %v4586 = vpack.c.bf16 %v4580, %v4580
    %v4587 = vpack.c.bf16 %v4581, %v4581
    %v4588 = vpack.c.bf16 %v4582, %v4582
    %v4589 = vld [vmem:[#allocation8] sm:$0xff]
    %v4590 = vld [vmem:[#allocation8 + $0x8] sm:$0xff]
    %v4591 = vld [vmem:[#allocation8 + $0x10] sm:$0xff]
    %v4592 = vld [vmem:[#allocation8 + $0x18] sm:$0xff]
    %v4593 = vld [vmem:[#allocation8 + $0x20] sm:$0xff]
    %v4594 = vld [vmem:[#allocation8 + $0x28] sm:$0xff]
    %v4595 = vld [vmem:[#allocation8 + $0x30] sm:$0xff]
    %v4596 = vld [vmem:[#allocation8 + $0x38] sm:$0xff]
    %v4597 = vld [vmem:[#allocation8 + $0x40] sm:$0xff]
    %v4598 = vld [vmem:[#allocation8 + $0x48] sm:$0xff]
    %v4599 = vld [vmem:[#allocation8 + $0x50] sm:$0xff]
    %v4600 = vld [vmem:[#allocation8 + $0x58] sm:$0xff]
    %v4601 = vld [vmem:[#allocation8 + $0x60] sm:$0xff]
    %v4602 = vld [vmem:[#allocation8 + $0x68] sm:$0xff]
    %v4603 = vld [vmem:[#allocation8 + $0x70] sm:$0xff]
    %v4604 = vld [vmem:[#allocation8 + $0x78] sm:$0xff]
    %v4605 = vld [vmem:[#allocation8 + $0x80] sm:$0xff]
    %v4606 = vld [vmem:[#allocation8 + $0x88] sm:$0xff]
    %v4607 = vld [vmem:[#allocation8 + $0x90] sm:$0xff]
    %v4608 = vld [vmem:[#allocation8 + $0x98] sm:$0xff]
    %v4609 = vld [vmem:[#allocation8 + $0xa0] sm:$0xff]
    %v4610 = vld [vmem:[#allocation8 + $0xa8] sm:$0xff]
    %v4611 = vld [vmem:[#allocation8 + $0xb0] sm:$0xff]
    %v4612 = vld [vmem:[#allocation8 + $0xb8] sm:$0xff]
    %v4613 = vld [vmem:[#allocation8 + $0xc0] sm:$0xff]
    %v4614 = vld [vmem:[#allocation8 + $0xc8] sm:$0xff]
    %v4615 = vld [vmem:[#allocation8 + $0xd0] sm:$0xff]
    %v4616 = vld [vmem:[#allocation8 + $0xd8] sm:$0xff]
    %v4617 = vld [vmem:[#allocation8 + $0xe0] sm:$0xff]
    %v4618 = vld [vmem:[#allocation8 + $0xe8] sm:$0xff]
    %v4619 = vld [vmem:[#allocation8 + $0xf0] sm:$0xff]
    %v4620 = vld [vmem:[#allocation8 + $0xf8] sm:$0xff]
    %v4621 = vld [vmem:[#allocation8 + $0x100] sm:$0xff]
    %v4622 = vld [vmem:[#allocation8 + $0x108] sm:$0xff]
    %v4623 = vld [vmem:[#allocation8 + $0x110] sm:$0xff]
    %v4624 = vld [vmem:[#allocation8 + $0x118] sm:$0xff]
    %v4625 = vld [vmem:[#allocation8 + $0x120] sm:$0xff]
    %v4626 = vld [vmem:[#allocation8 + $0x128] sm:$0xff]
    %v4627 = vld [vmem:[#allocation8 + $0x130] sm:$0xff]
    %v4628 = vld [vmem:[#allocation8 + $0x138] sm:$0xff]
    %v4629 = vld [vmem:[#allocation8 + $0x140] sm:$0xff]
    %v4630 = vld [vmem:[#allocation8 + $0x148] sm:$0xff]
    %v4631 = vld [vmem:[#allocation8 + $0x150] sm:$0xff]
    %v4632 = vld [vmem:[#allocation8 + $0x158] sm:$0xff]
    %v4633 = vld [vmem:[#allocation8 + $0x160] sm:$0xff]
    %v4634 = vld [vmem:[#allocation8 + $0x168] sm:$0xff]
    %v4635 = vld [vmem:[#allocation8 + $0x170] sm:$0xff]
    %v4636 = vld [vmem:[#allocation8 + $0x178] sm:$0xff]
    %v4637 = vld [vmem:[#allocation8 + $0x180] sm:$0xff]
    %v4638 = vld [vmem:[#allocation8 + $0x188] sm:$0xff]
    %v4639 = vld [vmem:[#allocation8 + $0x190] sm:$0xff]
    %v4640 = vld [vmem:[#allocation8 + $0x198] sm:$0xff]
    %v4641 = vld [vmem:[#allocation8 + $0x1a0] sm:$0xff]
    %v4642 = vld [vmem:[#allocation8 + $0x1a8] sm:$0xff]
    %v4643 = vld [vmem:[#allocation8 + $0x1b0] sm:$0xff]
    %v4644 = vld [vmem:[#allocation8 + $0x1b8] sm:$0xff]
    %v4645 = vld [vmem:[#allocation8 + $0x1c0] sm:$0xff]
    %v4646 = vld [vmem:[#allocation8 + $0x1c8] sm:$0xff]
    %v4647 = vld [vmem:[#allocation8 + $0x1d0] sm:$0xff]
    %v4648 = vld [vmem:[#allocation8 + $0x1d8] sm:$0xff]
    %v4649 = vld [vmem:[#allocation8 + $0x1e0] sm:$0xff]
    %v4650 = vld [vmem:[#allocation8 + $0x1e8] sm:$0xff]
    %v4651 = vld [vmem:[#allocation8 + $0x1f0] sm:$0xff]
    %v4652 = vld [vmem:[#allocation8 + $0x1f8] sm:$0xff]
    %v4653 = vld [vmem:[#allocation8 + $0x200] sm:$0xff]
    %v4654 = vld [vmem:[#allocation8 + $0x208] sm:$0xff]
    %v4655 = vld [vmem:[#allocation8 + $0x210] sm:$0xff]
    %v4656 = vld [vmem:[#allocation8 + $0x218] sm:$0xff]
    %v4657 = vld [vmem:[#allocation8 + $0x220] sm:$0xff]
    %v4658 = vld [vmem:[#allocation8 + $0x228] sm:$0xff]
    %v4659 = vld [vmem:[#allocation8 + $0x230] sm:$0xff]
    %v4660 = vld [vmem:[#allocation8 + $0x238] sm:$0xff]
    %v4661 = vld [vmem:[#allocation8 + $0x240] sm:$0xff]
    %v4662 = vld [vmem:[#allocation8 + $0x248] sm:$0xff]
    %v4663 = vld [vmem:[#allocation8 + $0x250] sm:$0xff]
    %v4664 = vld [vmem:[#allocation8 + $0x258] sm:$0xff]
    %v4665 = vld [vmem:[#allocation8 + $0x260] sm:$0xff]
    %v4666 = vld [vmem:[#allocation8 + $0x268] sm:$0xff]
    %v4667 = vld [vmem:[#allocation8 + $0x270] sm:$0xff]
    %v4668 = vld [vmem:[#allocation8 + $0x278] sm:$0xff]
    %v4669 = vld [vmem:[#allocation8 + $0x280] sm:$0xff]
    %v4670 = vld [vmem:[#allocation8 + $0x288] sm:$0xff]
    %v4671 = vld [vmem:[#allocation8 + $0x290] sm:$0xff]
    %v4672 = vld [vmem:[#allocation8 + $0x298] sm:$0xff]
    %v4673 = vld [vmem:[#allocation8 + $0x2a0] sm:$0xff]
    %v4674 = vld [vmem:[#allocation8 + $0x2a8] sm:$0xff]
    %v4675 = vld [vmem:[#allocation8 + $0x2b0] sm:$0xff]
    %v4676 = vld [vmem:[#allocation8 + $0x2b8] sm:$0xff]
    %v4677 = vld [vmem:[#allocation8 + $0x2c0] sm:$0xff]
    %v4678 = vld [vmem:[#allocation8 + $0x2c8] sm:$0xff]
    %v4679 = vld [vmem:[#allocation8 + $0x2d0] sm:$0xff]
    %v4680 = vld [vmem:[#allocation8 + $0x2d8] sm:$0xff]
    %v4681 = vld [vmem:[#allocation8 + $0x2e0] sm:$0xff]
    %v4682 = vld [vmem:[#allocation8 + $0x2e8] sm:$0xff]
    %v4683 = vld [vmem:[#allocation8 + $0x2f0] sm:$0xff]
    %v4684 = vld [vmem:[#allocation8 + $0x2f8] sm:$0xff]
    %v4685 = vld [vmem:[#allocation8 + $0x300] sm:$0xff]
    %v4686 = vld [vmem:[#allocation8 + $0x308] sm:$0xff]
    %v4687 = vld [vmem:[#allocation8 + $0x310] sm:$0xff]
    %v4688 = vld [vmem:[#allocation8 + $0x318] sm:$0xff]
    %v4689 = vld [vmem:[#allocation8 + $0x320] sm:$0xff]
    %v4690 = vld [vmem:[#allocation8 + $0x328] sm:$0xff]
    %v4691 = vld [vmem:[#allocation8 + $0x330] sm:$0xff]
    %v4692 = vld [vmem:[#allocation8 + $0x338] sm:$0xff]
    %v4693 = vld [vmem:[#allocation8 + $0x340] sm:$0xff]
    %v4694 = vld [vmem:[#allocation8 + $0x348] sm:$0xff]
    %v4695 = vld [vmem:[#allocation8 + $0x350] sm:$0xff]
    %v4696 = vld [vmem:[#allocation8 + $0x358] sm:$0xff]
    %v4697 = vld [vmem:[#allocation8 + $0x360] sm:$0xff]
    %v4698 = vld [vmem:[#allocation8 + $0x368] sm:$0xff]
    %v4699 = vld [vmem:[#allocation8 + $0x370] sm:$0xff]
    %v4700 = vld [vmem:[#allocation8 + $0x378] sm:$0xff]
    %v4701 = vld [vmem:[#allocation8 + $0x380] sm:$0xff]
    %v4702 = vld [vmem:[#allocation8 + $0x388] sm:$0xff]
    %v4703 = vld [vmem:[#allocation8 + $0x390] sm:$0xff]
    %v4704 = vld [vmem:[#allocation8 + $0x398] sm:$0xff]
    %v4705 = vld [vmem:[#allocation8 + $0x3a0] sm:$0xff]
    %v4706 = vld [vmem:[#allocation8 + $0x3a8] sm:$0xff]
    %v4707 = vld [vmem:[#allocation8 + $0x3b0] sm:$0xff]
    %v4708 = vld [vmem:[#allocation8 + $0x3b8] sm:$0xff]
    %v4709 = vld [vmem:[#allocation8 + $0x3c0] sm:$0xff]
    %v4710 = vld [vmem:[#allocation8 + $0x3c8] sm:$0xff]
    %v4711 = vld [vmem:[#allocation8 + $0x3d0] sm:$0xff]
    %v4712 = vld [vmem:[#allocation8 + $0x3d8] sm:$0xff]
    %v4713 = vld [vmem:[#allocation8 + $0x3e0] sm:$0xff]
    %v4714 = vld [vmem:[#allocation8 + $0x3e8] sm:$0xff]
    %v4715 = vld [vmem:[#allocation8 + $0x3f0] sm:$0xff]
    %v4716 = vld [vmem:[#allocation8 + $0x3f8] sm:$0xff]
    %v4717 = vld [vmem:[#allocation8 + $0x400] sm:$0xff]
    %v4718 = vld [vmem:[#allocation8 + $0x408] sm:$0xff]
    %v4719 = vld [vmem:[#allocation8 + $0x410] sm:$0xff]
    %v4720 = vld [vmem:[#allocation8 + $0x418] sm:$0xff]
    %v4721 = vld [vmem:[#allocation8 + $0x420] sm:$0xff]
    %v4722 = vld [vmem:[#allocation8 + $0x428] sm:$0xff]
    %v4723 = vld [vmem:[#allocation8 + $0x430] sm:$0xff]
    %v4724 = vld [vmem:[#allocation8 + $0x438] sm:$0xff]
    %v4725 = vld [vmem:[#allocation8 + $0x440] sm:$0xff]
    %v4726 = vld [vmem:[#allocation8 + $0x448] sm:$0xff]
    %v4727 = vld [vmem:[#allocation8 + $0x450] sm:$0xff]
    %v4728 = vld [vmem:[#allocation8 + $0x458] sm:$0xff]
    %v4729 = vld [vmem:[#allocation8 + $0x460] sm:$0xff]
    %v4730 = vld [vmem:[#allocation8 + $0x468] sm:$0xff]
    %v4731 = vld [vmem:[#allocation8 + $0x470] sm:$0xff]
    %v4732 = vld [vmem:[#allocation8 + $0x478] sm:$0xff]
    %v4733 = vld [vmem:[#allocation8 + $0x480] sm:$0xff]
    %v4734 = vld [vmem:[#allocation8 + $0x488] sm:$0xff]
    %v4735 = vld [vmem:[#allocation8 + $0x490] sm:$0xff]
    %v4736 = vld [vmem:[#allocation8 + $0x498] sm:$0xff]
    %v4737 = vld [vmem:[#allocation8 + $0x4a0] sm:$0xff]
    %v4738 = vld [vmem:[#allocation8 + $0x4a8] sm:$0xff]
    %v4739 = vld [vmem:[#allocation8 + $0x4b0] sm:$0xff]
    %v4740 = vld [vmem:[#allocation8 + $0x4b8] sm:$0xff]
    %v4741 = vld [vmem:[#allocation8 + $0x4c0] sm:$0xff]
    %v4742 = vld [vmem:[#allocation8 + $0x4c8] sm:$0xff]
    %v4743 = vld [vmem:[#allocation8 + $0x4d0] sm:$0xff]
    %v4744 = vld [vmem:[#allocation8 + $0x4d8] sm:$0xff]
    %v4745 = vld [vmem:[#allocation8 + $0x4e0] sm:$0xff]
    %v4746 = vld [vmem:[#allocation8 + $0x4e8] sm:$0xff]
    %v4747 = vld [vmem:[#allocation8 + $0x4f0] sm:$0xff]
    %v4748 = vld [vmem:[#allocation8 + $0x4f8] sm:$0xff]
    %v4749 = vld [vmem:[#allocation8 + $0x500] sm:$0xff]
    %v4750 = vld [vmem:[#allocation8 + $0x508] sm:$0xff]
    %v4751 = vld [vmem:[#allocation8 + $0x510] sm:$0xff]
    %v4752 = vld [vmem:[#allocation8 + $0x518] sm:$0xff]
    %v4753 = vld [vmem:[#allocation8 + $0x520] sm:$0xff]
    %v4754 = vld [vmem:[#allocation8 + $0x528] sm:$0xff]
    %v4755 = vld [vmem:[#allocation8 + $0x530] sm:$0xff]
    %v4756 = vld [vmem:[#allocation8 + $0x538] sm:$0xff]
    %v4757 = vld [vmem:[#allocation8 + $0x540] sm:$0xff]
    %v4758 = vld [vmem:[#allocation8 + $0x548] sm:$0xff]
    %v4759 = vld [vmem:[#allocation8 + $0x550] sm:$0xff]
    %v4760 = vld [vmem:[#allocation8 + $0x558] sm:$0xff]
    %v4761 = vld [vmem:[#allocation8 + $0x560] sm:$0xff]
    %v4762 = vld [vmem:[#allocation8 + $0x568] sm:$0xff]
    %v4763 = vld [vmem:[#allocation8 + $0x570] sm:$0xff]
    %v4764 = vld [vmem:[#allocation8 + $0x578] sm:$0xff]
    %v4765 = vld [vmem:[#allocation8 + $0x580] sm:$0xff]
    %v4766 = vld [vmem:[#allocation8 + $0x588] sm:$0xff]
    %v4767 = vld [vmem:[#allocation8 + $0x590] sm:$0xff]
    %v4768 = vld [vmem:[#allocation8 + $0x598] sm:$0xff]
    %v4769 = vld [vmem:[#allocation8 + $0x5a0] sm:$0xff]
    %v4770 = vld [vmem:[#allocation8 + $0x5a8] sm:$0xff]
    %v4771 = vld [vmem:[#allocation8 + $0x5b0] sm:$0xff]
    %v4772 = vld [vmem:[#allocation8 + $0x5b8] sm:$0xff]
    %v4773 = vld [vmem:[#allocation8 + $0x5c0] sm:$0xff]
    %v4774 = vld [vmem:[#allocation8 + $0x5c8] sm:$0xff]
    %v4775 = vld [vmem:[#allocation8 + $0x5d0] sm:$0xff]
    %v4776 = vld [vmem:[#allocation8 + $0x5d8] sm:$0xff]
    %v4777 = vld [vmem:[#allocation8 + $0x5e0] sm:$0xff]
    %v4778 = vld [vmem:[#allocation8 + $0x5e8] sm:$0xff]
    %v4779 = vld [vmem:[#allocation8 + $0x5f0] sm:$0xff]
    %v4780 = vld [vmem:[#allocation8 + $0x5f8] sm:$0xff]
    %v4781 = vld [vmem:[#allocation8 + $0x600] sm:$0xff]
    %v4782 = vld [vmem:[#allocation8 + $0x608] sm:$0xff]
    %v4783 = vld [vmem:[#allocation8 + $0x610] sm:$0xff]
    %v4784 = vld [vmem:[#allocation8 + $0x618] sm:$0xff]
    %v4785 = vld [vmem:[#allocation8 + $0x620] sm:$0xff]
    %v4786 = vld [vmem:[#allocation8 + $0x628] sm:$0xff]
    %v4787 = vld [vmem:[#allocation8 + $0x630] sm:$0xff]
    %v4788 = vld [vmem:[#allocation8 + $0x638] sm:$0xff]
    %v4789 = vld [vmem:[#allocation8 + $0x640] sm:$0xff]
    %v4790 = vld [vmem:[#allocation8 + $0x648] sm:$0xff]
    %v4791 = vld [vmem:[#allocation8 + $0x650] sm:$0xff]
    %v4792 = vld [vmem:[#allocation8 + $0x658] sm:$0xff]
    %v4793 = vld [vmem:[#allocation8 + $0x660] sm:$0xff]
    %v4794 = vld [vmem:[#allocation8 + $0x668] sm:$0xff]
    %v4795 = vld [vmem:[#allocation8 + $0x670] sm:$0xff]
    %v4796 = vld [vmem:[#allocation8 + $0x678] sm:$0xff]
    %v4797 = vld [vmem:[#allocation8 + $0x680] sm:$0xff]
    %v4798 = vld [vmem:[#allocation8 + $0x688] sm:$0xff]
    %v4799 = vld [vmem:[#allocation8 + $0x690] sm:$0xff]
    %v4800 = vld [vmem:[#allocation8 + $0x698] sm:$0xff]
    %v4801 = vld [vmem:[#allocation8 + $0x6a0] sm:$0xff]
    %v4802 = vld [vmem:[#allocation8 + $0x6a8] sm:$0xff]
    %v4803 = vld [vmem:[#allocation8 + $0x6b0] sm:$0xff]
    %v4804 = vld [vmem:[#allocation8 + $0x6b8] sm:$0xff]
    %v4805 = vld [vmem:[#allocation8 + $0x6c0] sm:$0xff]
    %v4806 = vld [vmem:[#allocation8 + $0x6c8] sm:$0xff]
    %v4807 = vld [vmem:[#allocation8 + $0x6d0] sm:$0xff]
    %v4808 = vld [vmem:[#allocation8 + $0x6d8] sm:$0xff]
    %v4809 = vld [vmem:[#allocation8 + $0x6e0] sm:$0xff]
    %v4810 = vld [vmem:[#allocation8 + $0x6e8] sm:$0xff]
    %v4811 = vld [vmem:[#allocation8 + $0x6f0] sm:$0xff]
    %v4812 = vld [vmem:[#allocation8 + $0x6f8] sm:$0xff]
    %v4813 = vld [vmem:[#allocation8 + $0x700] sm:$0xff]
    %v4814 = vld [vmem:[#allocation8 + $0x708] sm:$0xff]
    %v4815 = vld [vmem:[#allocation8 + $0x710] sm:$0xff]
    %v4816 = vld [vmem:[#allocation8 + $0x718] sm:$0xff]
    %v4817 = vld [vmem:[#allocation8 + $0x720] sm:$0xff]
    %v4818 = vld [vmem:[#allocation8 + $0x728] sm:$0xff]
    %v4819 = vld [vmem:[#allocation8 + $0x730] sm:$0xff]
    %v4820 = vld [vmem:[#allocation8 + $0x738] sm:$0xff]
    %v4821 = vld [vmem:[#allocation8 + $0x740] sm:$0xff]
    %v4822 = vld [vmem:[#allocation8 + $0x748] sm:$0xff]
    %v4823 = vld [vmem:[#allocation8 + $0x750] sm:$0xff]
    %v4824 = vld [vmem:[#allocation8 + $0x758] sm:$0xff]
    %v4825 = vld [vmem:[#allocation8 + $0x760] sm:$0xff]
    %v4826 = vld [vmem:[#allocation8 + $0x768] sm:$0xff]
    %v4827 = vld [vmem:[#allocation8 + $0x770] sm:$0xff]
    %v4828 = vld [vmem:[#allocation8 + $0x778] sm:$0xff]
    %v4829 = vld [vmem:[#allocation8 + $0x780] sm:$0xff]
    %v4830 = vld [vmem:[#allocation8 + $0x788] sm:$0xff]
    %v4831 = vld [vmem:[#allocation8 + $0x790] sm:$0xff]
    %v4832 = vld [vmem:[#allocation8 + $0x798] sm:$0xff]
    %v4833 = vld [vmem:[#allocation8 + $0x7a0] sm:$0xff]
    %v4834 = vld [vmem:[#allocation8 + $0x7a8] sm:$0xff]
    %v4835 = vld [vmem:[#allocation8 + $0x7b0] sm:$0xff]
    %v4836 = vld [vmem:[#allocation8 + $0x7b8] sm:$0xff]
    %v4837 = vld [vmem:[#allocation8 + $0x7c0] sm:$0xff]
    %v4838 = vld [vmem:[#allocation8 + $0x7c8] sm:$0xff]
    %v4839 = vld [vmem:[#allocation8 + $0x7d0] sm:$0xff]
    %v4840 = vld [vmem:[#allocation8 + $0x7d8] sm:$0xff]
    %v4841 = vld [vmem:[#allocation8 + $0x7e0] sm:$0xff]
    %v4842 = vld [vmem:[#allocation8 + $0x7e8] sm:$0xff]
    %v4843 = vld [vmem:[#allocation8 + $0x7f0] sm:$0xff]
    %v4844 = vld [vmem:[#allocation8 + $0x7f8] sm:$0xff]
    %v4845 = vld [vmem:[#allocation8 + $0x800] sm:$0xff]
    %v4846 = vld [vmem:[#allocation8 + $0x808] sm:$0xff]
    %v4847 = vld [vmem:[#allocation8 + $0x810] sm:$0xff]
    %v4848 = vld [vmem:[#allocation8 + $0x818] sm:$0xff]
    %v4849 = vld [vmem:[#allocation8 + $0x820] sm:$0xff]
    %v4850 = vld [vmem:[#allocation8 + $0x828] sm:$0xff]
    %v4851 = vld [vmem:[#allocation8 + $0x830] sm:$0xff]
    %v4852 = vld [vmem:[#allocation8 + $0x838] sm:$0xff]
    %v4853 = vld [vmem:[#allocation8 + $0x840] sm:$0xff]
    %v4854 = vld [vmem:[#allocation8 + $0x848] sm:$0xff]
    %v4855 = vld [vmem:[#allocation8 + $0x850] sm:$0xff]
    %v4856 = vld [vmem:[#allocation8 + $0x858] sm:$0xff]
    %v4857 = vld [vmem:[#allocation8 + $0x860] sm:$0xff]
    %v4858 = vld [vmem:[#allocation8 + $0x868] sm:$0xff]
    %v4859 = vld [vmem:[#allocation8 + $0x870] sm:$0xff]
    %v4860 = vld [vmem:[#allocation8 + $0x878] sm:$0xff]
    %v4861 = vld [vmem:[#allocation8 + $0x880] sm:$0xff]
    %v4862 = vld [vmem:[#allocation8 + $0x888] sm:$0xff]
    %v4863 = vld [vmem:[#allocation8 + $0x890] sm:$0xff]
    %v4864 = vld [vmem:[#allocation8 + $0x898] sm:$0xff]
    %v4865 = vld [vmem:[#allocation8 + $0x8a0] sm:$0xff]
    %v4866 = vld [vmem:[#allocation8 + $0x8a8] sm:$0xff]
    %v4867 = vld [vmem:[#allocation8 + $0x8b0] sm:$0xff]
    %v4868 = vld [vmem:[#allocation8 + $0x8b8] sm:$0xff]
    %v4869 = vld [vmem:[#allocation8 + $0x8c0] sm:$0xff]
    %v4870 = vld [vmem:[#allocation8 + $0x8c8] sm:$0xff]
    %v4871 = vld [vmem:[#allocation8 + $0x8d0] sm:$0xff]
    %v4872 = vld [vmem:[#allocation8 + $0x8d8] sm:$0xff]
    %v4873 = vld [vmem:[#allocation8 + $0x8e0] sm:$0xff]
    %v4874 = vld [vmem:[#allocation8 + $0x8e8] sm:$0xff]
    %v4875 = vld [vmem:[#allocation8 + $0x8f0] sm:$0xff]
    %v4876 = vld [vmem:[#allocation8 + $0x8f8] sm:$0xff]
    %v4877 = vperm.slane %v107, 2
    %v4878 = vperm.slane %v107, 6
    %v4879 = vperm.slane %v108, 2
    %v4880 = vperm.slane %v108, 6
    %v4881 = vperm.slane %v109, 2
    %v4882 = vperm.slane %v109, 6
    %v4889 = vperm.slane %v4877, 2
    %v4890 = vperm.slane %v4878, 2
    %v4891 = vperm.slane %v4879, 2
    %v4892 = vperm.slane %v4880, 2
    %v4893 = vperm.slane %v4881, 2
    %v4894 = vperm.slane %v4882, 2
    %v5183 = vunpack.c.l.b16 %v4589
    %v5184 = vunpack.c.h.b16 %v4589
    %v5185 = vunpack.c.l.b16 %v4590
    %v5186 = vunpack.c.h.b16 %v4590
    %v5187 = vunpack.c.l.b16 %v4591
    %v5188 = vunpack.c.h.b16 %v4591
    %v5189 = vunpack.c.l.b16 %v4592
    %v5190 = vunpack.c.h.b16 %v4592
    %v5191 = vunpack.c.l.b16 %v4593
    %v5192 = vunpack.c.h.b16 %v4593
    %v5193 = vunpack.c.l.b16 %v4594
    %v5194 = vunpack.c.h.b16 %v4594
    %v5195 = vunpack.c.l.b16 %v4595
    %v5196 = vunpack.c.h.b16 %v4595
    %v5197 = vunpack.c.l.b16 %v4596
    %v5198 = vunpack.c.h.b16 %v4596
    %v5199 = vunpack.c.l.b16 %v4597
    %v5200 = vunpack.c.h.b16 %v4597
    %v5201 = vunpack.c.l.b16 %v4598
    %v5202 = vunpack.c.h.b16 %v4598
    %v5203 = vunpack.c.l.b16 %v4599
    %v5204 = vunpack.c.h.b16 %v4599
    %v5205 = vunpack.c.l.b16 %v4600
    %v5206 = vunpack.c.h.b16 %v4600
    %v5207 = vunpack.c.l.b16 %v4601
    %v5208 = vunpack.c.h.b16 %v4601
    %v5209 = vunpack.c.l.b16 %v4602
    %v5210 = vunpack.c.h.b16 %v4602
    %v5211 = vunpack.c.l.b16 %v4603
    %v5212 = vunpack.c.h.b16 %v4603
    %v5213 = vunpack.c.l.b16 %v4604
    %v5214 = vunpack.c.h.b16 %v4604
    %v5215 = vunpack.c.l.b16 %v4605
    %v5216 = vunpack.c.h.b16 %v4605
    %v5217 = vunpack.c.l.b16 %v4606
    %v5218 = vunpack.c.h.b16 %v4606
    %v5219 = vunpack.c.l.b16 %v4607
    %v5220 = vunpack.c.h.b16 %v4607
    %v5221 = vunpack.c.l.b16 %v4608
    %v5222 = vunpack.c.h.b16 %v4608
    %v5223 = vunpack.c.l.b16 %v4609
    %v5224 = vunpack.c.h.b16 %v4609
    %v5225 = vunpack.c.l.b16 %v4610
    %v5226 = vunpack.c.h.b16 %v4610
    %v5227 = vunpack.c.l.b16 %v4611
    %v5228 = vunpack.c.h.b16 %v4611
    %v5229 = vunpack.c.l.b16 %v4612
    %v5230 = vunpack.c.h.b16 %v4612
    %v5231 = vunpack.c.l.b16 %v4613
    %v5232 = vunpack.c.h.b16 %v4613
    %v5233 = vunpack.c.l.b16 %v4614
    %v5234 = vunpack.c.h.b16 %v4614
    %v5235 = vunpack.c.l.b16 %v4615
    %v5236 = vunpack.c.h.b16 %v4615
    %v5237 = vunpack.c.l.b16 %v4616
    %v5238 = vunpack.c.h.b16 %v4616
    %v5239 = vunpack.c.l.b16 %v4617
    %v5240 = vunpack.c.h.b16 %v4617
    %v5241 = vunpack.c.l.b16 %v4618
    %v5242 = vunpack.c.h.b16 %v4618
    %v5243 = vunpack.c.l.b16 %v4619
    %v5244 = vunpack.c.h.b16 %v4619
    %v5245 = vunpack.c.l.b16 %v4620
    %v5246 = vunpack.c.h.b16 %v4620
    %v5247 = vunpack.c.l.b16 %v4621
    %v5248 = vunpack.c.h.b16 %v4621
    %v5249 = vunpack.c.l.b16 %v4622
    %v5250 = vunpack.c.h.b16 %v4622
    %v5251 = vunpack.c.l.b16 %v4623
    %v5252 = vunpack.c.h.b16 %v4623
    %v5253 = vunpack.c.l.b16 %v4624
    %v5254 = vunpack.c.h.b16 %v4624
    %v5255 = vunpack.c.l.b16 %v4625
    %v5256 = vunpack.c.h.b16 %v4625
    %v5257 = vunpack.c.l.b16 %v4626
    %v5258 = vunpack.c.h.b16 %v4626
    %v5259 = vunpack.c.l.b16 %v4627
    %v5260 = vunpack.c.h.b16 %v4627
    %v5261 = vunpack.c.l.b16 %v4628
    %v5262 = vunpack.c.h.b16 %v4628
    %v5263 = vunpack.c.l.b16 %v4629
    %v5264 = vunpack.c.h.b16 %v4629
    %v5265 = vunpack.c.l.b16 %v4630
    %v5266 = vunpack.c.h.b16 %v4630
    %v5267 = vunpack.c.l.b16 %v4631
    %v5268 = vunpack.c.h.b16 %v4631
    %v5269 = vunpack.c.l.b16 %v4632
    %v5270 = vunpack.c.h.b16 %v4632
    %v5271 = vunpack.c.l.b16 %v4633
    %v5272 = vunpack.c.h.b16 %v4633
    %v5273 = vunpack.c.l.b16 %v4634
    %v5274 = vunpack.c.h.b16 %v4634
    %v5275 = vunpack.c.l.b16 %v4635
    %v5276 = vunpack.c.h.b16 %v4635
    %v5277 = vunpack.c.l.b16 %v4636
    %v5278 = vunpack.c.h.b16 %v4636
    %v5279 = vunpack.c.l.b16 %v4637
    %v5280 = vunpack.c.h.b16 %v4637
    %v5281 = vunpack.c.l.b16 %v4638
    %v5282 = vunpack.c.h.b16 %v4638
    %v5283 = vunpack.c.l.b16 %v4639
    %v5284 = vunpack.c.h.b16 %v4639
    %v5285 = vunpack.c.l.b16 %v4640
    %v5286 = vunpack.c.h.b16 %v4640
    %v5287 = vunpack.c.l.b16 %v4641
    %v5288 = vunpack.c.h.b16 %v4641
    %v5289 = vunpack.c.l.b16 %v4642
    %v5290 = vunpack.c.h.b16 %v4642
    %v5291 = vunpack.c.l.b16 %v4643
    %v5292 = vunpack.c.h.b16 %v4643
    %v5293 = vunpack.c.l.b16 %v4644
    %v5294 = vunpack.c.h.b16 %v4644
    %v5295 = vunpack.c.l.b16 %v4645
    %v5296 = vunpack.c.h.b16 %v4645
    %v5297 = vunpack.c.l.b16 %v4646
    %v5298 = vunpack.c.h.b16 %v4646
    %v5299 = vunpack.c.l.b16 %v4647
    %v5300 = vunpack.c.h.b16 %v4647
    %v5301 = vunpack.c.l.b16 %v4648
    %v5302 = vunpack.c.h.b16 %v4648
    %v5303 = vunpack.c.l.b16 %v4649
    %v5304 = vunpack.c.h.b16 %v4649
    %v5305 = vunpack.c.l.b16 %v4650
    %v5306 = vunpack.c.h.b16 %v4650
    %v5307 = vunpack.c.l.b16 %v4651
    %v5308 = vunpack.c.h.b16 %v4651
    %v5309 = vunpack.c.l.b16 %v4652
    %v5310 = vunpack.c.h.b16 %v4652
    %v5311 = vunpack.c.l.b16 %v4653
    %v5312 = vunpack.c.h.b16 %v4653
    %v5313 = vunpack.c.l.b16 %v4654
    %v5314 = vunpack.c.h.b16 %v4654
    %v5315 = vunpack.c.l.b16 %v4655
    %v5316 = vunpack.c.h.b16 %v4655
    %v5317 = vunpack.c.l.b16 %v4656
    %v5318 = vunpack.c.h.b16 %v4656
    %v5319 = vunpack.c.l.b16 %v4657
    %v5320 = vunpack.c.h.b16 %v4657
    %v5321 = vunpack.c.l.b16 %v4658
    %v5322 = vunpack.c.h.b16 %v4658
    %v5323 = vunpack.c.l.b16 %v4659
    %v5324 = vunpack.c.h.b16 %v4659
    %v5325 = vunpack.c.l.b16 %v4660
    %v5326 = vunpack.c.h.b16 %v4660
    %v5327 = vunpack.c.l.b16 %v4661
    %v5328 = vunpack.c.h.b16 %v4661
    %v5329 = vunpack.c.l.b16 %v4662
    %v5330 = vunpack.c.h.b16 %v4662
    %v5331 = vunpack.c.l.b16 %v4663
    %v5332 = vunpack.c.h.b16 %v4663
    %v5333 = vunpack.c.l.b16 %v4664
    %v5334 = vunpack.c.h.b16 %v4664
    %v5335 = vunpack.c.l.b16 %v4665
    %v5336 = vunpack.c.h.b16 %v4665
    %v5337 = vunpack.c.l.b16 %v4666
    %v5338 = vunpack.c.h.b16 %v4666
    %v5339 = vunpack.c.l.b16 %v4667
    %v5340 = vunpack.c.h.b16 %v4667
    %v5341 = vunpack.c.l.b16 %v4668
    %v5342 = vunpack.c.h.b16 %v4668
    %v5343 = vunpack.c.l.b16 %v4669
    %v5344 = vunpack.c.h.b16 %v4669
    %v5345 = vunpack.c.l.b16 %v4670
    %v5346 = vunpack.c.h.b16 %v4670
    %v5347 = vunpack.c.l.b16 %v4671
    %v5348 = vunpack.c.h.b16 %v4671
    %v5349 = vunpack.c.l.b16 %v4672
    %v5350 = vunpack.c.h.b16 %v4672
    %v5351 = vunpack.c.l.b16 %v4673
    %v5352 = vunpack.c.h.b16 %v4673
    %v5353 = vunpack.c.l.b16 %v4674
    %v5354 = vunpack.c.h.b16 %v4674
    %v5355 = vunpack.c.l.b16 %v4675
    %v5356 = vunpack.c.h.b16 %v4675
    %v5357 = vunpack.c.l.b16 %v4676
    %v5358 = vunpack.c.h.b16 %v4676
    %v5359 = vunpack.c.l.b16 %v4677
    %v5360 = vunpack.c.h.b16 %v4677
    %v5361 = vunpack.c.l.b16 %v4678
    %v5362 = vunpack.c.h.b16 %v4678
    %v5363 = vunpack.c.l.b16 %v4679
    %v5364 = vunpack.c.h.b16 %v4679
    %v5365 = vunpack.c.l.b16 %v4680
    %v5366 = vunpack.c.h.b16 %v4680
    %v5367 = vunpack.c.l.b16 %v4681
    %v5368 = vunpack.c.h.b16 %v4681
    %v5369 = vunpack.c.l.b16 %v4682
    %v5370 = vunpack.c.h.b16 %v4682
    %v5371 = vunpack.c.l.b16 %v4683
    %v5372 = vunpack.c.h.b16 %v4683
    %v5373 = vunpack.c.l.b16 %v4684
    %v5374 = vunpack.c.h.b16 %v4684
    %v5375 = vunpack.c.l.b16 %v4685
    %v5376 = vunpack.c.h.b16 %v4685
    %v5377 = vunpack.c.l.b16 %v4686
    %v5378 = vunpack.c.h.b16 %v4686
    %v5379 = vunpack.c.l.b16 %v4687
    %v5380 = vunpack.c.h.b16 %v4687
    %v5381 = vunpack.c.l.b16 %v4688
    %v5382 = vunpack.c.h.b16 %v4688
    %v5383 = vunpack.c.l.b16 %v4689
    %v5384 = vunpack.c.h.b16 %v4689
    %v5385 = vunpack.c.l.b16 %v4690
    %v5386 = vunpack.c.h.b16 %v4690
    %v5387 = vunpack.c.l.b16 %v4691
    %v5388 = vunpack.c.h.b16 %v4691
    %v5389 = vunpack.c.l.b16 %v4692
    %v5390 = vunpack.c.h.b16 %v4692
    %v5391 = vunpack.c.l.b16 %v4693
    %v5392 = vunpack.c.h.b16 %v4693
    %v5393 = vunpack.c.l.b16 %v4694
    %v5394 = vunpack.c.h.b16 %v4694
    %v5395 = vunpack.c.l.b16 %v4695
    %v5396 = vunpack.c.h.b16 %v4695
    %v5397 = vunpack.c.l.b16 %v4696
    %v5398 = vunpack.c.h.b16 %v4696
    %v5399 = vunpack.c.l.b16 %v4697
    %v5400 = vunpack.c.h.b16 %v4697
    %v5401 = vunpack.c.l.b16 %v4698
    %v5402 = vunpack.c.h.b16 %v4698
    %v5403 = vunpack.c.l.b16 %v4699
    %v5404 = vunpack.c.h.b16 %v4699
    %v5405 = vunpack.c.l.b16 %v4700
    %v5406 = vunpack.c.h.b16 %v4700
    %v5407 = vunpack.c.l.b16 %v4701
    %v5408 = vunpack.c.h.b16 %v4701
    %v5409 = vunpack.c.l.b16 %v4702
    %v5410 = vunpack.c.h.b16 %v4702
    %v5411 = vunpack.c.l.b16 %v4703
    %v5412 = vunpack.c.h.b16 %v4703
    %v5413 = vunpack.c.l.b16 %v4704
    %v5414 = vunpack.c.h.b16 %v4704
    %v5415 = vunpack.c.l.b16 %v4705
    %v5416 = vunpack.c.h.b16 %v4705
    %v5417 = vunpack.c.l.b16 %v4706
    %v5418 = vunpack.c.h.b16 %v4706
    %v5419 = vunpack.c.l.b16 %v4707
    %v5420 = vunpack.c.h.b16 %v4707
    %v5421 = vunpack.c.l.b16 %v4708
    %v5422 = vunpack.c.h.b16 %v4708
    %v5423 = vunpack.c.l.b16 %v4709
    %v5424 = vunpack.c.h.b16 %v4709
    %v5425 = vunpack.c.l.b16 %v4710
    %v5426 = vunpack.c.h.b16 %v4710
    %v5427 = vunpack.c.l.b16 %v4711
    %v5428 = vunpack.c.h.b16 %v4711
    %v5429 = vunpack.c.l.b16 %v4712
    %v5430 = vunpack.c.h.b16 %v4712
    %v5431 = vunpack.c.l.b16 %v4713
    %v5432 = vunpack.c.h.b16 %v4713
    %v5433 = vunpack.c.l.b16 %v4714
    %v5434 = vunpack.c.h.b16 %v4714
    %v5435 = vunpack.c.l.b16 %v4715
    %v5436 = vunpack.c.h.b16 %v4715
    %v5437 = vunpack.c.l.b16 %v4716
    %v5438 = vunpack.c.h.b16 %v4716
    %v5439 = vunpack.c.l.b16 %v4717
    %v5440 = vunpack.c.h.b16 %v4717
    %v5441 = vunpack.c.l.b16 %v4718
    %v5442 = vunpack.c.h.b16 %v4718
    %v5443 = vunpack.c.l.b16 %v4719
    %v5444 = vunpack.c.h.b16 %v4719
    %v5445 = vunpack.c.l.b16 %v4720
    %v5446 = vunpack.c.h.b16 %v4720
    %v5447 = vunpack.c.l.b16 %v4721
    %v5448 = vunpack.c.h.b16 %v4721
    %v5449 = vunpack.c.l.b16 %v4722
    %v5450 = vunpack.c.h.b16 %v4722
    %v5451 = vunpack.c.l.b16 %v4723
    %v5452 = vunpack.c.h.b16 %v4723
    %v5453 = vunpack.c.l.b16 %v4724
    %v5454 = vunpack.c.h.b16 %v4724
    %v5455 = vunpack.c.l.b16 %v4725
    %v5456 = vunpack.c.h.b16 %v4725
    %v5457 = vunpack.c.l.b16 %v4726
    %v5458 = vunpack.c.h.b16 %v4726
    %v5459 = vunpack.c.l.b16 %v4727
    %v5460 = vunpack.c.h.b16 %v4727
    %v5461 = vunpack.c.l.b16 %v4728
    %v5462 = vunpack.c.h.b16 %v4728
    %v5463 = vunpack.c.l.b16 %v4729
    %v5464 = vunpack.c.h.b16 %v4729
    %v5465 = vunpack.c.l.b16 %v4730
    %v5466 = vunpack.c.h.b16 %v4730
    %v5467 = vunpack.c.l.b16 %v4731
    %v5468 = vunpack.c.h.b16 %v4731
    %v5469 = vunpack.c.l.b16 %v4732
    %v5470 = vunpack.c.h.b16 %v4732
    %v5471 = vunpack.c.l.b16 %v4733
    %v5472 = vunpack.c.h.b16 %v4733
    %v5473 = vunpack.c.l.b16 %v4734
    %v5474 = vunpack.c.h.b16 %v4734
    %v5475 = vunpack.c.l.b16 %v4735
    %v5476 = vunpack.c.h.b16 %v4735
    %v5477 = vunpack.c.l.b16 %v4736
    %v5478 = vunpack.c.h.b16 %v4736
    %v5479 = vunpack.c.l.b16 %v4737
    %v5480 = vunpack.c.h.b16 %v4737
    %v5481 = vunpack.c.l.b16 %v4738
    %v5482 = vunpack.c.h.b16 %v4738
    %v5483 = vunpack.c.l.b16 %v4739
    %v5484 = vunpack.c.h.b16 %v4739
    %v5485 = vunpack.c.l.b16 %v4740
    %v5486 = vunpack.c.h.b16 %v4740
    %v5487 = vunpack.c.l.b16 %v4741
    %v5488 = vunpack.c.h.b16 %v4741
    %v5489 = vunpack.c.l.b16 %v4742
    %v5490 = vunpack.c.h.b16 %v4742
    %v5491 = vunpack.c.l.b16 %v4743
    %v5492 = vunpack.c.h.b16 %v4743
    %v5493 = vunpack.c.l.b16 %v4744
    %v5494 = vunpack.c.h.b16 %v4744
    %v5495 = vunpack.c.l.b16 %v4745
    %v5496 = vunpack.c.h.b16 %v4745
    %v5497 = vunpack.c.l.b16 %v4746
    %v5498 = vunpack.c.h.b16 %v4746
    %v5499 = vunpack.c.l.b16 %v4747
    %v5500 = vunpack.c.h.b16 %v4747
    %v5501 = vunpack.c.l.b16 %v4748
    %v5502 = vunpack.c.h.b16 %v4748
    %v5503 = vunpack.c.l.b16 %v4749
    %v5504 = vunpack.c.h.b16 %v4749
    %v5505 = vunpack.c.l.b16 %v4750
    %v5506 = vunpack.c.h.b16 %v4750
    %v5507 = vunpack.c.l.b16 %v4751
    %v5508 = vunpack.c.h.b16 %v4751
    %v5509 = vunpack.c.l.b16 %v4752
    %v5510 = vunpack.c.h.b16 %v4752
    %v5511 = vunpack.c.l.b16 %v4753
    %v5512 = vunpack.c.h.b16 %v4753
    %v5513 = vunpack.c.l.b16 %v4754
    %v5514 = vunpack.c.h.b16 %v4754
    %v5515 = vunpack.c.l.b16 %v4755
    %v5516 = vunpack.c.h.b16 %v4755
    %v5517 = vunpack.c.l.b16 %v4756
    %v5518 = vunpack.c.h.b16 %v4756
    %v5519 = vunpack.c.l.b16 %v4757
    %v5520 = vunpack.c.h.b16 %v4757
    %v5521 = vunpack.c.l.b16 %v4758
    %v5522 = vunpack.c.h.b16 %v4758
    %v5523 = vunpack.c.l.b16 %v4759
    %v5524 = vunpack.c.h.b16 %v4759
    %v5525 = vunpack.c.l.b16 %v4760
    %v5526 = vunpack.c.h.b16 %v4760
    %v5527 = vunpack.c.l.b16 %v4761
    %v5528 = vunpack.c.h.b16 %v4761
    %v5529 = vunpack.c.l.b16 %v4762
    %v5530 = vunpack.c.h.b16 %v4762
    %v5531 = vunpack.c.l.b16 %v4763
    %v5532 = vunpack.c.h.b16 %v4763
    %v5533 = vunpack.c.l.b16 %v4764
    %v5534 = vunpack.c.h.b16 %v4764
    %v5535 = vunpack.c.l.b16 %v4765
    %v5536 = vunpack.c.h.b16 %v4765
    %v5537 = vunpack.c.l.b16 %v4766
    %v5538 = vunpack.c.h.b16 %v4766
    %v5539 = vunpack.c.l.b16 %v4767
    %v5540 = vunpack.c.h.b16 %v4767
    %v5541 = vunpack.c.l.b16 %v4768
    %v5542 = vunpack.c.h.b16 %v4768
    %v5543 = vunpack.c.l.b16 %v4769
    %v5544 = vunpack.c.h.b16 %v4769
    %v5545 = vunpack.c.l.b16 %v4770
    %v5546 = vunpack.c.h.b16 %v4770
    %v5547 = vunpack.c.l.b16 %v4771
    %v5548 = vunpack.c.h.b16 %v4771
    %v5549 = vunpack.c.l.b16 %v4772
    %v5550 = vunpack.c.h.b16 %v4772
    %v5551 = vunpack.c.l.b16 %v4773
    %v5552 = vunpack.c.h.b16 %v4773
    %v5553 = vunpack.c.l.b16 %v4774
    %v5554 = vunpack.c.h.b16 %v4774
    %v5555 = vunpack.c.l.b16 %v4775
    %v5556 = vunpack.c.h.b16 %v4775
    %v5557 = vunpack.c.l.b16 %v4776
    %v5558 = vunpack.c.h.b16 %v4776
    %v5559 = vunpack.c.l.b16 %v4777
    %v5560 = vunpack.c.h.b16 %v4777
    %v5561 = vunpack.c.l.b16 %v4778
    %v5562 = vunpack.c.h.b16 %v4778
    %v5563 = vunpack.c.l.b16 %v4779
    %v5564 = vunpack.c.h.b16 %v4779
    %v5565 = vunpack.c.l.b16 %v4780
    %v5566 = vunpack.c.h.b16 %v4780
    %v5567 = vunpack.c.l.b16 %v4781
    %v5568 = vunpack.c.h.b16 %v4781
    %v5569 = vunpack.c.l.b16 %v4782
    %v5570 = vunpack.c.h.b16 %v4782
    %v5571 = vunpack.c.l.b16 %v4783
    %v5572 = vunpack.c.h.b16 %v4783
    %v5573 = vunpack.c.l.b16 %v4784
    %v5574 = vunpack.c.h.b16 %v4784
    %v5575 = vunpack.c.l.b16 %v4785
    %v5576 = vunpack.c.h.b16 %v4785
    %v5577 = vunpack.c.l.b16 %v4786
    %v5578 = vunpack.c.h.b16 %v4786
    %v5579 = vunpack.c.l.b16 %v4787
    %v5580 = vunpack.c.h.b16 %v4787
    %v5581 = vunpack.c.l.b16 %v4788
    %v5582 = vunpack.c.h.b16 %v4788
    %v5583 = vunpack.c.l.b16 %v4789
    %v5584 = vunpack.c.h.b16 %v4789
    %v5585 = vunpack.c.l.b16 %v4790
    %v5586 = vunpack.c.h.b16 %v4790
    %v5587 = vunpack.c.l.b16 %v4791
    %v5588 = vunpack.c.h.b16 %v4791
    %v5589 = vunpack.c.l.b16 %v4792
    %v5590 = vunpack.c.h.b16 %v4792
    %v5591 = vunpack.c.l.b16 %v4793
    %v5592 = vunpack.c.h.b16 %v4793
    %v5593 = vunpack.c.l.b16 %v4794
    %v5594 = vunpack.c.h.b16 %v4794
    %v5595 = vunpack.c.l.b16 %v4795
    %v5596 = vunpack.c.h.b16 %v4795
    %v5597 = vunpack.c.l.b16 %v4796
    %v5598 = vunpack.c.h.b16 %v4796
    %v5599 = vunpack.c.l.b16 %v4797
    %v5600 = vunpack.c.h.b16 %v4797
    %v5601 = vunpack.c.l.b16 %v4798
    %v5602 = vunpack.c.h.b16 %v4798
    %v5603 = vunpack.c.l.b16 %v4799
    %v5604 = vunpack.c.h.b16 %v4799
    %v5605 = vunpack.c.l.b16 %v4800
    %v5606 = vunpack.c.h.b16 %v4800
    %v5607 = vunpack.c.l.b16 %v4801
    %v5608 = vunpack.c.h.b16 %v4801
    %v5609 = vunpack.c.l.b16 %v4802
    %v5610 = vunpack.c.h.b16 %v4802
    %v5611 = vunpack.c.l.b16 %v4803
    %v5612 = vunpack.c.h.b16 %v4803
    %v5613 = vunpack.c.l.b16 %v4804
    %v5614 = vunpack.c.h.b16 %v4804
    %v5615 = vunpack.c.l.b16 %v4805
    %v5616 = vunpack.c.h.b16 %v4805
    %v5617 = vunpack.c.l.b16 %v4806
    %v5618 = vunpack.c.h.b16 %v4806
    %v5619 = vunpack.c.l.b16 %v4807
    %v5620 = vunpack.c.h.b16 %v4807
    %v5621 = vunpack.c.l.b16 %v4808
    %v5622 = vunpack.c.h.b16 %v4808
    %v5623 = vunpack.c.l.b16 %v4809
    %v5624 = vunpack.c.h.b16 %v4809
    %v5625 = vunpack.c.l.b16 %v4810
    %v5626 = vunpack.c.h.b16 %v4810
    %v5627 = vunpack.c.l.b16 %v4811
    %v5628 = vunpack.c.h.b16 %v4811
    %v5629 = vunpack.c.l.b16 %v4812
    %v5630 = vunpack.c.h.b16 %v4812
    %v5631 = vunpack.c.l.b16 %v4813
    %v5632 = vunpack.c.h.b16 %v4813
    %v5633 = vunpack.c.l.b16 %v4814
    %v5634 = vunpack.c.h.b16 %v4814
    %v5635 = vunpack.c.l.b16 %v4815
    %v5636 = vunpack.c.h.b16 %v4815
    %v5637 = vunpack.c.l.b16 %v4816
    %v5638 = vunpack.c.h.b16 %v4816
    %v5639 = vunpack.c.l.b16 %v4817
    %v5640 = vunpack.c.h.b16 %v4817
    %v5641 = vunpack.c.l.b16 %v4818
    %v5642 = vunpack.c.h.b16 %v4818
    %v5643 = vunpack.c.l.b16 %v4819
    %v5644 = vunpack.c.h.b16 %v4819
    %v5645 = vunpack.c.l.b16 %v4820
    %v5646 = vunpack.c.h.b16 %v4820
    %v5647 = vunpack.c.l.b16 %v4821
    %v5648 = vunpack.c.h.b16 %v4821
    %v5649 = vunpack.c.l.b16 %v4822
    %v5650 = vunpack.c.h.b16 %v4822
    %v5651 = vunpack.c.l.b16 %v4823
    %v5652 = vunpack.c.h.b16 %v4823
    %v5653 = vunpack.c.l.b16 %v4824
    %v5654 = vunpack.c.h.b16 %v4824
    %v5655 = vunpack.c.l.b16 %v4825
    %v5656 = vunpack.c.h.b16 %v4825
    %v5657 = vunpack.c.l.b16 %v4826
    %v5658 = vunpack.c.h.b16 %v4826
    %v5659 = vunpack.c.l.b16 %v4827
    %v5660 = vunpack.c.h.b16 %v4827
    %v5661 = vunpack.c.l.b16 %v4828
    %v5662 = vunpack.c.h.b16 %v4828
    %v5663 = vunpack.c.l.b16 %v4829
    %v5664 = vunpack.c.h.b16 %v4829
    %v5665 = vunpack.c.l.b16 %v4830
    %v5666 = vunpack.c.h.b16 %v4830
    %v5667 = vunpack.c.l.b16 %v4831
    %v5668 = vunpack.c.h.b16 %v4831
    %v5669 = vunpack.c.l.b16 %v4832
    %v5670 = vunpack.c.h.b16 %v4832
    %v5671 = vunpack.c.l.b16 %v4833
    %v5672 = vunpack.c.h.b16 %v4833
    %v5673 = vunpack.c.l.b16 %v4834
    %v5674 = vunpack.c.h.b16 %v4834
    %v5675 = vunpack.c.l.b16 %v4835
    %v5676 = vunpack.c.h.b16 %v4835
    %v5677 = vunpack.c.l.b16 %v4836
    %v5678 = vunpack.c.h.b16 %v4836
    %v5679 = vunpack.c.l.b16 %v4837
    %v5680 = vunpack.c.h.b16 %v4837
    %v5681 = vunpack.c.l.b16 %v4838
    %v5682 = vunpack.c.h.b16 %v4838
    %v5683 = vunpack.c.l.b16 %v4839
    %v5684 = vunpack.c.h.b16 %v4839
    %v5685 = vunpack.c.l.b16 %v4840
    %v5686 = vunpack.c.h.b16 %v4840
    %v5687 = vunpack.c.l.b16 %v4841
    %v5688 = vunpack.c.h.b16 %v4841
    %v5689 = vunpack.c.l.b16 %v4842
    %v5690 = vunpack.c.h.b16 %v4842
    %v5691 = vunpack.c.l.b16 %v4843
    %v5692 = vunpack.c.h.b16 %v4843
    %v5693 = vunpack.c.l.b16 %v4844
    %v5694 = vunpack.c.h.b16 %v4844
    %v5695 = vunpack.c.l.b16 %v4845
    %v5696 = vunpack.c.h.b16 %v4845
    %v5697 = vunpack.c.l.b16 %v4846
    %v5698 = vunpack.c.h.b16 %v4846
    %v5699 = vunpack.c.l.b16 %v4847
    %v5700 = vunpack.c.h.b16 %v4847
    %v5701 = vunpack.c.l.b16 %v4848
    %v5702 = vunpack.c.h.b16 %v4848
    %v5703 = vunpack.c.l.b16 %v4849
    %v5704 = vunpack.c.h.b16 %v4849
    %v5705 = vunpack.c.l.b16 %v4850
    %v5706 = vunpack.c.h.b16 %v4850
    %v5707 = vunpack.c.l.b16 %v4851
    %v5708 = vunpack.c.h.b16 %v4851
    %v5709 = vunpack.c.l.b16 %v4852
    %v5710 = vunpack.c.h.b16 %v4852
    %v5711 = vunpack.c.l.b16 %v4853
    %v5712 = vunpack.c.h.b16 %v4853
    %v5713 = vunpack.c.l.b16 %v4854
    %v5714 = vunpack.c.h.b16 %v4854
    %v5715 = vunpack.c.l.b16 %v4855
    %v5716 = vunpack.c.h.b16 %v4855
    %v5717 = vunpack.c.l.b16 %v4856
    %v5718 = vunpack.c.h.b16 %v4856
    %v5719 = vunpack.c.l.b16 %v4857
    %v5720 = vunpack.c.h.b16 %v4857
    %v5721 = vunpack.c.l.b16 %v4858
    %v5722 = vunpack.c.h.b16 %v4858
    %v5723 = vunpack.c.l.b16 %v4859
    %v5724 = vunpack.c.h.b16 %v4859
    %v5725 = vunpack.c.l.b16 %v4860
    %v5726 = vunpack.c.h.b16 %v4860
    %v5727 = vunpack.c.l.b16 %v4861
    %v5728 = vunpack.c.h.b16 %v4861
    %v5729 = vunpack.c.l.b16 %v4862
    %v5730 = vunpack.c.h.b16 %v4862
    %v5731 = vunpack.c.l.b16 %v4863
    %v5732 = vunpack.c.h.b16 %v4863
    %v5733 = vunpack.c.l.b16 %v4864
    %v5734 = vunpack.c.h.b16 %v4864
    %v5735 = vunpack.c.l.b16 %v4865
    %v5736 = vunpack.c.h.b16 %v4865
    %v5737 = vunpack.c.l.b16 %v4866
    %v5738 = vunpack.c.h.b16 %v4866
    %v5739 = vunpack.c.l.b16 %v4867
    %v5740 = vunpack.c.h.b16 %v4867
    %v5741 = vunpack.c.l.b16 %v4868
    %v5742 = vunpack.c.h.b16 %v4868
    %v5743 = vunpack.c.l.b16 %v4869
    %v5744 = vunpack.c.h.b16 %v4869
    %v5745 = vunpack.c.l.b16 %v4870
    %v5746 = vunpack.c.h.b16 %v4870
    %v5747 = vunpack.c.l.b16 %v4871
    %v5748 = vunpack.c.h.b16 %v4871
    %v5749 = vunpack.c.l.b16 %v4872
    %v5750 = vunpack.c.h.b16 %v4872
    %v5751 = vunpack.c.l.b16 %v4873
    %v5752 = vunpack.c.h.b16 %v4873
    %v5753 = vunpack.c.l.b16 %v4874
    %v5754 = vunpack.c.h.b16 %v4874
    %v5755 = vunpack.c.l.b16 %v4875
    %v5756 = vunpack.c.h.b16 %v4875
    %v5757 = vunpack.c.l.b16 %v4876
    %v5758 = vunpack.c.h.b16 %v4876
    %v5759 = vpack.c.b16 %v5189, %v5183
    %v5760 = vpack.c.b16 %v5190, %v5184
    %v5761 = vpack.c.b16 %v5191, %v5185
    %v5762 = vpack.c.b16 %v5192, %v5186
    %v5763 = vpack.c.b16 %v5193, %v5187
    %v5764 = vpack.c.b16 %v5194, %v5188
    %v5765 = vpack.c.b16 %v5201, %v5195
    %v5766 = vpack.c.b16 %v5202, %v5196
    %v5767 = vpack.c.b16 %v5203, %v5197
    %v5768 = vpack.c.b16 %v5204, %v5198
    %v5769 = vpack.c.b16 %v5205, %v5199
    %v5770 = vpack.c.b16 %v5206, %v5200
    %v5771 = vpack.c.b16 %v5213, %v5207
    %v5772 = vpack.c.b16 %v5214, %v5208
    %v5773 = vpack.c.b16 %v5215, %v5209
    %v5774 = vpack.c.b16 %v5216, %v5210
    %v5775 = vpack.c.b16 %v5217, %v5211
    %v5776 = vpack.c.b16 %v5218, %v5212
    %v5777 = vpack.c.b16 %v5225, %v5219
    %v5778 = vpack.c.b16 %v5226, %v5220
    %v5779 = vpack.c.b16 %v5227, %v5221
    %v5780 = vpack.c.b16 %v5228, %v5222
    %v5781 = vpack.c.b16 %v5229, %v5223
    %v5782 = vpack.c.b16 %v5230, %v5224
    %v5783 = vpack.c.b16 %v5237, %v5231
    %v5784 = vpack.c.b16 %v5238, %v5232
    %v5785 = vpack.c.b16 %v5239, %v5233
    %v5786 = vpack.c.b16 %v5240, %v5234
    %v5787 = vpack.c.b16 %v5241, %v5235
    %v5788 = vpack.c.b16 %v5242, %v5236
    %v5789 = vpack.c.b16 %v5249, %v5243
    %v5790 = vpack.c.b16 %v5250, %v5244
    %v5791 = vpack.c.b16 %v5251, %v5245
    %v5792 = vpack.c.b16 %v5252, %v5246
    %v5793 = vpack.c.b16 %v5253, %v5247
    %v5794 = vpack.c.b16 %v5254, %v5248
    %v5795 = vpack.c.b16 %v5261, %v5255
    %v5796 = vpack.c.b16 %v5262, %v5256
    %v5797 = vpack.c.b16 %v5263, %v5257
    %v5798 = vpack.c.b16 %v5264, %v5258
    %v5799 = vpack.c.b16 %v5265, %v5259
    %v5800 = vpack.c.b16 %v5266, %v5260
    %v5801 = vpack.c.b16 %v5273, %v5267
    %v5802 = vpack.c.b16 %v5274, %v5268
    %v5803 = vpack.c.b16 %v5275, %v5269
    %v5804 = vpack.c.b16 %v5276, %v5270
    %v5805 = vpack.c.b16 %v5277, %v5271
    %v5806 = vpack.c.b16 %v5278, %v5272
    %v5807 = vpack.c.b16 %v5285, %v5279
    %v5808 = vpack.c.b16 %v5286, %v5280
    %v5809 = vpack.c.b16 %v5287, %v5281
    %v5810 = vpack.c.b16 %v5288, %v5282
    %v5811 = vpack.c.b16 %v5289, %v5283
    %v5812 = vpack.c.b16 %v5290, %v5284
    %v5813 = vpack.c.b16 %v5297, %v5291
    %v5814 = vpack.c.b16 %v5298, %v5292
    %v5815 = vpack.c.b16 %v5299, %v5293
    %v5816 = vpack.c.b16 %v5300, %v5294
    %v5817 = vpack.c.b16 %v5301, %v5295
    %v5818 = vpack.c.b16 %v5302, %v5296
    %v5819 = vpack.c.b16 %v5309, %v5303
    %v5820 = vpack.c.b16 %v5310, %v5304
    %v5821 = vpack.c.b16 %v5311, %v5305
    %v5822 = vpack.c.b16 %v5312, %v5306
    %v5823 = vpack.c.b16 %v5313, %v5307
    %v5824 = vpack.c.b16 %v5314, %v5308
    %v5825 = vpack.c.b16 %v5321, %v5315
    %v5826 = vpack.c.b16 %v5322, %v5316
    %v5827 = vpack.c.b16 %v5323, %v5317
    %v5828 = vpack.c.b16 %v5324, %v5318
    %v5829 = vpack.c.b16 %v5325, %v5319
    %v5830 = vpack.c.b16 %v5326, %v5320
    %v5831 = vpack.c.b16 %v5333, %v5327
    %v5832 = vpack.c.b16 %v5334, %v5328
    %v5833 = vpack.c.b16 %v5335, %v5329
    %v5834 = vpack.c.b16 %v5336, %v5330
    %v5835 = vpack.c.b16 %v5337, %v5331
    %v5836 = vpack.c.b16 %v5338, %v5332
    %v5837 = vpack.c.b16 %v5345, %v5339
    %v5838 = vpack.c.b16 %v5346, %v5340
    %v5839 = vpack.c.b16 %v5347, %v5341
    %v5840 = vpack.c.b16 %v5348, %v5342
    %v5841 = vpack.c.b16 %v5349, %v5343
    %v5842 = vpack.c.b16 %v5350, %v5344
    %v5843 = vpack.c.b16 %v5357, %v5351
    %v5844 = vpack.c.b16 %v5358, %v5352
    %v5845 = vpack.c.b16 %v5359, %v5353
    %v5846 = vpack.c.b16 %v5360, %v5354
    %v5847 = vpack.c.b16 %v5361, %v5355
    %v5848 = vpack.c.b16 %v5362, %v5356
    %v5849 = vpack.c.b16 %v5369, %v5363
    %v5850 = vpack.c.b16 %v5370, %v5364
    %v5851 = vpack.c.b16 %v5371, %v5365
    %v5852 = vpack.c.b16 %v5372, %v5366
    %v5853 = vpack.c.b16 %v5373, %v5367
    %v5854 = vpack.c.b16 %v5374, %v5368
    %v5855 = vpack.c.b16 %v5381, %v5375
    %v5856 = vpack.c.b16 %v5382, %v5376
    %v5857 = vpack.c.b16 %v5383, %v5377
    %v5858 = vpack.c.b16 %v5384, %v5378
    %v5859 = vpack.c.b16 %v5385, %v5379
    %v5860 = vpack.c.b16 %v5386, %v5380
    %v5861 = vpack.c.b16 %v5393, %v5387
    %v5862 = vpack.c.b16 %v5394, %v5388
    %v5863 = vpack.c.b16 %v5395, %v5389
    %v5864 = vpack.c.b16 %v5396, %v5390
    %v5865 = vpack.c.b16 %v5397, %v5391
    %v5866 = vpack.c.b16 %v5398, %v5392
    %v5867 = vpack.c.b16 %v5405, %v5399
    %v5868 = vpack.c.b16 %v5406, %v5400
    %v5869 = vpack.c.b16 %v5407, %v5401
    %v5870 = vpack.c.b16 %v5408, %v5402
    %v5871 = vpack.c.b16 %v5409, %v5403
    %v5872 = vpack.c.b16 %v5410, %v5404
    %v5873 = vpack.c.b16 %v5417, %v5411
    %v5874 = vpack.c.b16 %v5418, %v5412
    %v5875 = vpack.c.b16 %v5419, %v5413
    %v5876 = vpack.c.b16 %v5420, %v5414
    %v5877 = vpack.c.b16 %v5421, %v5415
    %v5878 = vpack.c.b16 %v5422, %v5416
    %v5879 = vpack.c.b16 %v5429, %v5423
    %v5880 = vpack.c.b16 %v5430, %v5424
    %v5881 = vpack.c.b16 %v5431, %v5425
    %v5882 = vpack.c.b16 %v5432, %v5426
    %v5883 = vpack.c.b16 %v5433, %v5427
    %v5884 = vpack.c.b16 %v5434, %v5428
    %v5885 = vpack.c.b16 %v5441, %v5435
    %v5886 = vpack.c.b16 %v5442, %v5436
    %v5887 = vpack.c.b16 %v5443, %v5437
    %v5888 = vpack.c.b16 %v5444, %v5438
    %v5889 = vpack.c.b16 %v5445, %v5439
    %v5890 = vpack.c.b16 %v5446, %v5440
    %v5891 = vpack.c.b16 %v5453, %v5447
    %v5892 = vpack.c.b16 %v5454, %v5448
    %v5893 = vpack.c.b16 %v5455, %v5449
    %v5894 = vpack.c.b16 %v5456, %v5450
    %v5895 = vpack.c.b16 %v5457, %v5451
    %v5896 = vpack.c.b16 %v5458, %v5452
    %v5897 = vpack.c.b16 %v5465, %v5459
    %v5898 = vpack.c.b16 %v5466, %v5460
    %v5899 = vpack.c.b16 %v5467, %v5461
    %v5900 = vpack.c.b16 %v5468, %v5462
    %v5901 = vpack.c.b16 %v5469, %v5463
    %v5902 = vpack.c.b16 %v5470, %v5464
    %v5903 = vpack.c.b16 %v5477, %v5471
    %v5904 = vpack.c.b16 %v5478, %v5472
    %v5905 = vpack.c.b16 %v5479, %v5473
    %v5906 = vpack.c.b16 %v5480, %v5474
    %v5907 = vpack.c.b16 %v5481, %v5475
    %v5908 = vpack.c.b16 %v5482, %v5476
    %v5909 = vpack.c.b16 %v5489, %v5483
    %v5910 = vpack.c.b16 %v5490, %v5484
    %v5911 = vpack.c.b16 %v5491, %v5485
    %v5912 = vpack.c.b16 %v5492, %v5486
    %v5913 = vpack.c.b16 %v5493, %v5487
    %v5914 = vpack.c.b16 %v5494, %v5488
    %v5915 = vpack.c.b16 %v5501, %v5495
    %v5916 = vpack.c.b16 %v5502, %v5496
    %v5917 = vpack.c.b16 %v5503, %v5497
    %v5918 = vpack.c.b16 %v5504, %v5498
    %v5919 = vpack.c.b16 %v5505, %v5499
    %v5920 = vpack.c.b16 %v5506, %v5500
    %v5921 = vpack.c.b16 %v5513, %v5507
    %v5922 = vpack.c.b16 %v5514, %v5508
    %v5923 = vpack.c.b16 %v5515, %v5509
    %v5924 = vpack.c.b16 %v5516, %v5510
    %v5925 = vpack.c.b16 %v5517, %v5511
    %v5926 = vpack.c.b16 %v5518, %v5512
    %v5927 = vpack.c.b16 %v5525, %v5519
    %v5928 = vpack.c.b16 %v5526, %v5520
    %v5929 = vpack.c.b16 %v5527, %v5521
    %v5930 = vpack.c.b16 %v5528, %v5522
    %v5931 = vpack.c.b16 %v5529, %v5523
    %v5932 = vpack.c.b16 %v5530, %v5524
    %v5933 = vpack.c.b16 %v5537, %v5531
    %v5934 = vpack.c.b16 %v5538, %v5532
    %v5935 = vpack.c.b16 %v5539, %v5533
    %v5936 = vpack.c.b16 %v5540, %v5534
    %v5937 = vpack.c.b16 %v5541, %v5535
    %v5938 = vpack.c.b16 %v5542, %v5536
    %v5939 = vpack.c.b16 %v5549, %v5543
    %v5940 = vpack.c.b16 %v5550, %v5544
    %v5941 = vpack.c.b16 %v5551, %v5545
    %v5942 = vpack.c.b16 %v5552, %v5546
    %v5943 = vpack.c.b16 %v5553, %v5547
    %v5944 = vpack.c.b16 %v5554, %v5548
    %v5945 = vpack.c.b16 %v5561, %v5555
    %v5946 = vpack.c.b16 %v5562, %v5556
    %v5947 = vpack.c.b16 %v5563, %v5557
    %v5948 = vpack.c.b16 %v5564, %v5558
    %v5949 = vpack.c.b16 %v5565, %v5559
    %v5950 = vpack.c.b16 %v5566, %v5560
    %v5951 = vpack.c.b16 %v5573, %v5567
    %v5952 = vpack.c.b16 %v5574, %v5568
    %v5953 = vpack.c.b16 %v5575, %v5569
    %v5954 = vpack.c.b16 %v5576, %v5570
    %v5955 = vpack.c.b16 %v5577, %v5571
    %v5956 = vpack.c.b16 %v5578, %v5572
    %v5957 = vpack.c.b16 %v5585, %v5579
    %v5958 = vpack.c.b16 %v5586, %v5580
    %v5959 = vpack.c.b16 %v5587, %v5581
    %v5960 = vpack.c.b16 %v5588, %v5582
    %v5961 = vpack.c.b16 %v5589, %v5583
    %v5962 = vpack.c.b16 %v5590, %v5584
    %v5963 = vpack.c.b16 %v5597, %v5591
    %v5964 = vpack.c.b16 %v5598, %v5592
    %v5965 = vpack.c.b16 %v5599, %v5593
    %v5966 = vpack.c.b16 %v5600, %v5594
    %v5967 = vpack.c.b16 %v5601, %v5595
    %v5968 = vpack.c.b16 %v5602, %v5596
    %v5969 = vpack.c.b16 %v5609, %v5603
    %v5970 = vpack.c.b16 %v5610, %v5604
    %v5971 = vpack.c.b16 %v5611, %v5605
    %v5972 = vpack.c.b16 %v5612, %v5606
    %v5973 = vpack.c.b16 %v5613, %v5607
    %v5974 = vpack.c.b16 %v5614, %v5608
    %v5975 = vpack.c.b16 %v5621, %v5615
    %v5976 = vpack.c.b16 %v5622, %v5616
    %v5977 = vpack.c.b16 %v5623, %v5617
    %v5978 = vpack.c.b16 %v5624, %v5618
    %v5979 = vpack.c.b16 %v5625, %v5619
    %v5980 = vpack.c.b16 %v5626, %v5620
    %v5981 = vpack.c.b16 %v5633, %v5627
    %v5982 = vpack.c.b16 %v5634, %v5628
    %v5983 = vpack.c.b16 %v5635, %v5629
    %v5984 = vpack.c.b16 %v5636, %v5630
    %v5985 = vpack.c.b16 %v5637, %v5631
    %v5986 = vpack.c.b16 %v5638, %v5632
    %v5987 = vpack.c.b16 %v5645, %v5639
    %v5988 = vpack.c.b16 %v5646, %v5640
    %v5989 = vpack.c.b16 %v5647, %v5641
    %v5990 = vpack.c.b16 %v5648, %v5642
    %v5991 = vpack.c.b16 %v5649, %v5643
    %v5992 = vpack.c.b16 %v5650, %v5644
    %v5993 = vpack.c.b16 %v5657, %v5651
    %v5994 = vpack.c.b16 %v5658, %v5652
    %v5995 = vpack.c.b16 %v5659, %v5653
    %v5996 = vpack.c.b16 %v5660, %v5654
    %v5997 = vpack.c.b16 %v5661, %v5655
    %v5998 = vpack.c.b16 %v5662, %v5656
    %v5999 = vpack.c.b16 %v5669, %v5663
    %v6000 = vpack.c.b16 %v5670, %v5664
    %v6001 = vpack.c.b16 %v5671, %v5665
    %v6002 = vpack.c.b16 %v5672, %v5666
    %v6003 = vpack.c.b16 %v5673, %v5667
    %v6004 = vpack.c.b16 %v5674, %v5668
    %v6005 = vpack.c.b16 %v5681, %v5675
    %v6006 = vpack.c.b16 %v5682, %v5676
    %v6007 = vpack.c.b16 %v5683, %v5677
    %v6008 = vpack.c.b16 %v5684, %v5678
    %v6009 = vpack.c.b16 %v5685, %v5679
    %v6010 = vpack.c.b16 %v5686, %v5680
    %v6011 = vpack.c.b16 %v5693, %v5687
    %v6012 = vpack.c.b16 %v5694, %v5688
    %v6013 = vpack.c.b16 %v5695, %v5689
    %v6014 = vpack.c.b16 %v5696, %v5690
    %v6015 = vpack.c.b16 %v5697, %v5691
    %v6016 = vpack.c.b16 %v5698, %v5692
    %v6017 = vpack.c.b16 %v5705, %v5699
    %v6018 = vpack.c.b16 %v5706, %v5700
    %v6019 = vpack.c.b16 %v5707, %v5701
    %v6020 = vpack.c.b16 %v5708, %v5702
    %v6021 = vpack.c.b16 %v5709, %v5703
    %v6022 = vpack.c.b16 %v5710, %v5704
    %v6023 = vpack.c.b16 %v5717, %v5711
    %v6024 = vpack.c.b16 %v5718, %v5712
    %v6025 = vpack.c.b16 %v5719, %v5713
    %v6026 = vpack.c.b16 %v5720, %v5714
    %v6027 = vpack.c.b16 %v5721, %v5715
    %v6028 = vpack.c.b16 %v5722, %v5716
    %v6029 = vpack.c.b16 %v5729, %v5723
    %v6030 = vpack.c.b16 %v5730, %v5724
    %v6031 = vpack.c.b16 %v5731, %v5725
    %v6032 = vpack.c.b16 %v5732, %v5726
    %v6033 = vpack.c.b16 %v5733, %v5727
    %v6034 = vpack.c.b16 %v5734, %v5728
    %v6035 = vpack.c.b16 %v5741, %v5735
    %v6036 = vpack.c.b16 %v5742, %v5736
    %v6037 = vpack.c.b16 %v5743, %v5737
    %v6038 = vpack.c.b16 %v5744, %v5738
    %v6039 = vpack.c.b16 %v5745, %v5739
    %v6040 = vpack.c.b16 %v5746, %v5740
    %v6041 = vpack.c.b16 %v5753, %v5747
    %v6042 = vpack.c.b16 %v5754, %v5748
    %v6043 = vpack.c.b16 %v5755, %v5749
    %v6044 = vpack.c.b16 %v5756, %v5750
    %v6045 = vpack.c.b16 %v5757, %v5751
    %v6046 = vpack.c.b16 %v5758, %v5752
    %6335 = vmatpush.bf16.msra.mxu0 %v5801
    %6336 = vmatpush.bf16.msra.mxu0 %v5795
    %6337 = vmatpush.bf16.msra.mxu0 %v5789
    %6338 = vmatpush.bf16.msra.mxu0 %v5783
    %6339 = vmatpush.bf16.msra.mxu0 %v5777
    %6340 = vmatpush.bf16.msra.mxu0 %v5771
    %6341 = vmatpush.bf16.msra.mxu0 %v5765
    %6342 = vmatpush.bf16.msra.mxu0 %v5759
    %6343 = vmatmul.bf16.gmra.mxu0 %v4583
    %v6344 = vpop.f32.mrf.mxu0
    %v6345 = vadd.f32 %v4889, %v6344
    %v6346 = vpop.f32.mrf.mxu0
    %6347 = vdwg.mxu0
    %6348 = vmatpush.bf16.msra.mxu0 %v5849
    %6349 = vmatpush.bf16.msra.mxu0 %v5843
    %6350 = vmatpush.bf16.msra.mxu0 %v5837
    %6351 = vmatpush.bf16.msra.mxu0 %v5831
    %6352 = vmatpush.bf16.msra.mxu0 %v5825
    %6353 = vmatpush.bf16.msra.mxu0 %v5819
    %6354 = vmatpush.bf16.msra.mxu0 %v5813
    %6355 = vmatpush.bf16.msra.mxu0 %v5807
    %6356 = vmatmul.bf16.gmra.mxu0 %v4584
    %v6357 = vpop.f32.mrf.mxu0
    %v6358 = vadd.f32 %v6345, %v6357
    %v6359 = vpop.f32.mrf.mxu0
    %6360 = vdwg.mxu0
    %6361 = vmatpush.bf16.msra.mxu0 %v5897
    %6362 = vmatpush.bf16.msra.mxu0 %v5891
    %6363 = vmatpush.bf16.msra.mxu0 %v5885
    %6364 = vmatpush.bf16.msra.mxu0 %v5879
    %6365 = vmatpush.bf16.msra.mxu0 %v5873
    %6366 = vmatpush.bf16.msra.mxu0 %v5867
    %6367 = vmatpush.bf16.msra.mxu0 %v5861
    %6368 = vmatpush.bf16.msra.mxu0 %v5855
    %6369 = vmatmul.bf16.gmra.mxu0 %v4585
    %v6370 = vpop.f32.mrf.mxu0
    %v6371 = vadd.f32 %v6358, %v6370
    %v6372 = vpop.f32.mrf.mxu0
    %6373 = vdwg.mxu0
    %6374 = vmatpush.bf16.msra.mxu0 %v5945
    %6375 = vmatpush.bf16.msra.mxu0 %v5939
    %6376 = vmatpush.bf16.msra.mxu0 %v5933
    %6377 = vmatpush.bf16.msra.mxu0 %v5927
    %6378 = vmatpush.bf16.msra.mxu0 %v5921
    %6379 = vmatpush.bf16.msra.mxu0 %v5915
    %6380 = vmatpush.bf16.msra.mxu0 %v5909
    %6381 = vmatpush.bf16.msra.mxu0 %v5903
    %6382 = vmatmul.bf16.gmra.mxu0 %v4586
    %v6383 = vpop.f32.mrf.mxu0
    %v6384 = vadd.f32 %v6371, %v6383
    %v6385 = vpop.f32.mrf.mxu0
    %6386 = vdwg.mxu0
    %6387 = vmatpush.bf16.msra.mxu0 %v5993
    %6388 = vmatpush.bf16.msra.mxu0 %v5987
    %6389 = vmatpush.bf16.msra.mxu0 %v5981
    %6390 = vmatpush.bf16.msra.mxu0 %v5975
    %6391 = vmatpush.bf16.msra.mxu0 %v5969
    %6392 = vmatpush.bf16.msra.mxu0 %v5963
    %6393 = vmatpush.bf16.msra.mxu0 %v5957
    %6394 = vmatpush.bf16.msra.mxu0 %v5951
    %6395 = vmatmul.bf16.gmra.mxu0 %v4587
    %v6396 = vpop.f32.mrf.mxu0
    %v6397 = vadd.f32 %v6384, %v6396
    %v6398 = vpop.f32.mrf.mxu0
    %6399 = vdwg.mxu0
    %6400 = vmatpush.bf16.msra.mxu0 %v6041
    %6401 = vmatpush.bf16.msra.mxu0 %v6035
    %6402 = vmatpush.bf16.msra.mxu0 %v6029
    %6403 = vmatpush.bf16.msra.mxu0 %v6023
    %6404 = vmatpush.bf16.msra.mxu0 %v6017
    %6405 = vmatpush.bf16.msra.mxu0 %v6011
    %6406 = vmatpush.bf16.msra.mxu0 %v6005
    %6407 = vmatpush.bf16.msra.mxu0 %v5999
    %6408 = vmatmul.bf16.gmra.mxu0 %v4588
    %v6409 = vpop.f32.mrf.mxu0
    %v6410 = vadd.f32 %v6397, %v6409
    %v6411 = vpop.f32.mrf.mxu0
    %6412 = vdwg.mxu0
    %6413 = vmatpush.bf16.msra.mxu0 %v5802
    %6414 = vmatpush.bf16.msra.mxu0 %v5796
    %6415 = vmatpush.bf16.msra.mxu0 %v5790
    %6416 = vmatpush.bf16.msra.mxu0 %v5784
    %6417 = vmatpush.bf16.msra.mxu0 %v5778
    %6418 = vmatpush.bf16.msra.mxu0 %v5772
    %6419 = vmatpush.bf16.msra.mxu0 %v5766
    %6420 = vmatpush.bf16.msra.mxu0 %v5760
    %6421 = vmatmul.bf16.gmra.mxu0 %v4583
    %v6422 = vpop.f32.mrf.mxu0
    %v6423 = vadd.f32 %v4890, %v6422
    %v6424 = vpop.f32.mrf.mxu0
    %6425 = vdwg.mxu0
    %6426 = vmatpush.bf16.msra.mxu0 %v5850
    %6427 = vmatpush.bf16.msra.mxu0 %v5844
    %6428 = vmatpush.bf16.msra.mxu0 %v5838
    %6429 = vmatpush.bf16.msra.mxu0 %v5832
    %6430 = vmatpush.bf16.msra.mxu0 %v5826
    %6431 = vmatpush.bf16.msra.mxu0 %v5820
    %6432 = vmatpush.bf16.msra.mxu0 %v5814
    %6433 = vmatpush.bf16.msra.mxu0 %v5808
    %6434 = vmatmul.bf16.gmra.mxu0 %v4584
    %v6435 = vpop.f32.mrf.mxu0
    %v6436 = vadd.f32 %v6423, %v6435
    %v6437 = vpop.f32.mrf.mxu0
    %6438 = vdwg.mxu0
    %6439 = vmatpush.bf16.msra.mxu0 %v5898
    %6440 = vmatpush.bf16.msra.mxu0 %v5892
    %6441 = vmatpush.bf16.msra.mxu0 %v5886
    %6442 = vmatpush.bf16.msra.mxu0 %v5880
    %6443 = vmatpush.bf16.msra.mxu0 %v5874
    %6444 = vmatpush.bf16.msra.mxu0 %v5868
    %6445 = vmatpush.bf16.msra.mxu0 %v5862
    %6446 = vmatpush.bf16.msra.mxu0 %v5856
    %6447 = vmatmul.bf16.gmra.mxu0 %v4585
    %v6448 = vpop.f32.mrf.mxu0
    %v6449 = vadd.f32 %v6436, %v6448
    %v6450 = vpop.f32.mrf.mxu0
    %6451 = vdwg.mxu0
    %6452 = vmatpush.bf16.msra.mxu0 %v5946
    %6453 = vmatpush.bf16.msra.mxu0 %v5940
    %6454 = vmatpush.bf16.msra.mxu0 %v5934
    %6455 = vmatpush.bf16.msra.mxu0 %v5928
    %6456 = vmatpush.bf16.msra.mxu0 %v5922
    %6457 = vmatpush.bf16.msra.mxu0 %v5916
    %6458 = vmatpush.bf16.msra.mxu0 %v5910
    %6459 = vmatpush.bf16.msra.mxu0 %v5904
    %6460 = vmatmul.bf16.gmra.mxu0 %v4586
    %v6461 = vpop.f32.mrf.mxu0
    %v6462 = vadd.f32 %v6449, %v6461
    %v6463 = vpop.f32.mrf.mxu0
    %6464 = vdwg.mxu0
    %6465 = vmatpush.bf16.msra.mxu0 %v5994
    %6466 = vmatpush.bf16.msra.mxu0 %v5988
    %6467 = vmatpush.bf16.msra.mxu0 %v5982
    %6468 = vmatpush.bf16.msra.mxu0 %v5976
    %6469 = vmatpush.bf16.msra.mxu0 %v5970
    %6470 = vmatpush.bf16.msra.mxu0 %v5964
    %6471 = vmatpush.bf16.msra.mxu0 %v5958
    %6472 = vmatpush.bf16.msra.mxu0 %v5952
    %6473 = vmatmul.bf16.gmra.mxu0 %v4587
    %v6474 = vpop.f32.mrf.mxu0
    %v6475 = vadd.f32 %v6462, %v6474
    %v6476 = vpop.f32.mrf.mxu0
    %6477 = vdwg.mxu0
    %6478 = vmatpush.bf16.msra.mxu0 %v6042
    %6479 = vmatpush.bf16.msra.mxu0 %v6036
    %6480 = vmatpush.bf16.msra.mxu0 %v6030
    %6481 = vmatpush.bf16.msra.mxu0 %v6024
    %6482 = vmatpush.bf16.msra.mxu0 %v6018
    %6483 = vmatpush.bf16.msra.mxu0 %v6012
    %6484 = vmatpush.bf16.msra.mxu0 %v6006
    %6485 = vmatpush.bf16.msra.mxu0 %v6000
    %6486 = vmatmul.bf16.gmra.mxu0 %v4588
    %v6487 = vpop.f32.mrf.mxu0
    %v6488 = vadd.f32 %v6475, %v6487
    %v6489 = vpop.f32.mrf.mxu0
    %6490 = vdwg.mxu0
    %6491 = vmatpush.bf16.msra.mxu0 %v5803
    %6492 = vmatpush.bf16.msra.mxu0 %v5797
    %6493 = vmatpush.bf16.msra.mxu0 %v5791
    %6494 = vmatpush.bf16.msra.mxu0 %v5785
    %6495 = vmatpush.bf16.msra.mxu0 %v5779
    %6496 = vmatpush.bf16.msra.mxu0 %v5773
    %6497 = vmatpush.bf16.msra.mxu0 %v5767
    %6498 = vmatpush.bf16.msra.mxu0 %v5761
    %6499 = vmatmul.bf16.gmra.mxu0 %v4583
    %v6500 = vpop.f32.mrf.mxu0
    %v6501 = vadd.f32 %v4891, %v6500
    %v6502 = vpop.f32.mrf.mxu0
    %6503 = vdwg.mxu0
    %6504 = vmatpush.bf16.msra.mxu0 %v5851
    %6505 = vmatpush.bf16.msra.mxu0 %v5845
    %6506 = vmatpush.bf16.msra.mxu0 %v5839
    %6507 = vmatpush.bf16.msra.mxu0 %v5833
    %6508 = vmatpush.bf16.msra.mxu0 %v5827
    %6509 = vmatpush.bf16.msra.mxu0 %v5821
    %6510 = vmatpush.bf16.msra.mxu0 %v5815
    %6511 = vmatpush.bf16.msra.mxu0 %v5809
    %6512 = vmatmul.bf16.gmra.mxu0 %v4584
    %v6513 = vpop.f32.mrf.mxu0
    %v6514 = vadd.f32 %v6501, %v6513
    %v6515 = vpop.f32.mrf.mxu0
    %6516 = vdwg.mxu0
    %6517 = vmatpush.bf16.msra.mxu0 %v5899
    %6518 = vmatpush.bf16.msra.mxu0 %v5893
    %6519 = vmatpush.bf16.msra.mxu0 %v5887
    %6520 = vmatpush.bf16.msra.mxu0 %v5881
    %6521 = vmatpush.bf16.msra.mxu0 %v5875
    %6522 = vmatpush.bf16.msra.mxu0 %v5869
    %6523 = vmatpush.bf16.msra.mxu0 %v5863
    %6524 = vmatpush.bf16.msra.mxu0 %v5857
    %6525 = vmatmul.bf16.gmra.mxu0 %v4585
    %v6526 = vpop.f32.mrf.mxu0
    %v6527 = vadd.f32 %v6514, %v6526
    %v6528 = vpop.f32.mrf.mxu0
    %6529 = vdwg.mxu0
    %6530 = vmatpush.bf16.msra.mxu0 %v5947
    %6531 = vmatpush.bf16.msra.mxu0 %v5941
    %6532 = vmatpush.bf16.msra.mxu0 %v5935
    %6533 = vmatpush.bf16.msra.mxu0 %v5929
    %6534 = vmatpush.bf16.msra.mxu0 %v5923
    %6535 = vmatpush.bf16.msra.mxu0 %v5917
    %6536 = vmatpush.bf16.msra.mxu0 %v5911
    %6537 = vmatpush.bf16.msra.mxu0 %v5905
    %6538 = vmatmul.bf16.gmra.mxu0 %v4586
    %v6539 = vpop.f32.mrf.mxu0
    %v6540 = vadd.f32 %v6527, %v6539
    %v6541 = vpop.f32.mrf.mxu0
    %6542 = vdwg.mxu0
    %6543 = vmatpush.bf16.msra.mxu0 %v5995
    %6544 = vmatpush.bf16.msra.mxu0 %v5989
    %6545 = vmatpush.bf16.msra.mxu0 %v5983
    %6546 = vmatpush.bf16.msra.mxu0 %v5977
    %6547 = vmatpush.bf16.msra.mxu0 %v5971
    %6548 = vmatpush.bf16.msra.mxu0 %v5965
    %6549 = vmatpush.bf16.msra.mxu0 %v5959
    %6550 = vmatpush.bf16.msra.mxu0 %v5953
    %6551 = vmatmul.bf16.gmra.mxu0 %v4587
    %v6552 = vpop.f32.mrf.mxu0
    %v6553 = vadd.f32 %v6540, %v6552
    %v6554 = vpop.f32.mrf.mxu0
    %6555 = vdwg.mxu0
    %6556 = vmatpush.bf16.msra.mxu0 %v6043
    %6557 = vmatpush.bf16.msra.mxu0 %v6037
    %6558 = vmatpush.bf16.msra.mxu0 %v6031
    %6559 = vmatpush.bf16.msra.mxu0 %v6025
    %6560 = vmatpush.bf16.msra.mxu0 %v6019
    %6561 = vmatpush.bf16.msra.mxu0 %v6013
    %6562 = vmatpush.bf16.msra.mxu0 %v6007
    %6563 = vmatpush.bf16.msra.mxu0 %v6001
    %6564 = vmatmul.bf16.gmra.mxu0 %v4588
    %v6565 = vpop.f32.mrf.mxu0
    %v6566 = vadd.f32 %v6553, %v6565
    %v6567 = vpop.f32.mrf.mxu0
    %6568 = vdwg.mxu0
    %6569 = vmatpush.bf16.msra.mxu0 %v5804
    %6570 = vmatpush.bf16.msra.mxu0 %v5798
    %6571 = vmatpush.bf16.msra.mxu0 %v5792
    %6572 = vmatpush.bf16.msra.mxu0 %v5786
    %6573 = vmatpush.bf16.msra.mxu0 %v5780
    %6574 = vmatpush.bf16.msra.mxu0 %v5774
    %6575 = vmatpush.bf16.msra.mxu0 %v5768
    %6576 = vmatpush.bf16.msra.mxu0 %v5762
    %6577 = vmatmul.bf16.gmra.mxu0 %v4583
    %v6578 = vpop.f32.mrf.mxu0
    %v6579 = vadd.f32 %v4892, %v6578
    %v6580 = vpop.f32.mrf.mxu0
    %6581 = vdwg.mxu0
    %6582 = vmatpush.bf16.msra.mxu0 %v5852
    %6583 = vmatpush.bf16.msra.mxu0 %v5846
    %6584 = vmatpush.bf16.msra.mxu0 %v5840
    %6585 = vmatpush.bf16.msra.mxu0 %v5834
    %6586 = vmatpush.bf16.msra.mxu0 %v5828
    %6587 = vmatpush.bf16.msra.mxu0 %v5822
    %6588 = vmatpush.bf16.msra.mxu0 %v5816
    %6589 = vmatpush.bf16.msra.mxu0 %v5810
    %6590 = vmatmul.bf16.gmra.mxu0 %v4584
    %v6591 = vpop.f32.mrf.mxu0
    %v6592 = vadd.f32 %v6579, %v6591
    %v6593 = vpop.f32.mrf.mxu0
    %6594 = vdwg.mxu0
    %6595 = vmatpush.bf16.msra.mxu0 %v5900
    %6596 = vmatpush.bf16.msra.mxu0 %v5894
    %6597 = vmatpush.bf16.msra.mxu0 %v5888
    %6598 = vmatpush.bf16.msra.mxu0 %v5882
    %6599 = vmatpush.bf16.msra.mxu0 %v5876
    %6600 = vmatpush.bf16.msra.mxu0 %v5870
    %6601 = vmatpush.bf16.msra.mxu0 %v5864
    %6602 = vmatpush.bf16.msra.mxu0 %v5858
    %6603 = vmatmul.bf16.gmra.mxu0 %v4585
    %v6604 = vpop.f32.mrf.mxu0
    %v6605 = vadd.f32 %v6592, %v6604
    %v6606 = vpop.f32.mrf.mxu0
    %6607 = vdwg.mxu0
    %6608 = vmatpush.bf16.msra.mxu0 %v5948
    %6609 = vmatpush.bf16.msra.mxu0 %v5942
    %6610 = vmatpush.bf16.msra.mxu0 %v5936
    %6611 = vmatpush.bf16.msra.mxu0 %v5930
    %6612 = vmatpush.bf16.msra.mxu0 %v5924
    %6613 = vmatpush.bf16.msra.mxu0 %v5918
    %6614 = vmatpush.bf16.msra.mxu0 %v5912
    %6615 = vmatpush.bf16.msra.mxu0 %v5906
    %6616 = vmatmul.bf16.gmra.mxu0 %v4586
    %v6617 = vpop.f32.mrf.mxu0
    %v6618 = vadd.f32 %v6605, %v6617
    %v6619 = vpop.f32.mrf.mxu0
    %6620 = vdwg.mxu0
    %6621 = vmatpush.bf16.msra.mxu0 %v5996
    %6622 = vmatpush.bf16.msra.mxu0 %v5990
    %6623 = vmatpush.bf16.msra.mxu0 %v5984
    %6624 = vmatpush.bf16.msra.mxu0 %v5978
    %6625 = vmatpush.bf16.msra.mxu0 %v5972
    %6626 = vmatpush.bf16.msra.mxu0 %v5966
    %6627 = vmatpush.bf16.msra.mxu0 %v5960
    %6628 = vmatpush.bf16.msra.mxu0 %v5954
    %6629 = vmatmul.bf16.gmra.mxu0 %v4587
    %v6630 = vpop.f32.mrf.mxu0
    %v6631 = vadd.f32 %v6618, %v6630
    %v6632 = vpop.f32.mrf.mxu0
    %6633 = vdwg.mxu0
    %6634 = vmatpush.bf16.msra.mxu0 %v6044
    %6635 = vmatpush.bf16.msra.mxu0 %v6038
    %6636 = vmatpush.bf16.msra.mxu0 %v6032
    %6637 = vmatpush.bf16.msra.mxu0 %v6026
    %6638 = vmatpush.bf16.msra.mxu0 %v6020
    %6639 = vmatpush.bf16.msra.mxu0 %v6014
    %6640 = vmatpush.bf16.msra.mxu0 %v6008
    %6641 = vmatpush.bf16.msra.mxu0 %v6002
    %6642 = vmatmul.bf16.gmra.mxu0 %v4588
    %v6643 = vpop.f32.mrf.mxu0
    %v6644 = vadd.f32 %v6631, %v6643
    %v6645 = vpop.f32.mrf.mxu0
    %6646 = vdwg.mxu0
    %6647 = vmatpush.bf16.msra.mxu0 %v5805
    %6648 = vmatpush.bf16.msra.mxu0 %v5799
    %6649 = vmatpush.bf16.msra.mxu0 %v5793
    %6650 = vmatpush.bf16.msra.mxu0 %v5787
    %6651 = vmatpush.bf16.msra.mxu0 %v5781
    %6652 = vmatpush.bf16.msra.mxu0 %v5775
    %6653 = vmatpush.bf16.msra.mxu0 %v5769
    %6654 = vmatpush.bf16.msra.mxu0 %v5763
    %6655 = vmatmul.bf16.gmra.mxu0 %v4583
    %v6656 = vpop.f32.mrf.mxu0
    %v6657 = vadd.f32 %v4893, %v6656
    %v6658 = vpop.f32.mrf.mxu0
    %6659 = vdwg.mxu0
    %6660 = vmatpush.bf16.msra.mxu0 %v5853
    %6661 = vmatpush.bf16.msra.mxu0 %v5847
    %6662 = vmatpush.bf16.msra.mxu0 %v5841
    %6663 = vmatpush.bf16.msra.mxu0 %v5835
    %6664 = vmatpush.bf16.msra.mxu0 %v5829
    %6665 = vmatpush.bf16.msra.mxu0 %v5823
    %6666 = vmatpush.bf16.msra.mxu0 %v5817
    %6667 = vmatpush.bf16.msra.mxu0 %v5811
    %6668 = vmatmul.bf16.gmra.mxu0 %v4584
    %v6669 = vpop.f32.mrf.mxu0
    %v6670 = vadd.f32 %v6657, %v6669
    %v6671 = vpop.f32.mrf.mxu0
    %6672 = vdwg.mxu0
    %6673 = vmatpush.bf16.msra.mxu0 %v5901
    %6674 = vmatpush.bf16.msra.mxu0 %v5895
    %6675 = vmatpush.bf16.msra.mxu0 %v5889
    %6676 = vmatpush.bf16.msra.mxu0 %v5883
    %6677 = vmatpush.bf16.msra.mxu0 %v5877
    %6678 = vmatpush.bf16.msra.mxu0 %v5871
    %6679 = vmatpush.bf16.msra.mxu0 %v5865
    %6680 = vmatpush.bf16.msra.mxu0 %v5859
    %6681 = vmatmul.bf16.gmra.mxu0 %v4585
    %v6682 = vpop.f32.mrf.mxu0
    %v6683 = vadd.f32 %v6670, %v6682
    %v6684 = vpop.f32.mrf.mxu0
    %6685 = vdwg.mxu0
    %6686 = vmatpush.bf16.msra.mxu0 %v5949
    %6687 = vmatpush.bf16.msra.mxu0 %v5943
    %6688 = vmatpush.bf16.msra.mxu0 %v5937
    %6689 = vmatpush.bf16.msra.mxu0 %v5931
    %6690 = vmatpush.bf16.msra.mxu0 %v5925
    %6691 = vmatpush.bf16.msra.mxu0 %v5919
    %6692 = vmatpush.bf16.msra.mxu0 %v5913
    %6693 = vmatpush.bf16.msra.mxu0 %v5907
    %6694 = vmatmul.bf16.gmra.mxu0 %v4586
    %v6695 = vpop.f32.mrf.mxu0
    %v6696 = vadd.f32 %v6683, %v6695
    %v6697 = vpop.f32.mrf.mxu0
    %6698 = vdwg.mxu0
    %6699 = vmatpush.bf16.msra.mxu0 %v5997
    %6700 = vmatpush.bf16.msra.mxu0 %v5991
    %6701 = vmatpush.bf16.msra.mxu0 %v5985
    %6702 = vmatpush.bf16.msra.mxu0 %v5979
    %6703 = vmatpush.bf16.msra.mxu0 %v5973
    %6704 = vmatpush.bf16.msra.mxu0 %v5967
    %6705 = vmatpush.bf16.msra.mxu0 %v5961
    %6706 = vmatpush.bf16.msra.mxu0 %v5955
    %6707 = vmatmul.bf16.gmra.mxu0 %v4587
    %v6708 = vpop.f32.mrf.mxu0
    %v6709 = vadd.f32 %v6696, %v6708
    %v6710 = vpop.f32.mrf.mxu0
    %6711 = vdwg.mxu0
    %6712 = vmatpush.bf16.msra.mxu0 %v6045
    %6713 = vmatpush.bf16.msra.mxu0 %v6039
    %6714 = vmatpush.bf16.msra.mxu0 %v6033
    %6715 = vmatpush.bf16.msra.mxu0 %v6027
    %6716 = vmatpush.bf16.msra.mxu0 %v6021
    %6717 = vmatpush.bf16.msra.mxu0 %v6015
    %6718 = vmatpush.bf16.msra.mxu0 %v6009
    %6719 = vmatpush.bf16.msra.mxu0 %v6003
    %6720 = vmatmul.bf16.gmra.mxu0 %v4588
    %v6721 = vpop.f32.mrf.mxu0
    %v6722 = vadd.f32 %v6709, %v6721
    %v6723 = vpop.f32.mrf.mxu0
    %6724 = vdwg.mxu0
    %6725 = vmatpush.bf16.msra.mxu0 %v5806
    %6726 = vmatpush.bf16.msra.mxu0 %v5800
    %6727 = vmatpush.bf16.msra.mxu0 %v5794
    %6728 = vmatpush.bf16.msra.mxu0 %v5788
    %6729 = vmatpush.bf16.msra.mxu0 %v5782
    %6730 = vmatpush.bf16.msra.mxu0 %v5776
    %6731 = vmatpush.bf16.msra.mxu0 %v5770
    %6732 = vmatpush.bf16.msra.mxu0 %v5764
    %6733 = vmatmul.bf16.gmra.mxu0 %v4583
    %v6734 = vpop.f32.mrf.mxu0
    %v6735 = vadd.f32 %v4894, %v6734
    %v6736 = vpop.f32.mrf.mxu0
    %6737 = vdwg.mxu0
    %6738 = vmatpush.bf16.msra.mxu0 %v5854
    %6739 = vmatpush.bf16.msra.mxu0 %v5848
    %6740 = vmatpush.bf16.msra.mxu0 %v5842
    %6741 = vmatpush.bf16.msra.mxu0 %v5836
    %6742 = vmatpush.bf16.msra.mxu0 %v5830
    %6743 = vmatpush.bf16.msra.mxu0 %v5824
    %6744 = vmatpush.bf16.msra.mxu0 %v5818
    %6745 = vmatpush.bf16.msra.mxu0 %v5812
    %6746 = vmatmul.bf16.gmra.mxu0 %v4584
    %v6747 = vpop.f32.mrf.mxu0
    %v6748 = vadd.f32 %v6735, %v6747
    %v6749 = vpop.f32.mrf.mxu0
    %6750 = vdwg.mxu0
    %6751 = vmatpush.bf16.msra.mxu0 %v5902
    %6752 = vmatpush.bf16.msra.mxu0 %v5896
    %6753 = vmatpush.bf16.msra.mxu0 %v5890
    %6754 = vmatpush.bf16.msra.mxu0 %v5884
    %6755 = vmatpush.bf16.msra.mxu0 %v5878
    %6756 = vmatpush.bf16.msra.mxu0 %v5872
    %6757 = vmatpush.bf16.msra.mxu0 %v5866
    %6758 = vmatpush.bf16.msra.mxu0 %v5860
    %6759 = vmatmul.bf16.gmra.mxu0 %v4585
    %v6760 = vpop.f32.mrf.mxu0
    %v6761 = vadd.f32 %v6748, %v6760
    %v6762 = vpop.f32.mrf.mxu0
    %6763 = vdwg.mxu0
    %6764 = vmatpush.bf16.msra.mxu0 %v5950
    %6765 = vmatpush.bf16.msra.mxu0 %v5944
    %6766 = vmatpush.bf16.msra.mxu0 %v5938
    %6767 = vmatpush.bf16.msra.mxu0 %v5932
    %6768 = vmatpush.bf16.msra.mxu0 %v5926
    %6769 = vmatpush.bf16.msra.mxu0 %v5920
    %6770 = vmatpush.bf16.msra.mxu0 %v5914
    %6771 = vmatpush.bf16.msra.mxu0 %v5908
    %6772 = vmatmul.bf16.gmra.mxu0 %v4586
    %v6773 = vpop.f32.mrf.mxu0
    %v6774 = vadd.f32 %v6761, %v6773
    %v6775 = vpop.f32.mrf.mxu0
    %6776 = vdwg.mxu0
    %6777 = vmatpush.bf16.msra.mxu0 %v5998
    %6778 = vmatpush.bf16.msra.mxu0 %v5992
    %6779 = vmatpush.bf16.msra.mxu0 %v5986
    %6780 = vmatpush.bf16.msra.mxu0 %v5980
    %6781 = vmatpush.bf16.msra.mxu0 %v5974
    %6782 = vmatpush.bf16.msra.mxu0 %v5968
    %6783 = vmatpush.bf16.msra.mxu0 %v5962
    %6784 = vmatpush.bf16.msra.mxu0 %v5956
    %6785 = vmatmul.bf16.gmra.mxu0 %v4587
    %v6786 = vpop.f32.mrf.mxu0
    %v6787 = vadd.f32 %v6774, %v6786
    %v6788 = vpop.f32.mrf.mxu0
    %6789 = vdwg.mxu0
    %6790 = vmatpush.bf16.msra.mxu0 %v6046
    %6791 = vmatpush.bf16.msra.mxu0 %v6040
    %6792 = vmatpush.bf16.msra.mxu0 %v6034
    %6793 = vmatpush.bf16.msra.mxu0 %v6028
    %6794 = vmatpush.bf16.msra.mxu0 %v6022
    %6795 = vmatpush.bf16.msra.mxu0 %v6016
    %6796 = vmatpush.bf16.msra.mxu0 %v6010
    %6797 = vmatpush.bf16.msra.mxu0 %v6004
    %6798 = vmatmul.bf16.gmra.mxu0 %v4588
    %v6799 = vpop.f32.mrf.mxu0
    %v6800 = vadd.f32 %v6787, %v6799
    %v6801 = vpop.f32.mrf.mxu0
    %6802 = vdwg.mxu0
    %vm6803 = vcmp.gt.f32.partialorder %v6410, 0.0
    %vm6804 = vcmp.gt.f32.partialorder %v6488, 0.0
    %vm6805 = vcmp.gt.f32.partialorder %v6566, 0.0
    %vm6806 = vcmp.gt.f32.partialorder %v6644, 0.0
    %vm6807 = vcmp.gt.f32.partialorder %v6722, 0.0
    %vm6808 = vcmp.gt.f32.partialorder %v6800, 0.0
    %v6809 = vmul.f32 %v6410, 0.01
    %v6810 = vmul.f32 %v6488, 0.01
    %v6811 = vmul.f32 %v6566, 0.01
    %v6812 = vmul.f32 %v6644, 0.01
    %v6813 = vmul.f32 %v6722, 0.01
    %v6814 = vmul.f32 %v6800, 0.01
    %v6815 = vsel %vm6803, %v6410, %v6809
    %v6816 = vsel %vm6804, %v6488, %v6810
    %v6817 = vsel %vm6805, %v6566, %v6811
    %v6818 = vsel %vm6806, %v6644, %v6812
    %v6819 = vsel %vm6807, %v6722, %v6813
    %v6820 = vsel %vm6808, %v6800, %v6814
    %6821 = vst [vmem:[#allocation11] sm:$0xff] %v6815
    %6822 = vst [vmem:[#allocation11 + $0x8] sm:$0xff] %v6816
    %6823 = vst [vmem:[#allocation11 + $0x10] sm:$0xff] %v6817
    %6824 = vst [vmem:[#allocation11 + $0x18] sm:$0xff] %v6818
    %6825 = vst [vmem:[#allocation11 + $0x20] sm:$0xff] %v6819
    %6826 = vst [vmem:[#allocation11 + $0x28] sm:$0xff] %v6820
    // Predicated region
    $region42: #{tpu_custom_call.1} parent=1 // pred_check
      _
    $region43: #{tpu_custom_call.1} parent=1 // pred_check_branch
      %6828 = sbr.rel (0) target = $region45
    $region44: #{tpu_custom_call.1} parent=1 // pred_region
      %6830 = vsyncadd [#allocation4], 0
      %s6832 = sshll.u32 [#allocation11], 4
      %s6833 = int_to_ptr.vmem [resolvable:$true] %s6832
      %s6834 = sshll.u32 %s5, 4
      %s6835 = int_to_ptr.hbm [resolvable:$true] %s6834
      %6837 = dma.vmem_to_hbm [thread:$0]  %s6833, 768, %s6835, [#allocation4]
    $region45: #{tpu_custom_call.1} parent=1 // pred_fallthru
      _
    // Predicated region
    $region46: #{tpu_custom_call.1} parent=1 // pred_check
      _
    $region47: #{tpu_custom_call.1} parent=1 // pred_check_branch
      %6839 = sbr.rel (0) target = $region49
    $region48: #{tpu_custom_call.1} parent=1 // pred_region
      %6841 = dma.done [#allocation4], 768
    $region49: #{tpu_custom_call.1} parent=1 // pred_fallthru
      _
    %6842 = vsyncpa [#allocation3], 1
    %6843 = vsyncpa [#allocation6], 1
    %6844 = vsyncpa [#allocation9], 1
    %6845 = vsyncpa [#allocation4], 1

</llo_original>
